<compile_context>
chip_gen: v5e
topology: v5e:2x2
jax: 0.10.0
libtpu: 0.0.40
codegen_flags: <defaults>
</compile_context>

<pallas_src>
import math
import functools

import jax
import jax.numpy as jnp
import numpy as np
from jax.experimental import pallas as pl
from jax.experimental.pallas import tpu as pltpu


_VMEM = pl.BlockSpec(memory_space=pltpu.MemorySpace.VMEM)
_LN_EPS = 1e-5  # TODO(synk): LayerNorm(config) body not provided; assuming standard LN, eps=1e-5.


# ----------------------------- kernel helpers -----------------------------

def _layernorm2d(x, g, b, eps):
    # x: (M, D) f32, g/b: (1, D) f32 — all statistics in f32 (v5e has no bf16 VPU/EUP).
    mean = jnp.mean(x, axis=-1, keepdims=True)
    xc = x - mean
    var = jnp.mean(xc * xc, axis=-1, keepdims=True)
    return xc * jax.lax.rsqrt(var + eps) * g + b


# ----------------------------- Pallas kernels -----------------------------

def _attn_sublayer_kernel(x_ref, kv_ref, g_ref, b_ref, wqkv_ref, wo_ref, o_ref,
                          *, n_heads, causal, self_attn):
    """out = x + W_o( MHA( LN(x), K/V-source ) ).

    x_ref  : (B, Sq, D) f32   residual / query source
    kv_ref : (B, Sk, D) f32   key/value source (ignored when self_attn: K/V = LN(x))
    wqkv   : (D, 3D) bf16     [W_q * 1/sqrt(d_k) | W_k | W_v]
    wo     : (D, D)  bf16
    """
    B, Sq, D = x_ref.shape
    Sk = kv_ref.shape[1]
    dk = D // n_heads

    x = x_ref[...]                                            # (B, Sq, D) f32 residual
    hq2 = _layernorm2d(x.reshape(B * Sq, D), g_ref[...], b_ref[...], _LN_EPS)
    hq2 = hq2.astype(jnp.bfloat16)

    if self_attn:
        # single fused QKV projection (lane width 3D)
        qkv = jnp.dot(hq2, wqkv_ref[...], preferred_element_type=jnp.float32)  # (B*Sq, 3D)
        q = qkv[:, :D].reshape(B, Sq, D)
        k = qkv[:, D:2 * D].reshape(B, Sk, D)
        v = qkv[:, 2 * D:].reshape(B, Sk, D)
    else:
        # cross-attention: queries from LN(x), keys/values from the raw encoder output
        hk2 = kv_ref[...].reshape(B * Sk, D).astype(jnp.bfloat16)
        q = jnp.dot(hq2, wqkv_ref[:, :D],
                    preferred_element_type=jnp.float32).reshape(B, Sq, D)
        kv = jnp.dot(hk2, wqkv_ref[:, D:],
                     preferred_element_type=jnp.float32)                       # (B*Sk, 2D)
        k = kv[:, :D].reshape(B, Sk, D)
        v = kv[:, D:].reshape(B, Sk, D)

    if causal:
        # mask generated in-kernel; no HBM mask tensor / DMA.
        row = jax.lax.broadcasted_iota(jnp.int32, (B, Sq, Sk), 1)
        col = jax.lax.broadcasted_iota(jnp.int32, (B, Sq, Sk), 2)
        keep = col <= row

    outs = []
    for h in range(n_heads):                                  # static unroll over heads
        sl = slice(h * dk, (h + 1) * dk)
        qh = q[:, :, sl].astype(jnp.bfloat16)                 # (B, Sq, dk)
        kh = k[:, :, sl].astype(jnp.bfloat16)                 # (B, Sk, dk)
        vh = v[:, :, sl].astype(jnp.bfloat16)                 # (B, Sk, dk)
        # scale already folded into W_q
        s = jnp.einsum('bqd,bkd->bqk', qh, kh,
                       preferred_element_type=jnp.float32)    # (B, Sq, Sk) f32
        if causal:
            s = jnp.where(keep, s, -1e30)                     # finite: no NaN on padded rows
        m = jnp.max(s, axis=-1, keepdims=True)
        e = jnp.exp(s - m)                                    # f32 softmax math
        p = e * pl.reciprocal(jnp.sum(e, axis=-1, keepdims=True), approx=True)
        outs.append(jnp.einsum('bqk,bkd->bqd', p.astype(jnp.bfloat16), vh,
                               preferred_element_type=jnp.float32))
    attn = jnp.concatenate(outs, axis=-1)                     # (B, Sq, D) f32

    proj = jnp.dot(attn.reshape(B * Sq, D).astype(jnp.bfloat16), wo_ref[...],
                   preferred_element_type=jnp.float32).reshape(B, Sq, D)
    o_ref[...] = x + proj                                     # residual fused in-kernel


def _ff_sublayer_kernel(x_ref, g_ref, b_ref, w1_ref, b1_ref, w2_ref, b2_ref, o_ref,
                        *, add_residual):
    """LN -> Linear -> GELU(exact erf) -> Linear (+ residual for encoder)."""
    # TODO(synk): FeedForwardGELU(config) body not provided; assuming Linear->GELU->Linear.
    x = x_ref[...]                                            # (M, D) f32
    h = _layernorm2d(x, g_ref[...], b_ref[...], _LN_EPS)
    h1 = (jnp.dot(h.astype(jnp.bfloat16), w1_ref[...],
                  preferred_element_type=jnp.float32) + b1_ref[...])
    h1 = 0.5 * h1 * (1.0 + jax.lax.erf(h1 * (1.0 / math.sqrt(2.0))))   # f32 GELU
    out = (jnp.dot(h1.astype(jnp.bfloat16), w2_ref[...],
                   preferred_element_type=jnp.float32) + b2_ref[...])
    if add_residual:
        out = out + x
    o_ref[...] = out


def _proj_kernel(x_ref, w_ref, b_ref, o_ref):
    o_ref[...] = (jnp.dot(x_ref[...].astype(jnp.bfloat16), w_ref[...],
                          preferred_element_type=jnp.float32) + b_ref[...])


# ----------------------------- thin wrappers -----------------------------

def attn_sublayer(x, kv, p, *, n_heads, causal, self_attn):
    B, Sq, D = x.shape
    return pl.pallas_call(
        functools.partial(_attn_sublayer_kernel, n_heads=n_heads,
                          causal=causal, self_attn=self_attn),
        in_specs=[_VMEM] * 6,
        out_specs=_VMEM,
        out_shape=jax.ShapeDtypeStruct((B, Sq, D), jnp.float32),
    )(x, kv, p["ln_g"], p["ln_b"], p["wqkv"], p["wo"])


def ff_sublayer(x, p, *, add_residual):
    B, S, D = x.shape
    out = pl.pallas_call(
        functools.partial(_ff_sublayer_kernel, add_residual=add_residual),
        in_specs=[_VMEM] * 7,
        out_specs=_VMEM,
        out_shape=jax.ShapeDtypeStruct((B * S, D), jnp.float32),
    )(x.reshape(B * S, D), p["ln_g"], p["ln_b"],
      p["w1"], p["b1"], p["w2"], p["b2"])
    return out.reshape(B, S, D)


def final_proj(x, w, b):
    B, S, D = x.shape
    V = w.shape[1]
    out = pl.pallas_call(
        _proj_kernel,
        in_specs=[_VMEM] * 3,
        out_specs=_VMEM,
        out_shape=jax.ShapeDtypeStruct((B * S, V), jnp.float32),
    )(x.reshape(B * S, D), w, b)
    return out.reshape(B, S, V)


# ----------------------------- model forward -----------------------------

def transformer_forward(params, src_ids, tgt_ids, *, n_heads, causal_tgt_mask=True):
    # nn.Embedding lookup (gather) + positional-embedding add kept as plain-JAX glue.
    # TODO(synk): PositionalEmbedding body not provided; assuming sinusoidal PE add (dropout=identity).
    src = params["src_emb"][src_ids] + params["src_pe"][None, : src_ids.shape[1], :]
    encoders = []
    for p in params["encoder_layers"]:
        src = attn_sublayer(src, src, p["attn"], n_heads=n_heads,
                            causal=False, self_attn=True)
        src = ff_sublayer(src, p["ff"], add_residual=True)
        encoders.append(src)

    tgt = params["tgt_emb"][tgt_ids] + params["tgt_pe"][None, : tgt_ids.shape[1], :]
    for idx, p in enumerate(params["decoder_layers"]):
        # masked self-attention: causal mask built in-kernel (static branch)
        # TODO(synk): arbitrary runtime mask tensors (e.g. padding masks) would need a
        # mask-streaming kernel variant; the reference driver only uses a causal mask.
        tgt = attn_sublayer(tgt, tgt, p["self_attn"], n_heads=n_heads,
                            causal=causal_tgt_mask, self_attn=True)
        tgt = attn_sublayer(tgt, encoders[idx], p["cross_attn"], n_heads=n_heads,
                            causal=False, self_attn=False)
        # NOTE: matches the reference Decoder exactly -- no residual add after the FF block.
        tgt = ff_sublayer(tgt, p["ff"], add_residual=False)

    return final_proj(tgt, params["proj_w"], params["proj_b"])


# ----------------------------- parameter init -----------------------------

def sinusoidal_pe(seq_len, d_model):
    pos = np.arange(seq_len)[:, None].astype(np.float32)
    div = np.exp(np.arange(0, d_model, 2).astype(np.float32)
                 * (-math.log(10000.0) / d_model))
    pe = np.zeros((seq_len, d_model), dtype=np.float32)
    pe[:, 0::2] = np.sin(pos * div)
    pe[:, 1::2] = np.cos(pos * div)
    return jnp.asarray(pe)


def init_params(key, cfg):
    d, f, H = cfg["d_model"], cfg["d_ff"], cfg["n_heads"]
    dk = d // H
    q_scale = 1.0 / math.sqrt(dk)              # folded into W_q
    xav = math.sqrt(2.0 / (d + d))             # xavier_normal_ std for (d, d) linears
    keys = iter(jax.random.split(key, 512))

    def ln(dim):
        return jnp.ones((1, dim), jnp.float32), jnp.zeros((1, dim), jnp.float32)

    def attn_params():
        wq = jax.random.normal(next(keys), (d, d), jnp.float32) * xav * q_scale
        wk = jax.random.normal(next(keys), (d, d), jnp.float32) * xav
        wv = jax.random.normal(next(keys), (d, d), jnp.float32) * xav
        wo = jax.random.normal(next(keys), (d, d), jnp.float32) * xav
        g, b = ln(d)
        return {"ln_g": g, "ln_b": b,
                "wqkv": jnp.concatenate([wq, wk, wv], axis=1).astype(jnp.bfloat16),
                "wo": wo.astype(jnp.bfloat16)}

    def ff_params():
        g, b = ln(d)
        return {"ln_g": g, "ln_b": b,
                "w1": (jax.random.normal(next(keys), (d, f), jnp.float32) * 0.02).astype(jnp.bfloat16),
                "b1": jnp.zeros((1, f), jnp.float32),
                "w2": (jax.random.normal(next(keys), (f, d), jnp.float32) * 0.02).astype(jnp.bfloat16),
                "b2": jnp.zeros((1, d), jnp.float32)}

    def enc_layer():
        return {"attn": attn_params(), "ff": ff_params()}

    def dec_layer():
        return {"self_attn": attn_params(), "cross_attn": attn_params(), "ff": ff_params()}

    return {
        "src_emb": jax.random.normal(next(keys), (cfg["src_vocab"], d), jnp.float32),
        "tgt_emb": jax.random.normal(next(keys), (cfg["tgt_vocab"], d), jnp.float32),
        "src_pe": sinusoidal_pe(cfg["src_seq"], d),
        "tgt_pe": sinusoidal_pe(cfg["tgt_seq"], d),
        "encoder_layers": [enc_layer() for _ in range(cfg["n_blocks"])],
        "decoder_layers": [dec_layer() for _ in range(cfg["n_blocks"])],
        "proj_w": (jax.random.normal(next(keys), (d, cfg["tgt_vocab"]), jnp.float32) * 0.02
                   ).astype(jnp.bfloat16),
        "proj_b": jnp.zeros((1, cfg["tgt_vocab"]), jnp.float32),
    }


# ----------------------------- main -----------------------------

if __name__ == "__main__":
    cfg = dict(d_model=32, n_heads=4, d_ff=64, src_vocab=50, tgt_vocab=64,
               src_seq=8, tgt_seq=8, n_blocks=2)
    key = jax.random.PRNGKey(0)
    pkey, skey, tkey = jax.random.split(key, 3)
    params = init_params(pkey, cfg)

    B = 2
    src_ids = jax.random.randint(skey, (B, cfg["src_seq"]), 0, cfg["src_vocab"], dtype=jnp.int32)
    tgt_ids = jax.random.randint(tkey, (B, cfg["tgt_seq"]), 0, cfg["tgt_vocab"], dtype=jnp.int32)

    fwd = jax.jit(functools.partial(transformer_forward,
                                    n_heads=cfg["n_heads"], causal_tgt_mask=True))
    out = fwd(params, src_ids, tgt_ids)
    jax.block_until_ready(out)
    assert out.shape == (B, cfg["tgt_seq"], cfg["tgt_vocab"])
    assert jnp.all(jnp.isfinite(out))
    print("KERNEL_OK")
</pallas_src>

<mosaic_0001>
module attributes {stable_mosaic.version = 11 : i64} {
  func.func @_attn_sublayer_kernel(%arg0: memref<2x8x32xf32, #tpu.memory_space<vmem>>, %arg1: memref<2x8x32xf32, #tpu.memory_space<vmem>>, %arg2: memref<1x32xf32, #tpu.memory_space<vmem>>, %arg3: memref<1x32xf32, #tpu.memory_space<vmem>>, %arg4: memref<32x96xbf16, #tpu.memory_space<vmem>>, %arg5: memref<32x32xbf16, #tpu.memory_space<vmem>>, %arg6: memref<2x8x32xf32, #tpu.memory_space<vmem>>) attributes {dimension_semantics = [], scalar_prefetch = 0 : i64, scratch_operands = 0 : i64, tpu.core_type = #tpu.core_type<tc>} {
    %c0 = arith.constant 0 : index
    %c0_0 = arith.constant 0 : index
    %c0_1 = arith.constant 0 : index
    %0 = vector.load %arg0[%c0, %c0_0, %c0_1] : memref<2x8x32xf32, #tpu.memory_space<vmem>>, vector<2x8x32xf32>
    %1 = vector.shape_cast %0 : vector<2x8x32xf32> to vector<16x32xf32>
    %c0_2 = arith.constant 0 : index
    %c0_3 = arith.constant 0 : index
    %2 = vector.load %arg2[%c0_2, %c0_3] : memref<1x32xf32, #tpu.memory_space<vmem>>, vector<1x32xf32>
    %c0_4 = arith.constant 0 : index
    %c0_5 = arith.constant 0 : index
    %3 = vector.load %arg3[%c0_4, %c0_5] : memref<1x32xf32, #tpu.memory_space<vmem>>, vector<1x32xf32>
    %cst = arith.constant dense<0.000000e+00> : vector<16xf32>
    %4 = vector.multi_reduction <add>, %1, %cst [1] : vector<16x32xf32> to vector<16xf32>
    %5 = vector.shape_cast %4 : vector<16xf32> to vector<16x1xf32>
    %cst_6 = arith.constant 3.200000e+01 : f32
    %6 = vector.broadcast %cst_6 : f32 to vector<16x1xf32>
    %7 = arith.divf %5, %6 : vector<16x1xf32>
    %8 = vector.broadcast %7 : vector<16x1xf32> to vector<16x32xf32>
    %9 = arith.subf %1, %8 : vector<16x32xf32>
    %10 = arith.mulf %9, %9 : vector<16x32xf32>
    %cst_7 = arith.constant dense<0.000000e+00> : vector<16xf32>
    %11 = vector.multi_reduction <add>, %10, %cst_7 [1] : vector<16x32xf32> to vector<16xf32>
    %12 = vector.shape_cast %11 : vector<16xf32> to vector<16x1xf32>
    %cst_8 = arith.constant 3.200000e+01 : f32
    %13 = vector.broadcast %cst_8 : f32 to vector<16x1xf32>
    %14 = arith.divf %12, %13 : vector<16x1xf32>
    %cst_9 = arith.constant 9.99999974E-6 : f32
    %15 = vector.broadcast %cst_9 : f32 to vector<16x1xf32>
    %16 = arith.addf %14, %15 : vector<16x1xf32>
    %17 = math.rsqrt %16 : vector<16x1xf32>
    %18 = vector.broadcast %17 : vector<16x1xf32> to vector<16x32xf32>
    %19 = arith.mulf %9, %18 : vector<16x32xf32>
    %20 = vector.broadcast %2 : vector<1x32xf32> to vector<16x32xf32>
    %21 = arith.mulf %19, %20 : vector<16x32xf32>
    %22 = vector.broadcast %3 : vector<1x32xf32> to vector<16x32xf32>
    %23 = arith.addf %21, %22 : vector<16x32xf32>
    %24 = arith.truncf %23 : vector<16x32xf32> to vector<16x32xbf16>
    %c0_10 = arith.constant 0 : index
    %c0_11 = arith.constant 0 : index
    %c0_12 = arith.constant 0 : index
    %25 = vector.load %arg1[%c0_10, %c0_11, %c0_12] : memref<2x8x32xf32, #tpu.memory_space<vmem>>, vector<2x8x32xf32>
    %26 = vector.shape_cast %25 : vector<2x8x32xf32> to vector<16x32xf32>
    %27 = arith.truncf %26 : vector<16x32xf32> to vector<16x32xbf16>
    %c0_13 = arith.constant 0 : index
    %c0_14 = arith.constant 0 : index
    %28 = vector.load %arg4[%c0_13, %c0_14] : memref<32x96xbf16, #tpu.memory_space<vmem>>, vector<32x32xbf16>
    %cst_15 = arith.constant dense<0.000000e+00> : vector<16x32xf32>
    %29 = tpu.matmul %24, %28, %cst_15 {dimension_numbers = #tpu.dot_dimension_numbers<[1], [0], [0], [1], [0, 0, 1, 1], [], []>} : vector<16x32xbf16>, vector<32x32xbf16>, vector<16x32xf32> -> vector<16x32xf32>
    %30 = vector.shape_cast %29 : vector<16x32xf32> to vector<2x8x32xf32>
    %c0_16 = arith.constant 0 : index
    %c32 = arith.constant 32 : index
    %31 = vector.load %arg4[%c0_16, %c32] : memref<32x96xbf16, #tpu.memory_space<vmem>>, vector<32x64xbf16>
    %cst_17 = arith.constant dense<0.000000e+00> : vector<16x64xf32>
    %32 = tpu.matmul %27, %31, %cst_17 {dimension_numbers = #tpu.dot_dimension_numbers<[1], [0], [0], [1], [0, 0, 1, 1], [], []>} : vector<16x32xbf16>, vector<32x64xbf16>, vector<16x64xf32> -> vector<16x64xf32>
    %33 = vector.extract_strided_slice %32 {offsets = [0, 0], sizes = [16, 32], strides = [1, 1]} : vector<16x64xf32> to vector<16x32xf32>
    %34 = vector.shape_cast %33 : vector<16x32xf32> to vector<2x8x32xf32>
    %35 = vector.extract_strided_slice %32 {offsets = [0, 32], sizes = [16, 32], strides = [1, 1]} : vector<16x64xf32> to vector<16x32xf32>
    %36 = vector.shape_cast %35 : vector<16x32xf32> to vector<2x8x32xf32>
    %37 = vector.extract_strided_slice %30 {offsets = [0, 0, 0], sizes = [2, 8, 8], strides = [1, 1, 1]} : vector<2x8x32xf32> to vector<2x8x8xf32>
    %38 = arith.truncf %37 : vector<2x8x8xf32> to vector<2x8x8xbf16>
    %39 = vector.extract_strided_slice %34 {offsets = [0, 0, 0], sizes = [2, 8, 8], strides = [1, 1, 1]} : vector<2x8x32xf32> to vector<2x8x8xf32>
    %40 = arith.truncf %39 : vector<2x8x8xf32> to vector<2x8x8xbf16>
    %41 = vector.extract_strided_slice %36 {offsets = [0, 0, 0], sizes = [2, 8, 8], strides = [1, 1, 1]} : vector<2x8x32xf32> to vector<2x8x8xf32>
    %42 = arith.truncf %41 : vector<2x8x8xf32> to vector<2x8x8xbf16>
    "tpu.trace_start"() <{level = 10 : i32, message = "bqd,bkd->bqk"}> : () -> ()
    %cst_18 = arith.constant dense<0.000000e+00> : vector<2x8x8xf32>
    %43 = tpu.matmul %38, %40, %cst_18 {dimension_numbers = #tpu.dot_dimension_numbers<[2], [2], [1], [1], [0, 0, 0, 1, 1, 1], [0], [0]>} : vector<2x8x8xbf16>, vector<2x8x8xbf16>, vector<2x8x8xf32> -> vector<2x8x8xf32>
    "tpu.trace_stop"() : () -> ()
    %cst_19 = arith.constant dense<0xFF800000> : vector<2x8xf32>
    %44 = vector.multi_reduction <maximumf>, %43, %cst_19 [2] : vector<2x8x8xf32> to vector<2x8xf32>
    %45 = vector.shape_cast %44 : vector<2x8xf32> to vector<2x8x1xf32>
    %46 = vector.broadcast %45 : vector<2x8x1xf32> to vector<2x8x8xf32>
    %47 = arith.subf %43, %46 : vector<2x8x8xf32>
    %48 = math.exp %47 : vector<2x8x8xf32>
    %cst_20 = arith.constant dense<0.000000e+00> : vector<2x8xf32>
    %49 = vector.multi_reduction <add>, %48, %cst_20 [2] : vector<2x8x8xf32> to vector<2x8xf32>
    %50 = vector.shape_cast %49 : vector<2x8xf32> to vector<2x8x1xf32>
    %51 = tpu.reciprocal %50 {approx = true} : vector<2x8x1xf32> -> vector<2x8x1xf32>
    %52 = vector.broadcast %51 : vector<2x8x1xf32> to vector<2x8x8xf32>
    %53 = arith.mulf %48, %52 : vector<2x8x8xf32>
    %54 = arith.truncf %53 : vector<2x8x8xf32> to vector<2x8x8xbf16>
    "tpu.trace_start"() <{level = 10 : i32, message = "bqk,bkd->bqd"}> : () -> ()
    %cst_21 = arith.constant dense<0.000000e+00> : vector<2x8x8xf32>
    %55 = tpu.matmul %54, %42, %cst_21 {dimension_numbers = #tpu.dot_dimension_numbers<[2], [1], [1], [2], [0, 0, 0, 1, 1, 2], [0], [0]>} : vector<2x8x8xbf16>, vector<2x8x8xbf16>, vector<2x8x8xf32> -> vector<2x8x8xf32>
    "tpu.trace_stop"() : () -> ()
    %56 = vector.extract_strided_slice %30 {offsets = [0, 0, 8], sizes = [2, 8, 8], strides = [1, 1, 1]} : vector<2x8x32xf32> to vector<2x8x8xf32>
    %57 = arith.truncf %56 : vector<2x8x8xf32> to vector<2x8x8xbf16>
    %58 = vector.extract_strided_slice %34 {offsets = [0, 0, 8], sizes = [2, 8, 8], strides = [1, 1, 1]} : vector<2x8x32xf32> to vector<2x8x8xf32>
    %59 = arith.truncf %58 : vector<2x8x8xf32> to vector<2x8x8xbf16>
    %60 = vector.extract_strided_slice %36 {offsets = [0, 0, 8], sizes = [2, 8, 8], strides = [1, 1, 1]} : vector<2x8x32xf32> to vector<2x8x8xf32>
    %61 = arith.truncf %60 : vector<2x8x8xf32> to vector<2x8x8xbf16>
    "tpu.trace_start"() <{level = 10 : i32, message = "bqd,bkd->bqk"}> : () -> ()
    %cst_22 = arith.constant dense<0.000000e+00> : vector<2x8x8xf32>
    %62 = tpu.matmul %57, %59, %cst_22 {dimension_numbers = #tpu.dot_dimension_numbers<[2], [2], [1], [1], [0, 0, 0, 1, 1, 1], [0], [0]>} : vector<2x8x8xbf16>, vector<2x8x8xbf16>, vector<2x8x8xf32> -> vector<2x8x8xf32>
    "tpu.trace_stop"() : () -> ()
    %cst_23 = arith.constant dense<0xFF800000> : vector<2x8xf32>
    %63 = vector.multi_reduction <maximumf>, %62, %cst_23 [2] : vector<2x8x8xf32> to vector<2x8xf32>
    %64 = vector.shape_cast %63 : vector<2x8xf32> to vector<2x8x1xf32>
    %65 = vector.broadcast %64 : vector<2x8x1xf32> to vector<2x8x8xf32>
    %66 = arith.subf %62, %65 : vector<2x8x8xf32>
    %67 = math.exp %66 : vector<2x8x8xf32>
    %cst_24 = arith.constant dense<0.000000e+00> : vector<2x8xf32>
    %68 = vector.multi_reduction <add>, %67, %cst_24 [2] : vector<2x8x8xf32> to vector<2x8xf32>
    %69 = vector.shape_cast %68 : vector<2x8xf32> to vector<2x8x1xf32>
    %70 = tpu.reciprocal %69 {approx = true} : vector<2x8x1xf32> -> vector<2x8x1xf32>
    %71 = vector.broadcast %70 : vector<2x8x1xf32> to vector<2x8x8xf32>
    %72 = arith.mulf %67, %71 : vector<2x8x8xf32>
    %73 = arith.truncf %72 : vector<2x8x8xf32> to vector<2x8x8xbf16>
    "tpu.trace_start"() <{level = 10 : i32, message = "bqk,bkd->bqd"}> : () -> ()
    %cst_25 = arith.constant dense<0.000000e+00> : vector<2x8x8xf32>
    %74 = tpu.matmul %73, %61, %cst_25 {dimension_numbers = #tpu.dot_dimension_numbers<[2], [1], [1], [2], [0, 0, 0, 1, 1, 2], [0], [0]>} : vector<2x8x8xbf16>, vector<2x8x8xbf16>, vector<2x8x8xf32> -> vector<2x8x8xf32>
    "tpu.trace_stop"() : () -> ()
    %75 = vector.extract_strided_slice %30 {offsets = [0, 0, 16], sizes = [2, 8, 8], strides = [1, 1, 1]} : vector<2x8x32xf32> to vector<2x8x8xf32>
    %76 = arith.truncf %75 : vector<2x8x8xf32> to vector<2x8x8xbf16>
    %77 = vector.extract_strided_slice %34 {offsets = [0, 0, 16], sizes = [2, 8, 8], strides = [1, 1, 1]} : vector<2x8x32xf32> to vector<2x8x8xf32>
    %78 = arith.truncf %77 : vector<2x8x8xf32> to vector<2x8x8xbf16>
    %79 = vector.extract_strided_slice %36 {offsets = [0, 0, 16], sizes = [2, 8, 8], strides = [1, 1, 1]} : vector<2x8x32xf32> to vector<2x8x8xf32>
    %80 = arith.truncf %79 : vector<2x8x8xf32> to vector<2x8x8xbf16>
    "tpu.trace_start"() <{level = 10 : i32, message = "bqd,bkd->bqk"}> : () -> ()
    %cst_26 = arith.constant dense<0.000000e+00> : vector<2x8x8xf32>
    %81 = tpu.matmul %76, %78, %cst_26 {dimension_numbers = #tpu.dot_dimension_numbers<[2], [2], [1], [1], [0, 0, 0, 1, 1, 1], [0], [0]>} : vector<2x8x8xbf16>, vector<2x8x8xbf16>, vector<2x8x8xf32> -> vector<2x8x8xf32>
    "tpu.trace_stop"() : () -> ()
    %cst_27 = arith.constant dense<0xFF800000> : vector<2x8xf32>
    %82 = vector.multi_reduction <maximumf>, %81, %cst_27 [2] : vector<2x8x8xf32> to vector<2x8xf32>
    %83 = vector.shape_cast %82 : vector<2x8xf32> to vector<2x8x1xf32>
    %84 = vector.broadcast %83 : vector<2x8x1xf32> to vector<2x8x8xf32>
    %85 = arith.subf %81, %84 : vector<2x8x8xf32>
    %86 = math.exp %85 : vector<2x8x8xf32>
    %cst_28 = arith.constant dense<0.000000e+00> : vector<2x8xf32>
    %87 = vector.multi_reduction <add>, %86, %cst_28 [2] : vector<2x8x8xf32> to vector<2x8xf32>
    %88 = vector.shape_cast %87 : vector<2x8xf32> to vector<2x8x1xf32>
    %89 = tpu.reciprocal %88 {approx = true} : vector<2x8x1xf32> -> vector<2x8x1xf32>
    %90 = vector.broadcast %89 : vector<2x8x1xf32> to vector<2x8x8xf32>
    %91 = arith.mulf %86, %90 : vector<2x8x8xf32>
    %92 = arith.truncf %91 : vector<2x8x8xf32> to vector<2x8x8xbf16>
    "tpu.trace_start"() <{level = 10 : i32, message = "bqk,bkd->bqd"}> : () -> ()
    %cst_29 = arith.constant dense<0.000000e+00> : vector<2x8x8xf32>
    %93 = tpu.matmul %92, %80, %cst_29 {dimension_numbers = #tpu.dot_dimension_numbers<[2], [1], [1], [2], [0, 0, 0, 1, 1, 2], [0], [0]>} : vector<2x8x8xbf16>, vector<2x8x8xbf16>, vector<2x8x8xf32> -> vector<2x8x8xf32>
    "tpu.trace_stop"() : () -> ()
    %94 = vector.extract_strided_slice %30 {offsets = [0, 0, 24], sizes = [2, 8, 8], strides = [1, 1, 1]} : vector<2x8x32xf32> to vector<2x8x8xf32>
    %95 = arith.truncf %94 : vector<2x8x8xf32> to vector<2x8x8xbf16>
    %96 = vector.extract_strided_slice %34 {offsets = [0, 0, 24], sizes = [2, 8, 8], strides = [1, 1, 1]} : vector<2x8x32xf32> to vector<2x8x8xf32>
    %97 = arith.truncf %96 : vector<2x8x8xf32> to vector<2x8x8xbf16>
    %98 = vector.extract_strided_slice %36 {offsets = [0, 0, 24], sizes = [2, 8, 8], strides = [1, 1, 1]} : vector<2x8x32xf32> to vector<2x8x8xf32>
    %99 = arith.truncf %98 : vector<2x8x8xf32> to vector<2x8x8xbf16>
    "tpu.trace_start"() <{level = 10 : i32, message = "bqd,bkd->bqk"}> : () -> ()
    %cst_30 = arith.constant dense<0.000000e+00> : vector<2x8x8xf32>
    %100 = tpu.matmul %95, %97, %cst_30 {dimension_numbers = #tpu.dot_dimension_numbers<[2], [2], [1], [1], [0, 0, 0, 1, 1, 1], [0], [0]>} : vector<2x8x8xbf16>, vector<2x8x8xbf16>, vector<2x8x8xf32> -> vector<2x8x8xf32>
    "tpu.trace_stop"() : () -> ()
    %cst_31 = arith.constant dense<0xFF800000> : vector<2x8xf32>
    %101 = vector.multi_reduction <maximumf>, %100, %cst_31 [2] : vector<2x8x8xf32> to vector<2x8xf32>
    %102 = vector.shape_cast %101 : vector<2x8xf32> to vector<2x8x1xf32>
    %103 = vector.broadcast %102 : vector<2x8x1xf32> to vector<2x8x8xf32>
    %104 = arith.subf %100, %103 : vector<2x8x8xf32>
    %105 = math.exp %104 : vector<2x8x8xf32>
    %cst_32 = arith.constant dense<0.000000e+00> : vector<2x8xf32>
    %106 = vector.multi_reduction <add>, %105, %cst_32 [2] : vector<2x8x8xf32> to vector<2x8xf32>
    %107 = vector.shape_cast %106 : vector<2x8xf32> to vector<2x8x1xf32>
    %108 = tpu.reciprocal %107 {approx = true} : vector<2x8x1xf32> -> vector<2x8x1xf32>
    %109 = vector.broadcast %108 : vector<2x8x1xf32> to vector<2x8x8xf32>
    %110 = arith.mulf %105, %109 : vector<2x8x8xf32>
    %111 = arith.truncf %110 : vector<2x8x8xf32> to vector<2x8x8xbf16>
    "tpu.trace_start"() <{level = 10 : i32, message = "bqk,bkd->bqd"}> : () -> ()
    %cst_33 = arith.constant dense<0.000000e+00> : vector<2x8x8xf32>
    %112 = tpu.matmul %111, %99, %cst_33 {dimension_numbers = #tpu.dot_dimension_numbers<[2], [1], [1], [2], [0, 0, 0, 1, 1, 2], [0], [0]>} : vector<2x8x8xbf16>, vector<2x8x8xbf16>, vector<2x8x8xf32> -> vector<2x8x8xf32>
    "tpu.trace_stop"() : () -> ()
    %113 = tpu.concatenate %55, %74, %93, %112 in 2 : vector<2x8x8xf32>, vector<2x8x8xf32>, vector<2x8x8xf32>, vector<2x8x8xf32> -> vector<2x8x32xf32>
    %114 = vector.shape_cast %113 : vector<2x8x32xf32> to vector<16x32xf32>
    %115 = arith.truncf %114 : vector<16x32xf32> to vector<16x32xbf16>
    %c0_34 = arith.constant 0 : index
    %c0_35 = arith.constant 0 : index
    %116 = vector.load %arg5[%c0_34, %c0_35] : memref<32x32xbf16, #tpu.memory_space<vmem>>, vector<32x32xbf16>
    %cst_36 = arith.constant dense<0.000000e+00> : vector<16x32xf32>
    %117 = tpu.matmul %115, %116, %cst_36 {dimension_numbers = #tpu.dot_dimension_numbers<[1], [0], [0], [1], [0, 0, 1, 1], [], []>} : vector<16x32xbf16>, vector<32x32xbf16>, vector<16x32xf32> -> vector<16x32xf32>
    %118 = vector.shape_cast %117 : vector<16x32xf32> to vector<2x8x32xf32>
    %119 = arith.addf %0, %118 : vector<2x8x32xf32>
    %c0_37 = arith.constant 0 : index
    %c0_38 = arith.constant 0 : index
    %c0_39 = arith.constant 0 : index
    %120 = vector.load %arg6[%c0_37, %c0_38, %c0_39] : memref<2x8x32xf32, #tpu.memory_space<vmem>>, vector<2x8x32xf32>
    tpu.vector_store %arg6[%c0_37, %c0_38, %c0_39], %119 {strides = array<i32>} : memref<2x8x32xf32, #tpu.memory_space<vmem>>, vector<2x8x32xf32>,
    return
  }
}

module attributes {stable_mosaic.version = 11 : i64} {
  func.func @_attn_sublayer_kernel(%arg0: memref<2x8x32xf32, #tpu.memory_space<vmem>>, %arg1: memref<2x8x32xf32, #tpu.memory_space<vmem>>, %arg2: memref<1x32xf32, #tpu.memory_space<vmem>>, %arg3: memref<1x32xf32, #tpu.memory_space<vmem>>, %arg4: memref<32x96xbf16, #tpu.memory_space<vmem>>, %arg5: memref<32x32xbf16, #tpu.memory_space<vmem>>, %arg6: memref<2x8x32xf32, #tpu.memory_space<vmem>>) attributes {dimension_semantics = [], scalar_prefetch = 0 : i64, scratch_operands = 0 : i64, tpu.core_type = #tpu.core_type<tc>} {
    %c0 = arith.constant 0 : index
    %c0_0 = arith.constant 0 : index
    %c0_1 = arith.constant 0 : index
    %0 = vector.load %arg0[%c0, %c0_0, %c0_1] : memref<2x8x32xf32, #tpu.memory_space<vmem>>, vector<2x8x32xf32>
    %1 = vector.shape_cast %0 : vector<2x8x32xf32> to vector<16x32xf32>
    %c0_2 = arith.constant 0 : index
    %c0_3 = arith.constant 0 : index
    %2 = vector.load %arg2[%c0_2, %c0_3] : memref<1x32xf32, #tpu.memory_space<vmem>>, vector<1x32xf32>
    %c0_4 = arith.constant 0 : index
    %c0_5 = arith.constant 0 : index
    %3 = vector.load %arg3[%c0_4, %c0_5] : memref<1x32xf32, #tpu.memory_space<vmem>>, vector<1x32xf32>
    %cst = arith.constant dense<0.000000e+00> : vector<16xf32>
    %4 = vector.multi_reduction <add>, %1, %cst [1] : vector<16x32xf32> to vector<16xf32>
    %5 = vector.shape_cast %4 : vector<16xf32> to vector<16x1xf32>
    %cst_6 = arith.constant 3.200000e+01 : f32
    %6 = vector.broadcast %cst_6 : f32 to vector<16x1xf32>
    %7 = arith.divf %5, %6 : vector<16x1xf32>
    %8 = vector.broadcast %7 : vector<16x1xf32> to vector<16x32xf32>
    %9 = arith.subf %1, %8 : vector<16x32xf32>
    %10 = arith.mulf %9, %9 : vector<16x32xf32>
    %cst_7 = arith.constant dense<0.000000e+00> : vector<16xf32>
    %11 = vector.multi_reduction <add>, %10, %cst_7 [1] : vector<16x32xf32> to vector<16xf32>
    %12 = vector.shape_cast %11 : vector<16xf32> to vector<16x1xf32>
    %cst_8 = arith.constant 3.200000e+01 : f32
    %13 = vector.broadcast %cst_8 : f32 to vector<16x1xf32>
    %14 = arith.divf %12, %13 : vector<16x1xf32>
    %cst_9 = arith.constant 9.99999974E-6 : f32
    %15 = vector.broadcast %cst_9 : f32 to vector<16x1xf32>
    %16 = arith.addf %14, %15 : vector<16x1xf32>
    %17 = math.rsqrt %16 : vector<16x1xf32>
    %18 = vector.broadcast %17 : vector<16x1xf32> to vector<16x32xf32>
    %19 = arith.mulf %9, %18 : vector<16x32xf32>
    %20 = vector.broadcast %2 : vector<1x32xf32> to vector<16x32xf32>
    %21 = arith.mulf %19, %20 : vector<16x32xf32>
    %22 = vector.broadcast %3 : vector<1x32xf32> to vector<16x32xf32>
    %23 = arith.addf %21, %22 : vector<16x32xf32>
    %24 = arith.truncf %23 : vector<16x32xf32> to vector<16x32xbf16>
    %c0_10 = arith.constant 0 : index
    %c0_11 = arith.constant 0 : index
    %25 = vector.load %arg4[%c0_10, %c0_11] : memref<32x96xbf16, #tpu.memory_space<vmem>>, vector<32x96xbf16>
    %cst_12 = arith.constant dense<0.000000e+00> : vector<16x96xf32>
    %26 = tpu.matmul %24, %25, %cst_12 {dimension_numbers = #tpu.dot_dimension_numbers<[1], [0], [0], [1], [0, 0, 1, 1], [], []>} : vector<16x32xbf16>, vector<32x96xbf16>, vector<16x96xf32> -> vector<16x96xf32>
    %27 = vector.extract_strided_slice %26 {offsets = [0, 0], sizes = [16, 32], strides = [1, 1]} : vector<16x96xf32> to vector<16x32xf32>
    %28 = vector.shape_cast %27 : vector<16x32xf32> to vector<2x8x32xf32>
    %29 = vector.extract_strided_slice %26 {offsets = [0, 32], sizes = [16, 32], strides = [1, 1]} : vector<16x96xf32> to vector<16x32xf32>
    %30 = vector.shape_cast %29 : vector<16x32xf32> to vector<2x8x32xf32>
    %31 = vector.extract_strided_slice %26 {offsets = [0, 64], sizes = [16, 32], strides = [1, 1]} : vector<16x96xf32> to vector<16x32xf32>
    %32 = vector.shape_cast %31 : vector<16x32xf32> to vector<2x8x32xf32>
    %33 = tpu.iota {dimensions = array<i32: 1>} : vector<2x8x8xi32>
    %34 = tpu.iota {dimensions = array<i32: 2>} : vector<2x8x8xi32>
    %35 = arith.cmpi sle, %34, %33 : vector<2x8x8xi32>
    %36 = vector.extract_strided_slice %28 {offsets = [0, 0, 0], sizes = [2, 8, 8], strides = [1, 1, 1]} : vector<2x8x32xf32> to vector<2x8x8xf32>
    %37 = arith.truncf %36 : vector<2x8x8xf32> to vector<2x8x8xbf16>
    %38 = vector.extract_strided_slice %30 {offsets = [0, 0, 0], sizes = [2, 8, 8], strides = [1, 1, 1]} : vector<2x8x32xf32> to vector<2x8x8xf32>
    %39 = arith.truncf %38 : vector<2x8x8xf32> to vector<2x8x8xbf16>
    %40 = vector.extract_strided_slice %32 {offsets = [0, 0, 0], sizes = [2, 8, 8], strides = [1, 1, 1]} : vector<2x8x32xf32> to vector<2x8x8xf32>
    %41 = arith.truncf %40 : vector<2x8x8xf32> to vector<2x8x8xbf16>
    "tpu.trace_start"() <{level = 10 : i32, message = "bqd,bkd->bqk"}> : () -> ()
    %cst_13 = arith.constant dense<0.000000e+00> : vector<2x8x8xf32>
    %42 = tpu.matmul %37, %39, %cst_13 {dimension_numbers = #tpu.dot_dimension_numbers<[2], [2], [1], [1], [0, 0, 0, 1, 1, 1], [0], [0]>} : vector<2x8x8xbf16>, vector<2x8x8xbf16>, vector<2x8x8xf32> -> vector<2x8x8xf32>
    %cst_14 = arith.constant -1.000000e+30 : f32
    "tpu.trace_stop"() : () -> ()
    %43 = vector.broadcast %cst_14 : f32 to vector<2x8x8xf32>
    %44 = arith.select %35, %42, %43 : vector<2x8x8xi1>, vector<2x8x8xf32>
    %cst_15 = arith.constant dense<0xFF800000> : vector<2x8xf32>
    %45 = vector.multi_reduction <maximumf>, %44, %cst_15 [2] : vector<2x8x8xf32> to vector<2x8xf32>
    %46 = vector.shape_cast %45 : vector<2x8xf32> to vector<2x8x1xf32>
    %47 = vector.broadcast %46 : vector<2x8x1xf32> to vector<2x8x8xf32>
    %48 = arith.subf %44, %47 : vector<2x8x8xf32>
    %49 = math.exp %48 : vector<2x8x8xf32>
    %cst_16 = arith.constant dense<0.000000e+00> : vector<2x8xf32>
    %50 = vector.multi_reduction <add>, %49, %cst_16 [2] : vector<2x8x8xf32> to vector<2x8xf32>
    %51 = vector.shape_cast %50 : vector<2x8xf32> to vector<2x8x1xf32>
    %52 = tpu.reciprocal %51 {approx = true} : vector<2x8x1xf32> -> vector<2x8x1xf32>
    %53 = vector.broadcast %52 : vector<2x8x1xf32> to vector<2x8x8xf32>
    %54 = arith.mulf %49, %53 : vector<2x8x8xf32>
    %55 = arith.truncf %54 : vector<2x8x8xf32> to vector<2x8x8xbf16>
    "tpu.trace_start"() <{level = 10 : i32, message = "bqk,bkd->bqd"}> : () -> ()
    %cst_17 = arith.constant dense<0.000000e+00> : vector<2x8x8xf32>
    %56 = tpu.matmul %55, %41, %cst_17 {dimension_numbers = #tpu.dot_dimension_numbers<[2], [1], [1], [2], [0, 0, 0, 1, 1, 2], [0], [0]>} : vector<2x8x8xbf16>, vector<2x8x8xbf16>, vector<2x8x8xf32> -> vector<2x8x8xf32>
    "tpu.trace_stop"() : () -> ()
    %57 = vector.extract_strided_slice %28 {offsets = [0, 0, 8], sizes = [2, 8, 8], strides = [1, 1, 1]} : vector<2x8x32xf32> to vector<2x8x8xf32>
    %58 = arith.truncf %57 : vector<2x8x8xf32> to vector<2x8x8xbf16>
    %59 = vector.extract_strided_slice %30 {offsets = [0, 0, 8], sizes = [2, 8, 8], strides = [1, 1, 1]} : vector<2x8x32xf32> to vector<2x8x8xf32>
    %60 = arith.truncf %59 : vector<2x8x8xf32> to vector<2x8x8xbf16>
    %61 = vector.extract_strided_slice %32 {offsets = [0, 0, 8], sizes = [2, 8, 8], strides = [1, 1, 1]} : vector<2x8x32xf32> to vector<2x8x8xf32>
    %62 = arith.truncf %61 : vector<2x8x8xf32> to vector<2x8x8xbf16>
    "tpu.trace_start"() <{level = 10 : i32, message = "bqd,bkd->bqk"}> : () -> ()
    %cst_18 = arith.constant dense<0.000000e+00> : vector<2x8x8xf32>
    %63 = tpu.matmul %58, %60, %cst_18 {dimension_numbers = #tpu.dot_dimension_numbers<[2], [2], [1], [1], [0, 0, 0, 1, 1, 1], [0], [0]>} : vector<2x8x8xbf16>, vector<2x8x8xbf16>, vector<2x8x8xf32> -> vector<2x8x8xf32>
    %cst_19 = arith.constant -1.000000e+30 : f32
    "tpu.trace_stop"() : () -> ()
    %64 = vector.broadcast %cst_19 : f32 to vector<2x8x8xf32>
    %65 = arith.select %35, %63, %64 : vector<2x8x8xi1>, vector<2x8x8xf32>
    %cst_20 = arith.constant dense<0xFF800000> : vector<2x8xf32>
    %66 = vector.multi_reduction <maximumf>, %65, %cst_20 [2] : vector<2x8x8xf32> to vector<2x8xf32>
    %67 = vector.shape_cast %66 : vector<2x8xf32> to vector<2x8x1xf32>
    %68 = vector.broadcast %67 : vector<2x8x1xf32> to vector<2x8x8xf32>
    %69 = arith.subf %65, %68 : vector<2x8x8xf32>
    %70 = math.exp %69 : vector<2x8x8xf32>
    %cst_21 = arith.constant dense<0.000000e+00> : vector<2x8xf32>
    %71 = vector.multi_reduction <add>, %70, %cst_21 [2] : vector<2x8x8xf32> to vector<2x8xf32>
    %72 = vector.shape_cast %71 : vector<2x8xf32> to vector<2x8x1xf32>
    %73 = tpu.reciprocal %72 {approx = true} : vector<2x8x1xf32> -> vector<2x8x1xf32>
    %74 = vector.broadcast %73 : vector<2x8x1xf32> to vector<2x8x8xf32>
    %75 = arith.mulf %70, %74 : vector<2x8x8xf32>
    %76 = arith.truncf %75 : vector<2x8x8xf32> to vector<2x8x8xbf16>
    "tpu.trace_start"() <{level = 10 : i32, message = "bqk,bkd->bqd"}> : () -> ()
    %cst_22 = arith.constant dense<0.000000e+00> : vector<2x8x8xf32>
    %77 = tpu.matmul %76, %62, %cst_22 {dimension_numbers = #tpu.dot_dimension_numbers<[2], [1], [1], [2], [0, 0, 0, 1, 1, 2], [0], [0]>} : vector<2x8x8xbf16>, vector<2x8x8xbf16>, vector<2x8x8xf32> -> vector<2x8x8xf32>
    "tpu.trace_stop"() : () -> ()
    %78 = vector.extract_strided_slice %28 {offsets = [0, 0, 16], sizes = [2, 8, 8], strides = [1, 1, 1]} : vector<2x8x32xf32> to vector<2x8x8xf32>
    %79 = arith.truncf %78 : vector<2x8x8xf32> to vector<2x8x8xbf16>
    %80 = vector.extract_strided_slice %30 {offsets = [0, 0, 16], sizes = [2, 8, 8], strides = [1, 1, 1]} : vector<2x8x32xf32> to vector<2x8x8xf32>
    %81 = arith.truncf %80 : vector<2x8x8xf32> to vector<2x8x8xbf16>
    %82 = vector.extract_strided_slice %32 {offsets = [0, 0, 16], sizes = [2, 8, 8], strides = [1, 1, 1]} : vector<2x8x32xf32> to vector<2x8x8xf32>
    %83 = arith.truncf %82 : vector<2x8x8xf32> to vector<2x8x8xbf16>
    "tpu.trace_start"() <{level = 10 : i32, message = "bqd,bkd->bqk"}> : () -> ()
    %cst_23 = arith.constant dense<0.000000e+00> : vector<2x8x8xf32>
    %84 = tpu.matmul %79, %81, %cst_23 {dimension_numbers = #tpu.dot_dimension_numbers<[2], [2], [1], [1], [0, 0, 0, 1, 1, 1], [0], [0]>} : vector<2x8x8xbf16>, vector<2x8x8xbf16>, vector<2x8x8xf32> -> vector<2x8x8xf32>
    %cst_24 = arith.constant -1.000000e+30 : f32
    "tpu.trace_stop"() : () -> ()
    %85 = vector.broadcast %cst_24 : f32 to vector<2x8x8xf32>
    %86 = arith.select %35, %84, %85 : vector<2x8x8xi1>, vector<2x8x8xf32>
    %cst_25 = arith.constant dense<0xFF800000> : vector<2x8xf32>
    %87 = vector.multi_reduction <maximumf>, %86, %cst_25 [2] : vector<2x8x8xf32> to vector<2x8xf32>
    %88 = vector.shape_cast %87 : vector<2x8xf32> to vector<2x8x1xf32>
    %89 = vector.broadcast %88 : vector<2x8x1xf32> to vector<2x8x8xf32>
    %90 = arith.subf %86, %89 : vector<2x8x8xf32>
    %91 = math.exp %90 : vector<2x8x8xf32>
    %cst_26 = arith.constant dense<0.000000e+00> : vector<2x8xf32>
    %92 = vector.multi_reduction <add>, %91, %cst_26 [2] : vector<2x8x8xf32> to vector<2x8xf32>
    %93 = vector.shape_cast %92 : vector<2x8xf32> to vector<2x8x1xf32>
    %94 = tpu.reciprocal %93 {approx = true} : vector<2x8x1xf32> -> vector<2x8x1xf32>
    %95 = vector.broadcast %94 : vector<2x8x1xf32> to vector<2x8x8xf32>
    %96 = arith.mulf %91, %95 : vector<2x8x8xf32>
    %97 = arith.truncf %96 : vector<2x8x8xf32> to vector<2x8x8xbf16>
    "tpu.trace_start"() <{level = 10 : i32, message = "bqk,bkd->bqd"}> : () -> ()
    %cst_27 = arith.constant dense<0.000000e+00> : vector<2x8x8xf32>
    %98 = tpu.matmul %97, %83, %cst_27 {dimension_numbers = #tpu.dot_dimension_numbers<[2], [1], [1], [2], [0, 0, 0, 1, 1, 2], [0], [0]>} : vector<2x8x8xbf16>, vector<2x8x8xbf16>, vector<2x8x8xf32> -> vector<2x8x8xf32>
    "tpu.trace_stop"() : () -> ()
    %99 = vector.extract_strided_slice %28 {offsets = [0, 0, 24], sizes = [2, 8, 8], strides = [1, 1, 1]} : vector<2x8x32xf32> to vector<2x8x8xf32>
    %100 = arith.truncf %99 : vector<2x8x8xf32> to vector<2x8x8xbf16>
    %101 = vector.extract_strided_slice %30 {offsets = [0, 0, 24], sizes = [2, 8, 8], strides = [1, 1, 1]} : vector<2x8x32xf32> to vector<2x8x8xf32>
    %102 = arith.truncf %101 : vector<2x8x8xf32> to vector<2x8x8xbf16>
    %103 = vector.extract_strided_slice %32 {offsets = [0, 0, 24], sizes = [2, 8, 8], strides = [1, 1, 1]} : vector<2x8x32xf32> to vector<2x8x8xf32>
    %104 = arith.truncf %103 : vector<2x8x8xf32> to vector<2x8x8xbf16>
    "tpu.trace_start"() <{level = 10 : i32, message = "bqd,bkd->bqk"}> : () -> ()
    %cst_28 = arith.constant dense<0.000000e+00> : vector<2x8x8xf32>
    %105 = tpu.matmul %100, %102, %cst_28 {dimension_numbers = #tpu.dot_dimension_numbers<[2], [2], [1], [1], [0, 0, 0, 1, 1, 1], [0], [0]>} : vector<2x8x8xbf16>, vector<2x8x8xbf16>, vector<2x8x8xf32> -> vector<2x8x8xf32>
    %cst_29 = arith.constant -1.000000e+30 : f32
    "tpu.trace_stop"() : () -> ()
    %106 = vector.broadcast %cst_29 : f32 to vector<2x8x8xf32>
    %107 = arith.select %35, %105, %106 : vector<2x8x8xi1>, vector<2x8x8xf32>
    %cst_30 = arith.constant dense<0xFF800000> : vector<2x8xf32>
    %108 = vector.multi_reduction <maximumf>, %107, %cst_30 [2] : vector<2x8x8xf32> to vector<2x8xf32>
    %109 = vector.shape_cast %108 : vector<2x8xf32> to vector<2x8x1xf32>
    %110 = vector.broadcast %109 : vector<2x8x1xf32> to vector<2x8x8xf32>
    %111 = arith.subf %107, %110 : vector<2x8x8xf32>
    %112 = math.exp %111 : vector<2x8x8xf32>
    %cst_31 = arith.constant dense<0.000000e+00> : vector<2x8xf32>
    %113 = vector.multi_reduction <add>, %112, %cst_31 [2] : vector<2x8x8xf32> to vector<2x8xf32>
    %114 = vector.shape_cast %113 : vector<2x8xf32> to vector<2x8x1xf32>
    %115 = tpu.reciprocal %114 {approx = true} : vector<2x8x1xf32> -> vector<2x8x1xf32>
    %116 = vector.broadcast %115 : vector<2x8x1xf32> to vector<2x8x8xf32>
    %117 = arith.mulf %112, %116 : vector<2x8x8xf32>
    %118 = arith.truncf %117 : vector<2x8x8xf32> to vector<2x8x8xbf16>
    "tpu.trace_start"() <{level = 10 : i32, message = "bqk,bkd->bqd"}> : () -> ()
    %cst_32 = arith.constant dense<0.000000e+00> : vector<2x8x8xf32>
    %119 = tpu.matmul %118, %104, %cst_32 {dimension_numbers = #tpu.dot_dimension_numbers<[2], [1], [1], [2], [0, 0, 0, 1, 1, 2], [0], [0]>} : vector<2x8x8xbf16>, vector<2x8x8xbf16>, vector<2x8x8xf32> -> vector<2x8x8xf32>
    "tpu.trace_stop"() : () -> ()
    %120 = tpu.concatenate %56, %77, %98, %119 in 2 : vector<2x8x8xf32>, vector<2x8x8xf32>, vector<2x8x8xf32>, vector<2x8x8xf32> -> vector<2x8x32xf32>
    %121 = vector.shape_cast %120 : vector<2x8x32xf32> to vector<16x32xf32>
    %122 = arith.truncf %121 : vector<16x32xf32> to vector<16x32xbf16>
    %c0_33 = arith.constant 0 : index
    %c0_34 = arith.constant 0 : index
    %123 = vector.load %arg5[%c0_33, %c0_34] : memref<32x32xbf16, #tpu.memory_space<vmem>>, vector<32x32xbf16>
    %cst_35 = arith.constant dense<0.000000e+00> : vector<16x32xf32>
    %124 = tpu.matmul %122, %123, %cst_35 {dimension_numbers = #tpu.dot_dimension_numbers<[1], [0], [0], [1], [0, 0, 1, 1], [], []>} : vector<16x32xbf16>, vector<32x32xbf16>, vector<16x32xf32> -> vector<16x32xf32>
    %125 = vector.shape_cast %124 : vector<16x32xf32> to vector<2x8x32xf32>
    %126 = arith.addf %0, %125 : vector<2x8x32xf32>
    %c0_36 = arith.constant 0 : index
    %c0_37 = arith.constant 0 : index
    %c0_38 = arith.constant 0 : index
    %127 = vector.load %arg6[%c0_36, %c0_37, %c0_38] : memref<2x8x32xf32, #tpu.memory_space<vmem>>, vector<2x8x32xf32>
    tpu.vector_store %arg6[%c0_36, %c0_37, %c0_38], %126 {strides = array<i32>} : memref<2x8x32xf32, #tpu.memory_space<vmem>>, vector<2x8x32xf32>,
    return
  }
}

module attributes {stable_mosaic.version = 11 : i64} {
  func.func @_attn_sublayer_kernel(%arg0: memref<2x8x32xf32, #tpu.memory_space<vmem>>, %arg1: memref<2x8x32xf32, #tpu.memory_space<vmem>>, %arg2: memref<1x32xf32, #tpu.memory_space<vmem>>, %arg3: memref<1x32xf32, #tpu.memory_space<vmem>>, %arg4: memref<32x96xbf16, #tpu.memory_space<vmem>>, %arg5: memref<32x32xbf16, #tpu.memory_space<vmem>>, %arg6: memref<2x8x32xf32, #tpu.memory_space<vmem>>) attributes {dimension_semantics = [], scalar_prefetch = 0 : i64, scratch_operands = 0 : i64, tpu.core_type = #tpu.core_type<tc>} {
    %c0 = arith.constant 0 : index
    %c0_0 = arith.constant 0 : index
    %c0_1 = arith.constant 0 : index
    %0 = vector.load %arg0[%c0, %c0_0, %c0_1] : memref<2x8x32xf32, #tpu.memory_space<vmem>>, vector<2x8x32xf32>
    %1 = vector.shape_cast %0 : vector<2x8x32xf32> to vector<16x32xf32>
    %c0_2 = arith.constant 0 : index
    %c0_3 = arith.constant 0 : index
    %2 = vector.load %arg2[%c0_2, %c0_3] : memref<1x32xf32, #tpu.memory_space<vmem>>, vector<1x32xf32>
    %c0_4 = arith.constant 0 : index
    %c0_5 = arith.constant 0 : index
    %3 = vector.load %arg3[%c0_4, %c0_5] : memref<1x32xf32, #tpu.memory_space<vmem>>, vector<1x32xf32>
    %cst = arith.constant dense<0.000000e+00> : vector<16xf32>
    %4 = vector.multi_reduction <add>, %1, %cst [1] : vector<16x32xf32> to vector<16xf32>
    %5 = vector.shape_cast %4 : vector<16xf32> to vector<16x1xf32>
    %cst_6 = arith.constant 3.200000e+01 : f32
    %6 = vector.broadcast %cst_6 : f32 to vector<16x1xf32>
    %7 = arith.divf %5, %6 : vector<16x1xf32>
    %8 = vector.broadcast %7 : vector<16x1xf32> to vector<16x32xf32>
    %9 = arith.subf %1, %8 : vector<16x32xf32>
    %10 = arith.mulf %9, %9 : vector<16x32xf32>
    %cst_7 = arith.constant dense<0.000000e+00> : vector<16xf32>
    %11 = vector.multi_reduction <add>, %10, %cst_7 [1] : vector<16x32xf32> to vector<16xf32>
    %12 = vector.shape_cast %11 : vector<16xf32> to vector<16x1xf32>
    %cst_8 = arith.constant 3.200000e+01 : f32
    %13 = vector.broadcast %cst_8 : f32 to vector<16x1xf32>
    %14 = arith.divf %12, %13 : vector<16x1xf32>
    %cst_9 = arith.constant 9.99999974E-6 : f32
    %15 = vector.broadcast %cst_9 : f32 to vector<16x1xf32>
    %16 = arith.addf %14, %15 : vector<16x1xf32>
    %17 = math.rsqrt %16 : vector<16x1xf32>
    %18 = vector.broadcast %17 : vector<16x1xf32> to vector<16x32xf32>
    %19 = arith.mulf %9, %18 : vector<16x32xf32>
    %20 = vector.broadcast %2 : vector<1x32xf32> to vector<16x32xf32>
    %21 = arith.mulf %19, %20 : vector<16x32xf32>
    %22 = vector.broadcast %3 : vector<1x32xf32> to vector<16x32xf32>
    %23 = arith.addf %21, %22 : vector<16x32xf32>
    %24 = arith.truncf %23 : vector<16x32xf32> to vector<16x32xbf16>
    %c0_10 = arith.constant 0 : index
    %c0_11 = arith.constant 0 : index
    %25 = vector.load %arg4[%c0_10, %c0_11] : memref<32x96xbf16, #tpu.memory_space<vmem>>, vector<32x96xbf16>
    %cst_12 = arith.constant dense<0.000000e+00> : vector<16x96xf32>
    %26 = tpu.matmul %24, %25, %cst_12 {dimension_numbers = #tpu.dot_dimension_numbers<[1], [0], [0], [1], [0, 0, 1, 1], [], []>} : vector<16x32xbf16>, vector<32x96xbf16>, vector<16x96xf32> -> vector<16x96xf32>
    %27 = vector.extract_strided_slice %26 {offsets = [0, 0], sizes = [16, 32], strides = [1, 1]} : vector<16x96xf32> to vector<16x32xf32>
    %28 = vector.shape_cast %27 : vector<16x32xf32> to vector<2x8x32xf32>
    %29 = vector.extract_strided_slice %26 {offsets = [0, 32], sizes = [16, 32], strides = [1, 1]} : vector<16x96xf32> to vector<16x32xf32>
    %30 = vector.shape_cast %29 : vector<16x32xf32> to vector<2x8x32xf32>
    %31 = vector.extract_strided_slice %26 {offsets = [0, 64], sizes = [16, 32], strides = [1, 1]} : vector<16x96xf32> to vector<16x32xf32>
    %32 = vector.shape_cast %31 : vector<16x32xf32> to vector<2x8x32xf32>
    %33 = vector.extract_strided_slice %28 {offsets = [0, 0, 0], sizes = [2, 8, 8], strides = [1, 1, 1]} : vector<2x8x32xf32> to vector<2x8x8xf32>
    %34 = arith.truncf %33 : vector<2x8x8xf32> to vector<2x8x8xbf16>
    %35 = vector.extract_strided_slice %30 {offsets = [0, 0, 0], sizes = [2, 8, 8], strides = [1, 1, 1]} : vector<2x8x32xf32> to vector<2x8x8xf32>
    %36 = arith.truncf %35 : vector<2x8x8xf32> to vector<2x8x8xbf16>
    %37 = vector.extract_strided_slice %32 {offsets = [0, 0, 0], sizes = [2, 8, 8], strides = [1, 1, 1]} : vector<2x8x32xf32> to vector<2x8x8xf32>
    %38 = arith.truncf %37 : vector<2x8x8xf32> to vector<2x8x8xbf16>
    "tpu.trace_start"() <{level = 10 : i32, message = "bqd,bkd->bqk"}> : () -> ()
    %cst_13 = arith.constant dense<0.000000e+00> : vector<2x8x8xf32>
    %39 = tpu.matmul %34, %36, %cst_13 {dimension_numbers = #tpu.dot_dimension_numbers<[2], [2], [1], [1], [0, 0, 0, 1, 1, 1], [0], [0]>} : vector<2x8x8xbf16>, vector<2x8x8xbf16>, vector<2x8x8xf32> -> vector<2x8x8xf32>
    "tpu.trace_stop"() : () -> ()
    %cst_14 = arith.constant dense<0xFF800000> : vector<2x8xf32>
    %40 = vector.multi_reduction <maximumf>, %39, %cst_14 [2] : vector<2x8x8xf32> to vector<2x8xf32>
    %41 = vector.shape_cast %40 : vector<2x8xf32> to vector<2x8x1xf32>
    %42 = vector.broadcast %41 : vector<2x8x1xf32> to vector<2x8x8xf32>
    %43 = arith.subf %39, %42 : vector<2x8x8xf32>
    %44 = math.exp %43 : vector<2x8x8xf32>
    %cst_15 = arith.constant dense<0.000000e+00> : vector<2x8xf32>
    %45 = vector.multi_reduction <add>, %44, %cst_15 [2] : vector<2x8x8xf32> to vector<2x8xf32>
    %46 = vector.shape_cast %45 : vector<2x8xf32> to vector<2x8x1xf32>
    %47 = tpu.reciprocal %46 {approx = true} : vector<2x8x1xf32> -> vector<2x8x1xf32>
    %48 = vector.broadcast %47 : vector<2x8x1xf32> to vector<2x8x8xf32>
    %49 = arith.mulf %44, %48 : vector<2x8x8xf32>
    %50 = arith.truncf %49 : vector<2x8x8xf32> to vector<2x8x8xbf16>
    "tpu.trace_start"() <{level = 10 : i32, message = "bqk,bkd->bqd"}> : () -> ()
    %cst_16 = arith.constant dense<0.000000e+00> : vector<2x8x8xf32>
    %51 = tpu.matmul %50, %38, %cst_16 {dimension_numbers = #tpu.dot_dimension_numbers<[2], [1], [1], [2], [0, 0, 0, 1, 1, 2], [0], [0]>} : vector<2x8x8xbf16>, vector<2x8x8xbf16>, vector<2x8x8xf32> -> vector<2x8x8xf32>
    "tpu.trace_stop"() : () -> ()
    %52 = vector.extract_strided_slice %28 {offsets = [0, 0, 8], sizes = [2, 8, 8], strides = [1, 1, 1]} : vector<2x8x32xf32> to vector<2x8x8xf32>
    %53 = arith.truncf %52 : vector<2x8x8xf32> to vector<2x8x8xbf16>
    %54 = vector.extract_strided_slice %30 {offsets = [0, 0, 8], sizes = [2, 8, 8], strides = [1, 1, 1]} : vector<2x8x32xf32> to vector<2x8x8xf32>
    %55 = arith.truncf %54 : vector<2x8x8xf32> to vector<2x8x8xbf16>
    %56 = vector.extract_strided_slice %32 {offsets = [0, 0, 8], sizes = [2, 8, 8], strides = [1, 1, 1]} : vector<2x8x32xf32> to vector<2x8x8xf32>
    %57 = arith.truncf %56 : vector<2x8x8xf32> to vector<2x8x8xbf16>
    "tpu.trace_start"() <{level = 10 : i32, message = "bqd,bkd->bqk"}> : () -> ()
    %cst_17 = arith.constant dense<0.000000e+00> : vector<2x8x8xf32>
    %58 = tpu.matmul %53, %55, %cst_17 {dimension_numbers = #tpu.dot_dimension_numbers<[2], [2], [1], [1], [0, 0, 0, 1, 1, 1], [0], [0]>} : vector<2x8x8xbf16>, vector<2x8x8xbf16>, vector<2x8x8xf32> -> vector<2x8x8xf32>
    "tpu.trace_stop"() : () -> ()
    %cst_18 = arith.constant dense<0xFF800000> : vector<2x8xf32>
    %59 = vector.multi_reduction <maximumf>, %58, %cst_18 [2] : vector<2x8x8xf32> to vector<2x8xf32>
    %60 = vector.shape_cast %59 : vector<2x8xf32> to vector<2x8x1xf32>
    %61 = vector.broadcast %60 : vector<2x8x1xf32> to vector<2x8x8xf32>
    %62 = arith.subf %58, %61 : vector<2x8x8xf32>
    %63 = math.exp %62 : vector<2x8x8xf32>
    %cst_19 = arith.constant dense<0.000000e+00> : vector<2x8xf32>
    %64 = vector.multi_reduction <add>, %63, %cst_19 [2] : vector<2x8x8xf32> to vector<2x8xf32>
    %65 = vector.shape_cast %64 : vector<2x8xf32> to vector<2x8x1xf32>
    %66 = tpu.reciprocal %65 {approx = true} : vector<2x8x1xf32> -> vector<2x8x1xf32>
    %67 = vector.broadcast %66 : vector<2x8x1xf32> to vector<2x8x8xf32>
    %68 = arith.mulf %63, %67 : vector<2x8x8xf32>
    %69 = arith.truncf %68 : vector<2x8x8xf32> to vector<2x8x8xbf16>
    "tpu.trace_start"() <{level = 10 : i32, message = "bqk,bkd->bqd"}> : () -> ()
    %cst_20 = arith.constant dense<0.000000e+00> : vector<2x8x8xf32>
    %70 = tpu.matmul %69, %57, %cst_20 {dimension_numbers = #tpu.dot_dimension_numbers<[2], [1], [1], [2], [0, 0, 0, 1, 1, 2], [0], [0]>} : vector<2x8x8xbf16>, vector<2x8x8xbf16>, vector<2x8x8xf32> -> vector<2x8x8xf32>
    "tpu.trace_stop"() : () -> ()
    %71 = vector.extract_strided_slice %28 {offsets = [0, 0, 16], sizes = [2, 8, 8], strides = [1, 1, 1]} : vector<2x8x32xf32> to vector<2x8x8xf32>
    %72 = arith.truncf %71 : vector<2x8x8xf32> to vector<2x8x8xbf16>
    %73 = vector.extract_strided_slice %30 {offsets = [0, 0, 16], sizes = [2, 8, 8], strides = [1, 1, 1]} : vector<2x8x32xf32> to vector<2x8x8xf32>
    %74 = arith.truncf %73 : vector<2x8x8xf32> to vector<2x8x8xbf16>
    %75 = vector.extract_strided_slice %32 {offsets = [0, 0, 16], sizes = [2, 8, 8], strides = [1, 1, 1]} : vector<2x8x32xf32> to vector<2x8x8xf32>
    %76 = arith.truncf %75 : vector<2x8x8xf32> to vector<2x8x8xbf16>
    "tpu.trace_start"() <{level = 10 : i32, message = "bqd,bkd->bqk"}> : () -> ()
    %cst_21 = arith.constant dense<0.000000e+00> : vector<2x8x8xf32>
    %77 = tpu.matmul %72, %74, %cst_21 {dimension_numbers = #tpu.dot_dimension_numbers<[2], [2], [1], [1], [0, 0, 0, 1, 1, 1], [0], [0]>} : vector<2x8x8xbf16>, vector<2x8x8xbf16>, vector<2x8x8xf32> -> vector<2x8x8xf32>
    "tpu.trace_stop"() : () -> ()
    %cst_22 = arith.constant dense<0xFF800000> : vector<2x8xf32>
    %78 = vector.multi_reduction <maximumf>, %77, %cst_22 [2] : vector<2x8x8xf32> to vector<2x8xf32>
    %79 = vector.shape_cast %78 : vector<2x8xf32> to vector<2x8x1xf32>
    %80 = vector.broadcast %79 : vector<2x8x1xf32> to vector<2x8x8xf32>
    %81 = arith.subf %77, %80 : vector<2x8x8xf32>
    %82 = math.exp %81 : vector<2x8x8xf32>
    %cst_23 = arith.constant dense<0.000000e+00> : vector<2x8xf32>
    %83 = vector.multi_reduction <add>, %82, %cst_23 [2] : vector<2x8x8xf32> to vector<2x8xf32>
    %84 = vector.shape_cast %83 : vector<2x8xf32> to vector<2x8x1xf32>
    %85 = tpu.reciprocal %84 {approx = true} : vector<2x8x1xf32> -> vector<2x8x1xf32>
    %86 = vector.broadcast %85 : vector<2x8x1xf32> to vector<2x8x8xf32>
    %87 = arith.mulf %82, %86 : vector<2x8x8xf32>
    %88 = arith.truncf %87 : vector<2x8x8xf32> to vector<2x8x8xbf16>
    "tpu.trace_start"() <{level = 10 : i32, message = "bqk,bkd->bqd"}> : () -> ()
    %cst_24 = arith.constant dense<0.000000e+00> : vector<2x8x8xf32>
    %89 = tpu.matmul %88, %76, %cst_24 {dimension_numbers = #tpu.dot_dimension_numbers<[2], [1], [1], [2], [0, 0, 0, 1, 1, 2], [0], [0]>} : vector<2x8x8xbf16>, vector<2x8x8xbf16>, vector<2x8x8xf32> -> vector<2x8x8xf32>
    "tpu.trace_stop"() : () -> ()
    %90 = vector.extract_strided_slice %28 {offsets = [0, 0, 24], sizes = [2, 8, 8], strides = [1, 1, 1]} : vector<2x8x32xf32> to vector<2x8x8xf32>
    %91 = arith.truncf %90 : vector<2x8x8xf32> to vector<2x8x8xbf16>
    %92 = vector.extract_strided_slice %30 {offsets = [0, 0, 24], sizes = [2, 8, 8], strides = [1, 1, 1]} : vector<2x8x32xf32> to vector<2x8x8xf32>
    %93 = arith.truncf %92 : vector<2x8x8xf32> to vector<2x8x8xbf16>
    %94 = vector.extract_strided_slice %32 {offsets = [0, 0, 24], sizes = [2, 8, 8], strides = [1, 1, 1]} : vector<2x8x32xf32> to vector<2x8x8xf32>
    %95 = arith.truncf %94 : vector<2x8x8xf32> to vector<2x8x8xbf16>
    "tpu.trace_start"() <{level = 10 : i32, message = "bqd,bkd->bqk"}> : () -> ()
    %cst_25 = arith.constant dense<0.000000e+00> : vector<2x8x8xf32>
    %96 = tpu.matmul %91, %93, %cst_25 {dimension_numbers = #tpu.dot_dimension_numbers<[2], [2], [1], [1], [0, 0, 0, 1, 1, 1], [0], [0]>} : vector<2x8x8xbf16>, vector<2x8x8xbf16>, vector<2x8x8xf32> -> vector<2x8x8xf32>
    "tpu.trace_stop"() : () -> ()
    %cst_26 = arith.constant dense<0xFF800000> : vector<2x8xf32>
    %97 = vector.multi_reduction <maximumf>, %96, %cst_26 [2] : vector<2x8x8xf32> to vector<2x8xf32>
    %98 = vector.shape_cast %97 : vector<2x8xf32> to vector<2x8x1xf32>
    %99 = vector.broadcast %98 : vector<2x8x1xf32> to vector<2x8x8xf32>
    %100 = arith.subf %96, %99 : vector<2x8x8xf32>
    %101 = math.exp %100 : vector<2x8x8xf32>
    %cst_27 = arith.constant dense<0.000000e+00> : vector<2x8xf32>
    %102 = vector.multi_reduction <add>, %101, %cst_27 [2] : vector<2x8x8xf32> to vector<2x8xf32>
    %103 = vector.shape_cast %102 : vector<2x8xf32> to vector<2x8x1xf32>
    %104 = tpu.reciprocal %103 {approx = true} : vector<2x8x1xf32> -> vector<2x8x1xf32>
    %105 = vector.broadcast %104 : vector<2x8x1xf32> to vector<2x8x8xf32>
    %106 = arith.mulf %101, %105 : vector<2x8x8xf32>
    %107 = arith.truncf %106 : vector<2x8x8xf32> to vector<2x8x8xbf16>
    "tpu.trace_start"() <{level = 10 : i32, message = "bqk,bkd->bqd"}> : () -> ()
    %cst_28 = arith.constant dense<0.000000e+00> : vector<2x8x8xf32>
    %108 = tpu.matmul %107, %95, %cst_28 {dimension_numbers = #tpu.dot_dimension_numbers<[2], [1], [1], [2], [0, 0, 0, 1, 1, 2], [0], [0]>} : vector<2x8x8xbf16>, vector<2x8x8xbf16>, vector<2x8x8xf32> -> vector<2x8x8xf32>
    "tpu.trace_stop"() : () -> ()
    %109 = tpu.concatenate %51, %70, %89, %108 in 2 : vector<2x8x8xf32>, vector<2x8x8xf32>, vector<2x8x8xf32>, vector<2x8x8xf32> -> vector<2x8x32xf32>
    %110 = vector.shape_cast %109 : vector<2x8x32xf32> to vector<16x32xf32>
    %111 = arith.truncf %110 : vector<16x32xf32> to vector<16x32xbf16>
    %c0_29 = arith.constant 0 : index
    %c0_30 = arith.constant 0 : index
    %112 = vector.load %arg5[%c0_29, %c0_30] : memref<32x32xbf16, #tpu.memory_space<vmem>>, vector<32x32xbf16>
    %cst_31 = arith.constant dense<0.000000e+00> : vector<16x32xf32>
    %113 = tpu.matmul %111, %112, %cst_31 {dimension_numbers = #tpu.dot_dimension_numbers<[1], [0], [0], [1], [0, 0, 1, 1], [], []>} : vector<16x32xbf16>, vector<32x32xbf16>, vector<16x32xf32> -> vector<16x32xf32>
    %114 = vector.shape_cast %113 : vector<16x32xf32> to vector<2x8x32xf32>
    %115 = arith.addf %0, %114 : vector<2x8x32xf32>
    %c0_32 = arith.constant 0 : index
    %c0_33 = arith.constant 0 : index
    %c0_34 = arith.constant 0 : index
    %116 = vector.load %arg6[%c0_32, %c0_33, %c0_34] : memref<2x8x32xf32, #tpu.memory_space<vmem>>, vector<2x8x32xf32>
    tpu.vector_store %arg6[%c0_32, %c0_33, %c0_34], %115 {strides = array<i32>} : memref<2x8x32xf32, #tpu.memory_space<vmem>>, vector<2x8x32xf32>,
    return
  }
}

module attributes {stable_mosaic.version = 11 : i64} {
  func.func @_ff_sublayer_kernel(%arg0: memref<16x32xf32, #tpu.memory_space<vmem>>, %arg1: memref<1x32xf32, #tpu.memory_space<vmem>>, %arg2: memref<1x32xf32, #tpu.memory_space<vmem>>, %arg3: memref<32x64xbf16, #tpu.memory_space<vmem>>, %arg4: memref<1x64xf32, #tpu.memory_space<vmem>>, %arg5: memref<64x32xbf16, #tpu.memory_space<vmem>>, %arg6: memref<1x32xf32, #tpu.memory_space<vmem>>, %arg7: memref<16x32xf32, #tpu.memory_space<vmem>>) attributes {dimension_semantics = [], scalar_prefetch = 0 : i64, scratch_operands = 0 : i64, tpu.core_type = #tpu.core_type<tc>} {
    %c0 = arith.constant 0 : index
    %c0_0 = arith.constant 0 : index
    %0 = vector.load %arg0[%c0, %c0_0] : memref<16x32xf32, #tpu.memory_space<vmem>>, vector<16x32xf32>
    %c0_1 = arith.constant 0 : index
    %c0_2 = arith.constant 0 : index
    %1 = vector.load %arg1[%c0_1, %c0_2] : memref<1x32xf32, #tpu.memory_space<vmem>>, vector<1x32xf32>
    %c0_3 = arith.constant 0 : index
    %c0_4 = arith.constant 0 : index
    %2 = vector.load %arg2[%c0_3, %c0_4] : memref<1x32xf32, #tpu.memory_space<vmem>>, vector<1x32xf32>
    %cst = arith.constant dense<0.000000e+00> : vector<16xf32>
    %3 = vector.multi_reduction <add>, %0, %cst [1] : vector<16x32xf32> to vector<16xf32>
    %4 = vector.shape_cast %3 : vector<16xf32> to vector<16x1xf32>
    %cst_5 = arith.constant 3.200000e+01 : f32
    %5 = vector.broadcast %cst_5 : f32 to vector<16x1xf32>
    %6 = arith.divf %4, %5 : vector<16x1xf32>
    %7 = vector.broadcast %6 : vector<16x1xf32> to vector<16x32xf32>
    %8 = arith.subf %0, %7 : vector<16x32xf32>
    %9 = arith.mulf %8, %8 : vector<16x32xf32>
    %cst_6 = arith.constant dense<0.000000e+00> : vector<16xf32>
    %10 = vector.multi_reduction <add>, %9, %cst_6 [1] : vector<16x32xf32> to vector<16xf32>
    %11 = vector.shape_cast %10 : vector<16xf32> to vector<16x1xf32>
    %cst_7 = arith.constant 3.200000e+01 : f32
    %12 = vector.broadcast %cst_7 : f32 to vector<16x1xf32>
    %13 = arith.divf %11, %12 : vector<16x1xf32>
    %cst_8 = arith.constant 9.99999974E-6 : f32
    %14 = vector.broadcast %cst_8 : f32 to vector<16x1xf32>
    %15 = arith.addf %13, %14 : vector<16x1xf32>
    %16 = math.rsqrt %15 : vector<16x1xf32>
    %17 = vector.broadcast %16 : vector<16x1xf32> to vector<16x32xf32>
    %18 = arith.mulf %8, %17 : vector<16x32xf32>
    %19 = vector.broadcast %1 : vector<1x32xf32> to vector<16x32xf32>
    %20 = arith.mulf %18, %19 : vector<16x32xf32>
    %21 = vector.broadcast %2 : vector<1x32xf32> to vector<16x32xf32>
    %22 = arith.addf %20, %21 : vector<16x32xf32>
    %23 = arith.truncf %22 : vector<16x32xf32> to vector<16x32xbf16>
    %c0_9 = arith.constant 0 : index
    %c0_10 = arith.constant 0 : index
    %24 = vector.load %arg3[%c0_9, %c0_10] : memref<32x64xbf16, #tpu.memory_space<vmem>>, vector<32x64xbf16>
    %cst_11 = arith.constant dense<0.000000e+00> : vector<16x64xf32>
    %25 = tpu.matmul %23, %24, %cst_11 {dimension_numbers = #tpu.dot_dimension_numbers<[1], [0], [0], [1], [0, 0, 1, 1], [], []>} : vector<16x32xbf16>, vector<32x64xbf16>, vector<16x64xf32> -> vector<16x64xf32>
    %c0_12 = arith.constant 0 : index
    %c0_13 = arith.constant 0 : index
    %26 = vector.load %arg4[%c0_12, %c0_13] : memref<1x64xf32, #tpu.memory_space<vmem>>, vector<1x64xf32>
    %27 = vector.broadcast %26 : vector<1x64xf32> to vector<16x64xf32>
    %28 = arith.addf %25, %27 : vector<16x64xf32>
    %cst_14 = arith.constant 5.000000e-01 : f32
    %29 = vector.broadcast %cst_14 : f32 to vector<16x64xf32>
    %30 = arith.mulf %29, %28 : vector<16x64xf32>
    %cst_15 = arith.constant 0.707106769 : f32
    %31 = vector.broadcast %cst_15 : f32 to vector<16x64xf32>
    %32 = arith.mulf %28, %31 : vector<16x64xf32>
    %33 = math.erf %32 : vector<16x64xf32>
    %cst_16 = arith.constant 1.000000e+00 : f32
    %34 = vector.broadcast %cst_16 : f32 to vector<16x64xf32>
    %35 = arith.addf %34, %33 : vector<16x64xf32>
    %36 = arith.mulf %30, %35 : vector<16x64xf32>
    %37 = arith.truncf %36 : vector<16x64xf32> to vector<16x64xbf16>
    %c0_17 = arith.constant 0 : index
    %c0_18 = arith.constant 0 : index
    %38 = vector.load %arg5[%c0_17, %c0_18] : memref<64x32xbf16, #tpu.memory_space<vmem>>, vector<64x32xbf16>
    %cst_19 = arith.constant dense<0.000000e+00> : vector<16x32xf32>
    %39 = tpu.matmul %37, %38, %cst_19 {dimension_numbers = #tpu.dot_dimension_numbers<[1], [0], [0], [1], [0, 0, 1, 1], [], []>} : vector<16x64xbf16>, vector<64x32xbf16>, vector<16x32xf32> -> vector<16x32xf32>
    %c0_20 = arith.constant 0 : index
    %c0_21 = arith.constant 0 : index
    %40 = vector.load %arg6[%c0_20, %c0_21] : memref<1x32xf32, #tpu.memory_space<vmem>>, vector<1x32xf32>
    %41 = vector.broadcast %40 : vector<1x32xf32> to vector<16x32xf32>
    %42 = arith.addf %39, %41 : vector<16x32xf32>
    %43 = arith.addf %42, %0 : vector<16x32xf32>
    %c0_22 = arith.constant 0 : index
    %c0_23 = arith.constant 0 : index
    %44 = vector.load %arg7[%c0_22, %c0_23] : memref<16x32xf32, #tpu.memory_space<vmem>>, vector<16x32xf32>
    tpu.vector_store %arg7[%c0_22, %c0_23], %43 {strides = array<i32>} : memref<16x32xf32, #tpu.memory_space<vmem>>, vector<16x32xf32>,
    return
  }
}

module attributes {stable_mosaic.version = 11 : i64} {
  func.func @_ff_sublayer_kernel(%arg0: memref<16x32xf32, #tpu.memory_space<vmem>>, %arg1: memref<1x32xf32, #tpu.memory_space<vmem>>, %arg2: memref<1x32xf32, #tpu.memory_space<vmem>>, %arg3: memref<32x64xbf16, #tpu.memory_space<vmem>>, %arg4: memref<1x64xf32, #tpu.memory_space<vmem>>, %arg5: memref<64x32xbf16, #tpu.memory_space<vmem>>, %arg6: memref<1x32xf32, #tpu.memory_space<vmem>>, %arg7: memref<16x32xf32, #tpu.memory_space<vmem>>) attributes {dimension_semantics = [], scalar_prefetch = 0 : i64, scratch_operands = 0 : i64, tpu.core_type = #tpu.core_type<tc>} {
    %c0 = arith.constant 0 : index
    %c0_0 = arith.constant 0 : index
    %0 = vector.load %arg0[%c0, %c0_0] : memref<16x32xf32, #tpu.memory_space<vmem>>, vector<16x32xf32>
    %c0_1 = arith.constant 0 : index
    %c0_2 = arith.constant 0 : index
    %1 = vector.load %arg1[%c0_1, %c0_2] : memref<1x32xf32, #tpu.memory_space<vmem>>, vector<1x32xf32>
    %c0_3 = arith.constant 0 : index
    %c0_4 = arith.constant 0 : index
    %2 = vector.load %arg2[%c0_3, %c0_4] : memref<1x32xf32, #tpu.memory_space<vmem>>, vector<1x32xf32>
    %cst = arith.constant dense<0.000000e+00> : vector<16xf32>
    %3 = vector.multi_reduction <add>, %0, %cst [1] : vector<16x32xf32> to vector<16xf32>
    %4 = vector.shape_cast %3 : vector<16xf32> to vector<16x1xf32>
    %cst_5 = arith.constant 3.200000e+01 : f32
    %5 = vector.broadcast %cst_5 : f32 to vector<16x1xf32>
    %6 = arith.divf %4, %5 : vector<16x1xf32>
    %7 = vector.broadcast %6 : vector<16x1xf32> to vector<16x32xf32>
    %8 = arith.subf %0, %7 : vector<16x32xf32>
    %9 = arith.mulf %8, %8 : vector<16x32xf32>
    %cst_6 = arith.constant dense<0.000000e+00> : vector<16xf32>
    %10 = vector.multi_reduction <add>, %9, %cst_6 [1] : vector<16x32xf32> to vector<16xf32>
    %11 = vector.shape_cast %10 : vector<16xf32> to vector<16x1xf32>
    %cst_7 = arith.constant 3.200000e+01 : f32
    %12 = vector.broadcast %cst_7 : f32 to vector<16x1xf32>
    %13 = arith.divf %11, %12 : vector<16x1xf32>
    %cst_8 = arith.constant 9.99999974E-6 : f32
    %14 = vector.broadcast %cst_8 : f32 to vector<16x1xf32>
    %15 = arith.addf %13, %14 : vector<16x1xf32>
    %16 = math.rsqrt %15 : vector<16x1xf32>
    %17 = vector.broadcast %16 : vector<16x1xf32> to vector<16x32xf32>
    %18 = arith.mulf %8, %17 : vector<16x32xf32>
    %19 = vector.broadcast %1 : vector<1x32xf32> to vector<16x32xf32>
    %20 = arith.mulf %18, %19 : vector<16x32xf32>
    %21 = vector.broadcast %2 : vector<1x32xf32> to vector<16x32xf32>
    %22 = arith.addf %20, %21 : vector<16x32xf32>
    %23 = arith.truncf %22 : vector<16x32xf32> to vector<16x32xbf16>
    %c0_9 = arith.constant 0 : index
    %c0_10 = arith.constant 0 : index
    %24 = vector.load %arg3[%c0_9, %c0_10] : memref<32x64xbf16, #tpu.memory_space<vmem>>, vector<32x64xbf16>
    %cst_11 = arith.constant dense<0.000000e+00> : vector<16x64xf32>
    %25 = tpu.matmul %23, %24, %cst_11 {dimension_numbers = #tpu.dot_dimension_numbers<[1], [0], [0], [1], [0, 0, 1, 1], [], []>} : vector<16x32xbf16>, vector<32x64xbf16>, vector<16x64xf32> -> vector<16x64xf32>
    %c0_12 = arith.constant 0 : index
    %c0_13 = arith.constant 0 : index
    %26 = vector.load %arg4[%c0_12, %c0_13] : memref<1x64xf32, #tpu.memory_space<vmem>>, vector<1x64xf32>
    %27 = vector.broadcast %26 : vector<1x64xf32> to vector<16x64xf32>
    %28 = arith.addf %25, %27 : vector<16x64xf32>
    %cst_14 = arith.constant 5.000000e-01 : f32
    %29 = vector.broadcast %cst_14 : f32 to vector<16x64xf32>
    %30 = arith.mulf %29, %28 : vector<16x64xf32>
    %cst_15 = arith.constant 0.707106769 : f32
    %31 = vector.broadcast %cst_15 : f32 to vector<16x64xf32>
    %32 = arith.mulf %28, %31 : vector<16x64xf32>
    %33 = math.erf %32 : vector<16x64xf32>
    %cst_16 = arith.constant 1.000000e+00 : f32
    %34 = vector.broadcast %cst_16 : f32 to vector<16x64xf32>
    %35 = arith.addf %34, %33 : vector<16x64xf32>
    %36 = arith.mulf %30, %35 : vector<16x64xf32>
    %37 = arith.truncf %36 : vector<16x64xf32> to vector<16x64xbf16>
    %c0_17 = arith.constant 0 : index
    %c0_18 = arith.constant 0 : index
    %38 = vector.load %arg5[%c0_17, %c0_18] : memref<64x32xbf16, #tpu.memory_space<vmem>>, vector<64x32xbf16>
    %cst_19 = arith.constant dense<0.000000e+00> : vector<16x32xf32>
    %39 = tpu.matmul %37, %38, %cst_19 {dimension_numbers = #tpu.dot_dimension_numbers<[1], [0], [0], [1], [0, 0, 1, 1], [], []>} : vector<16x64xbf16>, vector<64x32xbf16>, vector<16x32xf32> -> vector<16x32xf32>
    %c0_20 = arith.constant 0 : index
    %c0_21 = arith.constant 0 : index
    %40 = vector.load %arg6[%c0_20, %c0_21] : memref<1x32xf32, #tpu.memory_space<vmem>>, vector<1x32xf32>
    %41 = vector.broadcast %40 : vector<1x32xf32> to vector<16x32xf32>
    %42 = arith.addf %39, %41 : vector<16x32xf32>
    %c0_22 = arith.constant 0 : index
    %c0_23 = arith.constant 0 : index
    %43 = vector.load %arg7[%c0_22, %c0_23] : memref<16x32xf32, #tpu.memory_space<vmem>>, vector<16x32xf32>
    tpu.vector_store %arg7[%c0_22, %c0_23], %42 {strides = array<i32>} : memref<16x32xf32, #tpu.memory_space<vmem>>, vector<16x32xf32>,
    return
  }
}

module attributes {stable_mosaic.version = 11 : i64} {
  func.func @_proj_kernel(%arg0: memref<16x32xf32, #tpu.memory_space<vmem>>, %arg1: memref<32x64xbf16, #tpu.memory_space<vmem>>, %arg2: memref<1x64xf32, #tpu.memory_space<vmem>>, %arg3: memref<16x64xf32, #tpu.memory_space<vmem>>) attributes {dimension_semantics = [], scalar_prefetch = 0 : i64, scratch_operands = 0 : i64, tpu.core_type = #tpu.core_type<tc>} {
    %c0 = arith.constant 0 : index
    %c0_0 = arith.constant 0 : index
    %0 = vector.load %arg0[%c0, %c0_0] : memref<16x32xf32, #tpu.memory_space<vmem>>, vector<16x32xf32>
    %1 = arith.truncf %0 : vector<16x32xf32> to vector<16x32xbf16>
    %c0_1 = arith.constant 0 : index
    %c0_2 = arith.constant 0 : index
    %2 = vector.load %arg1[%c0_1, %c0_2] : memref<32x64xbf16, #tpu.memory_space<vmem>>, vector<32x64xbf16>
    %cst = arith.constant dense<0.000000e+00> : vector<16x64xf32>
    %3 = tpu.matmul %1, %2, %cst {dimension_numbers = #tpu.dot_dimension_numbers<[1], [0], [0], [1], [0, 0, 1, 1], [], []>} : vector<16x32xbf16>, vector<32x64xbf16>, vector<16x64xf32> -> vector<16x64xf32>
    %c0_3 = arith.constant 0 : index
    %c0_4 = arith.constant 0 : index
    %4 = vector.load %arg2[%c0_3, %c0_4] : memref<1x64xf32, #tpu.memory_space<vmem>>, vector<1x64xf32>
    %5 = vector.broadcast %4 : vector<1x64xf32> to vector<16x64xf32>
    %6 = arith.addf %3, %5 : vector<16x64xf32>
    %c0_5 = arith.constant 0 : index
    %c0_6 = arith.constant 0 : index
    %7 = vector.load %arg3[%c0_5, %c0_6] : memref<16x64xf32, #tpu.memory_space<vmem>>, vector<16x64xf32>
    tpu.vector_store %arg3[%c0_5, %c0_6], %6 {strides = array<i32>} : memref<16x64xf32, #tpu.memory_space<vmem>>, vector<16x64xf32>,
    return
  }
}

</mosaic_0001>

<llo_original>
// kernel: transformer_forward.12
$region0: #{transformer_forward.12}
  #allocation0 [shape = 'u32[]', space=smem, size = 0x4, offset = 0x4, fixed_abs, tag = 'smem constant byte address 0x4 - core index']
  #allocation1 [shape = 'u32[72,128]{1,0:T(1,128)}', space=vmem, size = 0x9000, scoped, tag = 'internal scratch']
  %s0 = inlined_call_operand.vmem [shape: f32[16,32], index: 0, kind: input, shape index: {}]
  %s1 = inlined_call_operand.vmem [shape: f32[1,32], index: 1, kind: input, shape index: {}]
  %s2 = inlined_call_operand.vmem [shape: f32[1,32], index: 2, kind: input, shape index: {}]
  %s3 = inlined_call_operand.vmem [shape: bf16[32,64], index: 3, kind: input, shape index: {}]
  %s4 = inlined_call_operand.vmem [shape: f32[1,64], index: 4, kind: input, shape index: {}]
  %s5 = inlined_call_operand.vmem [shape: bf16[64,32], index: 5, kind: input, shape index: {}]
  %s6 = inlined_call_operand.vmem [shape: f32[1,32], index: 6, kind: input, shape index: {}]
  %s7 = inlined_call_operand.vmem [shape: f32[16,32], index: 7, kind: output, shape index: {}]
  %s8 = sld [smem:[#allocation0]]
  $region38: #{transformer_forward.12} parent=0
    _
  %s10 = ssub.s32 1, %s8
  %s11 = scalar_select 0, %s10, %s8
  // Predicated region
  $region2: #{transformer_forward.12} parent=0 // pred_check
    _
  $region3: #{transformer_forward.12} parent=0 // pred_check_branch
    %13 = sbr.rel (0) target = $region5
  $region4: #{transformer_forward.12} parent=0 // pred_region
    _
  $region5: #{transformer_forward.12} parent=0 // pred_fallthru
    _
  // Predicated region
  $region6: #{transformer_forward.12} parent=0 // pred_check
    _
  $region7: #{transformer_forward.12} parent=0 // pred_check_branch
    %15 = sbr.rel (0) target = $region9
  $region8: #{transformer_forward.12} parent=0 // pred_region
    _
  $region9: #{transformer_forward.12} parent=0 // pred_fallthru
    _
  // Predicated region
  $region10: #{transformer_forward.12} parent=0 // pred_check
    _
  $region11: #{transformer_forward.12} parent=0 // pred_check_branch
    %17 = sbr.rel (0) target = $region13
  $region12: #{transformer_forward.12} parent=0 // pred_region
    _
  $region13: #{transformer_forward.12} parent=0 // pred_fallthru
    _
  // Predicated region
  $region14: #{transformer_forward.12} parent=0 // pred_check
    _
  $region15: #{transformer_forward.12} parent=0 // pred_check_branch
    %19 = sbr.rel (0) target = $region17
  $region16: #{transformer_forward.12} parent=0 // pred_region
    _
  $region17: #{transformer_forward.12} parent=0 // pred_fallthru
    _
  // Predicated region
  $region18: #{transformer_forward.12} parent=0 // pred_check
    _
  $region19: #{transformer_forward.12} parent=0 // pred_check_branch
    %21 = sbr.rel (0) target = $region21
  $region20: #{transformer_forward.12} parent=0 // pred_region
    _
  $region21: #{transformer_forward.12} parent=0 // pred_fallthru
    _
  // Predicated region
  $region22: #{transformer_forward.12} parent=0 // pred_check
    _
  $region23: #{transformer_forward.12} parent=0 // pred_check_branch
    %23 = sbr.rel (0) target = $region25
  $region24: #{transformer_forward.12} parent=0 // pred_region
    _
  $region25: #{transformer_forward.12} parent=0 // pred_fallthru
    _
  // Predicated region
  $region26: #{transformer_forward.12} parent=0 // pred_check
    _
  $region27: #{transformer_forward.12} parent=0 // pred_check_branch
    %25 = sbr.rel (0) target = $region29
  $region28: #{transformer_forward.12} parent=0 // pred_region
    _
  $region29: #{transformer_forward.12} parent=0 // pred_fallthru
    _
  %v27 = vld [vmem:[%s0] sm:$0xff]
  %v28 = vld [vmem:[%s0 + $0x8] sm:$0xff]
  %v29 = vld [vmem:[%s1] sm:$0x1]
  %v30 = vld [vmem:[%s2] sm:$0x1]
  %vm31 = vcmask 261120
  %v32 = vsel %vm31, %v27, 0.0
  %33 = vadd.xlane.f32.xlu0 %v32
  %v34 = vpop.xlane.xlu0 %33
  %v35 = vsel %vm31, %v28, 0.0
  %36 = vadd.xlane.f32.xlu0 %v35
  %v37 = vpop.xlane.xlu0 %36
  %v38 = vrcp.pop 32.0
  %v39 = vmul.f32 32.0, %v38
  %v40 = vsub.f32 1.0, %v39
  %v41 = vmul.f32 %v38, %v40
  %v42 = vadd.f32 %v38, %v41
  %vm43 = vweird.f32 %v38
  %v44 = vsel %vm43, %v38, %v42
  %v45 = vmul.f32 %v34, %v44
  %v46 = vmul.f32 %v37, %v44
  %v47 = vsub.f32 %v27, %v45
  %v48 = vsub.f32 %v28, %v46
  %v49 = vmul.f32 %v47, %v47
  %v50 = vmul.f32 %v48, %v48
  %v51 = vsel %vm31, %v49, 0.0
  %52 = vadd.xlane.f32.xlu0 %v51
  %v53 = vpop.xlane.xlu0 %52
  %v54 = vsel %vm31, %v50, 0.0
  %55 = vadd.xlane.f32.xlu0 %v54
  %v56 = vpop.xlane.xlu0 %55
  %v57 = vmul.f32 %v53, %v44
  %v58 = vmul.f32 %v56, %v44
  %v59 = vadd.f32 %v57, 1e-05
  %v60 = vadd.f32 %v58, 1e-05
  %v61 = vrsqrt.pop %v59
  %v62 = vmul.f32 %v61, %v59
  %v63 = vmul.f32 %v62, %v61
  %v64 = vmul.f32 0.5, %v63
  %v65 = vsub.f32 1.5, %v64
  %v66 = vmul.f32 %v61, %v65
  %vm67 = vweird.f32 %v59
  %vm68 = vweird.f32 %v61
  %vm69 = vmor %vm67, %vm68
  %v70 = vsel %vm69, %v61, %v66
  %v71 = vrsqrt.pop %v60
  %v72 = vmul.f32 %v71, %v60
  %v73 = vmul.f32 %v72, %v71
  %v74 = vmul.f32 0.5, %v73
  %v75 = vsub.f32 1.5, %v74
  %v76 = vmul.f32 %v71, %v75
  %vm77 = vweird.f32 %v60
  %vm78 = vweird.f32 %v71
  %vm79 = vmor %vm77, %vm78
  %v80 = vsel %vm79, %v71, %v76
  %v81 = vmul.f32 %v47, %v70
  %v82 = vmul.f32 %v48, %v80
  %v84 = vperm.slane %v29, 0
  %v86 = vmul.f32 %v81, %v84
  %v87 = vmul.f32 %v82, %v84
  %v89 = vperm.slane %v30, 0
  %v91 = vadd.f32 %v86, %v89
  %v92 = vadd.f32 %v87, %v89
  %v93 = vpack.c.bf16 %v92, %v91
  %v94 = vld [vmem:[%s3] sm:$0xf]
  %v95 = vld [vmem:[%s3 + $0x4] sm:$0xf]
  %v96 = vld [vmem:[%s3 + $0x8] sm:$0xf]
  %v97 = vld [vmem:[%s3 + $0xc] sm:$0xf]
  %v98 = vld [vmem:[%s4] sm:$0x1]
  %v100 = vperm.slane %v98, 0
  %v106 = vunpack.c.l.b16 %v94
  %v107 = vunpack.c.l.b16 %v95
  %v108 = vunpack.c.l.b16 %v96
  %v109 = vunpack.c.l.b16 %v97
  %v110 = vpack.c.b16 %v107, %v106
  %v111 = vpack.c.b16 %v109, %v108
  %v115 = vsel %vm31, %v93, 0
  %117 = vmatpush.bf16.msra.mxu0 0
  %118 = vmatpush.bf16.msra.mxu0 0
  %119 = vmatpush.bf16.msra.mxu0 0
  %120 = vmatpush.bf16.msra.mxu0 0
  %121 = vmatpush.bf16.msra.mxu0 0
  %122 = vmatpush.bf16.msra.mxu0 0
  %123 = vmatpush.bf16.msra.mxu0 %v111
  %124 = vmatpush.bf16.msra.mxu0 %v110
  %125 = vmatmul.bf16.gmra.mxu0 %v115
  %v126 = vpop.f32.mrf.mxu0
  %v127 = vadd.f32 %v100, %v126
  %v128 = vpop.f32.mrf.mxu0
  %v129 = vadd.f32 %v100, %v128
  %130 = vdwg.mxu0
  %v131 = vmul.f32 %v127, 0.5
  %v132 = vmul.f32 %v129, 0.5
  %v133 = vmul.f32 %v127, 0.70710677
  %v134 = vmul.f32 %v129, 0.70710677
  %v135 = vmul.f32 %v133, %v133
  %v136 = vmin.f32 16.0, %v135
  %v137 = vmul.f32 %v136, 2.1237322e-06
  %v138 = vadd.f32 %v137, 0.00028619796
  %v139 = vmul.f32 %v136, %v138
  %v140 = vadd.f32 %v139, 0.0036580483
  %v141 = vmul.f32 %v136, %v140
  %v142 = vadd.f32 %v141, 0.05243302
  %v143 = vmul.f32 %v136, %v142
  %v144 = vadd.f32 %v143, 0.18741608
  %v145 = vmul.f32 %v136, %v144
  %v146 = vadd.f32 %v145, 1.1283791
  %v147 = vmul.f32 %v133, %v146
  %v148 = vmul.f32 %v136, 3.8918573e-05
  %v149 = vadd.f32 %v148, 0.001143296
  %v150 = vmul.f32 %v136, %v149
  %v151 = vadd.f32 %v150, 0.014752088
  %v152 = vmul.f32 %v136, %v151
  %v153 = vadd.f32 %v152, 0.112945676
  %v154 = vmul.f32 %v136, %v153
  %v155 = vadd.f32 %v154, 0.4994258
  %v156 = vmul.f32 %v136, %v155
  %v157 = vadd.f32 %v156, 1.0
  %v158 = vrcp.pop %v157
  %v159 = vmul.f32 %v157, %v158
  %v160 = vsub.f32 1.0, %v159
  %v161 = vmul.f32 %v158, %v160
  %v162 = vadd.f32 %v158, %v161
  %vm163 = vweird.f32 %v157
  %vm164 = vweird.f32 %v158
  %vm165 = vmor %vm163, %vm164
  %v166 = vsel %vm165, %v158, %v162
  %v167 = vand.u32 2147483647, %v157
  %vm168 = vcmp.eq.f32.partialorder %v167, 8.507059e+37
  %v169 = vand.u32 %v157, 2147483648
  %v170 = vor.u32 1.1754944e-38, %v169
  %v171 = vsel %vm168, %v170, %v166
  %v172 = vmul.f32 %v147, %v171
  %v173 = vmin.f32 %v172, 1.0
  %v174 = vmax.f32 %v173, -1.0
  %v175 = vmul.f32 %v134, %v134
  %v176 = vmin.f32 16.0, %v175
  %v177 = vmul.f32 %v176, 2.1237322e-06
  %v178 = vadd.f32 %v177, 0.00028619796
  %v179 = vmul.f32 %v176, %v178
  %v180 = vadd.f32 %v179, 0.0036580483
  %v181 = vmul.f32 %v176, %v180
  %v182 = vadd.f32 %v181, 0.05243302
  %v183 = vmul.f32 %v176, %v182
  %v184 = vadd.f32 %v183, 0.18741608
  %v185 = vmul.f32 %v176, %v184
  %v186 = vadd.f32 %v185, 1.1283791
  %v187 = vmul.f32 %v134, %v186
  %v188 = vmul.f32 %v176, 3.8918573e-05
  %v189 = vadd.f32 %v188, 0.001143296
  %v190 = vmul.f32 %v176, %v189
  %v191 = vadd.f32 %v190, 0.014752088
  %v192 = vmul.f32 %v176, %v191
  %v193 = vadd.f32 %v192, 0.112945676
  %v194 = vmul.f32 %v176, %v193
  %v195 = vadd.f32 %v194, 0.4994258
  %v196 = vmul.f32 %v176, %v195
  %v197 = vadd.f32 %v196, 1.0
  %v198 = vrcp.pop %v197
  %v199 = vmul.f32 %v197, %v198
  %v200 = vsub.f32 1.0, %v199
  %v201 = vmul.f32 %v198, %v200
  %v202 = vadd.f32 %v198, %v201
  %vm203 = vweird.f32 %v197
  %vm204 = vweird.f32 %v198
  %vm205 = vmor %vm203, %vm204
  %v206 = vsel %vm205, %v198, %v202
  %v207 = vand.u32 2147483647, %v197
  %vm208 = vcmp.eq.f32.partialorder %v207, 8.507059e+37
  %v209 = vand.u32 %v197, 2147483648
  %v210 = vor.u32 1.1754944e-38, %v209
  %v211 = vsel %vm208, %v210, %v206
  %v212 = vmul.f32 %v187, %v211
  %v213 = vmin.f32 %v212, 1.0
  %v214 = vmax.f32 %v213, -1.0
  %v215 = vadd.f32 %v174, 1.0
  %v216 = vadd.f32 %v214, 1.0
  %v217 = vmul.f32 %v131, %v215
  %v218 = vmul.f32 %v132, %v216
  %v219 = vpack.c.bf16 %v218, %v217
  %v220 = vld [vmem:[%s5] sm:$0xf]
  %v221 = vld [vmem:[%s5 + $0x4] sm:$0xf]
  %v222 = vld [vmem:[%s5 + $0x8] sm:$0xf]
  %v223 = vld [vmem:[%s5 + $0xc] sm:$0xf]
  %v224 = vld [vmem:[%s5 + $0x10] sm:$0xf]
  %v225 = vld [vmem:[%s5 + $0x14] sm:$0xf]
  %v226 = vld [vmem:[%s5 + $0x18] sm:$0xf]
  %v227 = vld [vmem:[%s5 + $0x1c] sm:$0xf]
  %v228 = vld [vmem:[%s6] sm:$0x1]
  %v230 = vperm.slane %v228, 0
  %v240 = vunpack.c.l.b16 %v220
  %v241 = vunpack.c.l.b16 %v221
  %v242 = vunpack.c.l.b16 %v222
  %v243 = vunpack.c.l.b16 %v223
  %v244 = vunpack.c.l.b16 %v224
  %v245 = vunpack.c.l.b16 %v225
  %v246 = vunpack.c.l.b16 %v226
  %v247 = vunpack.c.l.b16 %v227
  %v248 = vpack.c.b16 %v241, %v240
  %v249 = vpack.c.b16 %v243, %v242
  %v250 = vpack.c.b16 %v245, %v244
  %v251 = vpack.c.b16 %v247, %v246
  %vm256 = vcmask 523264
  %v258 = vsel %vm256, %v219, 0
  %260 = vmatpush.bf16.msra.mxu0 0
  %261 = vmatpush.bf16.msra.mxu0 0
  %262 = vmatpush.bf16.msra.mxu0 0
  %263 = vmatpush.bf16.msra.mxu0 0
  %264 = vmatpush.bf16.msra.mxu0 %v251
  %265 = vmatpush.bf16.msra.mxu0 %v250
  %266 = vmatpush.bf16.msra.mxu0 %v249
  %267 = vmatpush.bf16.msra.mxu0 %v248
  %268 = vmatmul.bf16.gmra.mxu0 %v258
  %v269 = vpop.f32.mrf.mxu0
  %v270 = vadd.f32 %v230, %v269
  %v271 = vpop.f32.mrf.mxu0
  %v272 = vadd.f32 %v230, %v271
  %273 = vdwg.mxu0
  %v274 = vadd.f32 %v270, %v27
  %v275 = vadd.f32 %v272, %v28
  %276 = vst.msk [vmem:[%s7] sm:$0xff] %vm31, %v274
  %277 = vst.msk [vmem:[%s7 + $0x8] sm:$0xff] %vm31, %v275
  // Predicated region
  $region30: #{transformer_forward.12} parent=0 // pred_check
    _
  $region31: #{transformer_forward.12} parent=0 // pred_check_branch
    %279 = sbr.rel (0) target = $region33
  $region32: #{transformer_forward.12} parent=0 // pred_region
    _
  $region33: #{transformer_forward.12} parent=0 // pred_fallthru
    _
  // Predicated region
  $region34: #{transformer_forward.12} parent=0 // pred_check
    _
  $region35: #{transformer_forward.12} parent=0 // pred_check_branch
    %281 = sbr.rel (0) target = $region37
  $region36: #{transformer_forward.12} parent=0 // pred_region
    _
  $region37: #{transformer_forward.12} parent=0 // pred_fallthru
    _

// kernel: transformer_forward.16
$region0: #{transformer_forward.16}
  #allocation0 [shape = 'u32[]', space=smem, size = 0x4, offset = 0x4, fixed_abs, tag = 'smem constant byte address 0x4 - core index']
  #allocation1 [shape = 'u32[72,128]{1,0:T(1,128)}', space=vmem, size = 0x9000, scoped, tag = 'internal scratch']
  %s0 = inlined_call_operand.vmem [shape: f32[2,8,32], index: 0, kind: input, shape index: {}]
  %s1 = inlined_call_operand.vmem [shape: f32[2,8,32], index: 1, kind: input, shape index: {}]
  %s2 = inlined_call_operand.vmem [shape: f32[1,32], index: 2, kind: input, shape index: {}]
  %s3 = inlined_call_operand.vmem [shape: f32[1,32], index: 3, kind: input, shape index: {}]
  %s4 = inlined_call_operand.vmem [shape: bf16[32,96], index: 4, kind: input, shape index: {}]
  %s5 = inlined_call_operand.vmem [shape: bf16[32,32], index: 5, kind: input, shape index: {}]
  %s6 = inlined_call_operand.vmem [shape: f32[2,8,32], index: 6, kind: output, shape index: {}]
  %s7 = sld [smem:[#allocation0]]
  $region34: #{transformer_forward.16} parent=0
    _
  %s9 = ssub.s32 1, %s7
  %s10 = scalar_select 0, %s9, %s7
  // Predicated region
  $region2: #{transformer_forward.16} parent=0 // pred_check
    _
  $region3: #{transformer_forward.16} parent=0 // pred_check_branch
    %12 = sbr.rel (0) target = $region5
  $region4: #{transformer_forward.16} parent=0 // pred_region
    _
  $region5: #{transformer_forward.16} parent=0 // pred_fallthru
    _
  // Predicated region
  $region6: #{transformer_forward.16} parent=0 // pred_check
    _
  $region7: #{transformer_forward.16} parent=0 // pred_check_branch
    %14 = sbr.rel (0) target = $region9
  $region8: #{transformer_forward.16} parent=0 // pred_region
    _
  $region9: #{transformer_forward.16} parent=0 // pred_fallthru
    _
  // Predicated region
  $region10: #{transformer_forward.16} parent=0 // pred_check
    _
  $region11: #{transformer_forward.16} parent=0 // pred_check_branch
    %16 = sbr.rel (0) target = $region13
  $region12: #{transformer_forward.16} parent=0 // pred_region
    _
  $region13: #{transformer_forward.16} parent=0 // pred_fallthru
    _
  // Predicated region
  $region14: #{transformer_forward.16} parent=0 // pred_check
    _
  $region15: #{transformer_forward.16} parent=0 // pred_check_branch
    %18 = sbr.rel (0) target = $region17
  $region16: #{transformer_forward.16} parent=0 // pred_region
    _
  $region17: #{transformer_forward.16} parent=0 // pred_fallthru
    _
  // Predicated region
  $region18: #{transformer_forward.16} parent=0 // pred_check
    _
  $region19: #{transformer_forward.16} parent=0 // pred_check_branch
    %20 = sbr.rel (0) target = $region21
  $region20: #{transformer_forward.16} parent=0 // pred_region
    _
  $region21: #{transformer_forward.16} parent=0 // pred_fallthru
    _
  // Predicated region
  $region22: #{transformer_forward.16} parent=0 // pred_check
    _
  $region23: #{transformer_forward.16} parent=0 // pred_check_branch
    %22 = sbr.rel (0) target = $region25
  $region24: #{transformer_forward.16} parent=0 // pred_region
    _
  $region25: #{transformer_forward.16} parent=0 // pred_fallthru
    _
  %v24 = vld [vmem:[%s0] sm:$0xff]
  %v25 = vld [vmem:[%s0 + $0x8] sm:$0xff]
  %v26 = vld [vmem:[%s2] sm:$0x1]
  %v27 = vld [vmem:[%s3] sm:$0x1]
  %vm28 = vcmask 261120
  %v29 = vsel %vm28, %v24, 0.0
  %30 = vadd.xlane.f32.xlu0 %v29
  %v31 = vpop.xlane.xlu0 %30
  %v32 = vsel %vm28, %v25, 0.0
  %33 = vadd.xlane.f32.xlu0 %v32
  %v34 = vpop.xlane.xlu0 %33
  %v35 = vrcp.pop 32.0
  %v36 = vmul.f32 32.0, %v35
  %v37 = vsub.f32 1.0, %v36
  %v38 = vmul.f32 %v35, %v37
  %v39 = vadd.f32 %v35, %v38
  %vm40 = vweird.f32 %v35
  %v41 = vsel %vm40, %v35, %v39
  %v42 = vmul.f32 %v31, %v41
  %v43 = vmul.f32 %v34, %v41
  %v44 = vsub.f32 %v24, %v42
  %v45 = vsub.f32 %v25, %v43
  %v46 = vmul.f32 %v44, %v44
  %v47 = vmul.f32 %v45, %v45
  %v48 = vsel %vm28, %v46, 0.0
  %49 = vadd.xlane.f32.xlu0 %v48
  %v50 = vpop.xlane.xlu0 %49
  %v51 = vsel %vm28, %v47, 0.0
  %52 = vadd.xlane.f32.xlu0 %v51
  %v53 = vpop.xlane.xlu0 %52
  %v54 = vmul.f32 %v50, %v41
  %v55 = vmul.f32 %v53, %v41
  %v56 = vadd.f32 %v54, 1e-05
  %v57 = vadd.f32 %v55, 1e-05
  %v58 = vrsqrt.pop %v56
  %v59 = vmul.f32 %v58, %v56
  %v60 = vmul.f32 %v59, %v58
  %v61 = vmul.f32 0.5, %v60
  %v62 = vsub.f32 1.5, %v61
  %v63 = vmul.f32 %v58, %v62
  %vm64 = vweird.f32 %v56
  %vm65 = vweird.f32 %v58
  %vm66 = vmor %vm64, %vm65
  %v67 = vsel %vm66, %v58, %v63
  %v68 = vrsqrt.pop %v57
  %v69 = vmul.f32 %v68, %v57
  %v70 = vmul.f32 %v69, %v68
  %v71 = vmul.f32 0.5, %v70
  %v72 = vsub.f32 1.5, %v71
  %v73 = vmul.f32 %v68, %v72
  %vm74 = vweird.f32 %v57
  %vm75 = vweird.f32 %v68
  %vm76 = vmor %vm74, %vm75
  %v77 = vsel %vm76, %v68, %v73
  %v78 = vmul.f32 %v44, %v67
  %v79 = vmul.f32 %v45, %v77
  %v81 = vperm.slane %v26, 0
  %v83 = vmul.f32 %v78, %v81
  %v84 = vmul.f32 %v79, %v81
  %v86 = vperm.slane %v27, 0
  %v88 = vadd.f32 %v83, %v86
  %v89 = vadd.f32 %v84, %v86
  %v90 = vpack.c.bf16 %v89, %v88
  %v91 = vld [vmem:[%s1] sm:$0xff]
  %v92 = vld [vmem:[%s1 + $0x8] sm:$0xff]
  %v93 = vpack.c.bf16 %v92, %v91
  %v94 = vld [vmem:[%s4] sm:$0xf]
  %v95 = vld [vmem:[%s4 + $0x4] sm:$0xf]
  %v96 = vld [vmem:[%s4 + $0x8] sm:$0xf]
  %v97 = vld [vmem:[%s4 + $0xc] sm:$0xf]
  %v102 = vunpack.c.l.b16 %v94
  %v103 = vunpack.c.l.b16 %v95
  %v104 = vunpack.c.l.b16 %v96
  %v105 = vunpack.c.l.b16 %v97
  %v106 = vpack.c.b16 %v103, %v102
  %v107 = vpack.c.b16 %v105, %v104
  %v111 = vsel %vm28, %v90, 0
  %113 = vmatpush.bf16.msra.mxu0 0
  %114 = vmatpush.bf16.msra.mxu0 0
  %115 = vmatpush.bf16.msra.mxu0 0
  %116 = vmatpush.bf16.msra.mxu0 0
  %117 = vmatpush.bf16.msra.mxu0 0
  %118 = vmatpush.bf16.msra.mxu0 0
  %119 = vmatpush.bf16.msra.mxu0 %v107
  %120 = vmatpush.bf16.msra.mxu0 %v106
  %121 = vmatmul.bf16.gmra.mxu0 %v111
  %v122 = vpop.f32.mrf.mxu0
  %v123 = vadd.f32 0.0, %v122
  %v124 = vpop.f32.mrf.mxu0
  %v125 = vadd.f32 0.0, %v124
  %126 = vdwg.mxu0
  %127 = vrot.lane.b32.xlu0 %v106, 96
  %v128 = vpop.permute.xlu0 %127
  %129 = vrot.lane.b32.xlu0 %v107, 96
  %v130 = vpop.permute.xlu0 %129
  %v134 = vsel %vm28, %v93, 0
  %136 = vmatpush.bf16.msra.mxu0 0
  %137 = vmatpush.bf16.msra.mxu0 0
  %138 = vmatpush.bf16.msra.mxu0 0
  %139 = vmatpush.bf16.msra.mxu0 0
  %140 = vmatpush.bf16.msra.mxu0 0
  %141 = vmatpush.bf16.msra.mxu0 0
  %142 = vmatpush.bf16.msra.mxu0 %v130
  %143 = vmatpush.bf16.msra.mxu0 %v128
  %144 = vmatmul.bf16.gmra.mxu0 %v134
  %v145 = vpop.f32.mrf.mxu0
  %v146 = vadd.f32 0.0, %v145
  %v147 = vpop.f32.mrf.mxu0
  %v148 = vadd.f32 0.0, %v147
  %149 = vdwg.mxu0
  %v150 = vpack.c.bf16 %v123, %v123
  %v151 = vpack.c.bf16 %v125, %v125
  %v152 = vpack.c.bf16 %v146, %v146
  %v153 = vpack.c.bf16 %v148, %v148
  %vm154 = vcmask 64512
  %v156 = vsel %vm154, %v150, 0
  %v159 = vsel %vm154, %v152, 0
  %161 = vmatpush.bf16.xpose.msra.mxu0 0
  %162 = vmatpush.bf16.xpose.msra.mxu0 0
  %163 = vmatpush.bf16.xpose.msra.mxu0 0
  %164 = vmatpush.bf16.xpose.msra.mxu0 0
  %165 = vmatpush.bf16.xpose.msra.mxu0 0
  %166 = vmatpush.bf16.xpose.msra.mxu0 0
  %167 = vmatpush.bf16.xpose.msra.mxu0 0
  %168 = vmatpush.bf16.xpose.msra.mxu0 %v159
  %169 = vmatmul.bf16.gmra.mxu0 %v156
  %v170 = vpop.f32.mrf.mxu0
  %v171 = vadd.f32 0.0, %v170
  %v172 = vpop.f32.mrf.mxu0
  %173 = vdwg.mxu0
  %v175 = vsel %vm154, %v151, 0
  %v178 = vsel %vm154, %v153, 0
  %180 = vmatpush.bf16.xpose.msra.mxu0 0
  %181 = vmatpush.bf16.xpose.msra.mxu0 0
  %182 = vmatpush.bf16.xpose.msra.mxu0 0
  %183 = vmatpush.bf16.xpose.msra.mxu0 0
  %184 = vmatpush.bf16.xpose.msra.mxu0 0
  %185 = vmatpush.bf16.xpose.msra.mxu0 0
  %186 = vmatpush.bf16.xpose.msra.mxu0 0
  %187 = vmatpush.bf16.xpose.msra.mxu0 %v178
  %188 = vmatmul.bf16.gmra.mxu0 %v175
  %v189 = vpop.f32.mrf.mxu0
  %v190 = vadd.f32 0.0, %v189
  %v191 = vpop.f32.mrf.mxu0
  %192 = vdwg.mxu0
  %v193 = vsel %vm154, %v171, -inf
  %194 = vmax.xlane.f32.xlu0 %v193
  %v195 = vpop.xlane.xlu0 %194
  %v196 = vsel %vm154, %v190, -inf
  %197 = vmax.xlane.f32.xlu0 %v196
  %v198 = vpop.xlane.xlu0 %197
  %v199 = vsub.f32 %v171, %v195
  %v200 = vsub.f32 %v190, %v198
  %v201 = vmul.f32 %v199, 1.442695
  %v202 = vpow.pop %v201
  %v203 = vmul.f32 %v200, 1.442695
  %v204 = vpow.pop %v203
  %v205 = vsel %vm154, %v202, 0.0
  %206 = vadd.xlane.f32.xlu0 %v205
  %v207 = vpop.xlane.xlu0 %206
  %v208 = vsel %vm154, %v204, 0.0
  %209 = vadd.xlane.f32.xlu0 %v208
  %v210 = vpop.xlane.xlu0 %209
  %v211 = vrcp.pop %v207
  %v212 = vrcp.pop %v210
  %v213 = vmul.f32 %v202, %v211
  %v214 = vmul.f32 %v204, %v212
  %v215 = vpack.c.bf16 %v213, %v213
  %v216 = vpack.c.bf16 %v214, %v214
  %v218 = vunpack.c.l.b16 %v152
  %v219 = vpack.c.b16 %v218, %v218
  %220 = vrot.lane.b32.xlu0 %v219, 96
  %v221 = vpop.permute.xlu0 %220
  %v223 = vsel %vm154, %v215, 0
  %vm225 = vcmask 1043456
  %v227 = vsel %vm225, %v221, 0
  %229 = vmatpush.bf16.msra.mxu0 0
  %230 = vmatpush.bf16.msra.mxu0 0
  %231 = vmatpush.bf16.msra.mxu0 0
  %232 = vmatpush.bf16.msra.mxu0 0
  %233 = vmatpush.bf16.msra.mxu0 0
  %234 = vmatpush.bf16.msra.mxu0 0
  %235 = vmatpush.bf16.msra.mxu0 0
  %236 = vmatpush.bf16.msra.mxu0 %v227
  %237 = vmatmul.bf16.gmra.mxu0 %v223
  %v238 = vpop.f32.mrf.mxu0
  %v239 = vadd.f32 0.0, %v238
  %v240 = vpop.f32.mrf.mxu0
  %241 = vdwg.mxu0
  %v243 = vunpack.c.l.b16 %v153
  %v244 = vpack.c.b16 %v243, %v243
  %245 = vrot.lane.b32.xlu0 %v244, 96
  %v246 = vpop.permute.xlu0 %245
  %v248 = vsel %vm154, %v216, 0
  %v251 = vsel %vm225, %v246, 0
  %253 = vmatpush.bf16.msra.mxu0 0
  %254 = vmatpush.bf16.msra.mxu0 0
  %255 = vmatpush.bf16.msra.mxu0 0
  %256 = vmatpush.bf16.msra.mxu0 0
  %257 = vmatpush.bf16.msra.mxu0 0
  %258 = vmatpush.bf16.msra.mxu0 0
  %259 = vmatpush.bf16.msra.mxu0 0
  %260 = vmatpush.bf16.msra.mxu0 %v251
  %261 = vmatmul.bf16.gmra.mxu0 %v248
  %v262 = vpop.f32.mrf.mxu0
  %v263 = vadd.f32 0.0, %v262
  %v264 = vpop.f32.mrf.mxu0
  %265 = vdwg.mxu0
  %v267 = vunpack.c.l.b16 %v150
  %v268 = vpack.c.b16 %v267, %v267
  %269 = vrot.lane.b32.xlu0 %v268, 120
  %v270 = vpop.permute.xlu0 %269
  %271 = vrot.lane.b32.xlu0 %v219, 120
  %v272 = vpop.permute.xlu0 %271
  %v274 = vsel %vm154, %v270, 0
  %v277 = vsel %vm154, %v272, 0
  %279 = vmatpush.bf16.xpose.msra.mxu0 0
  %280 = vmatpush.bf16.xpose.msra.mxu0 0
  %281 = vmatpush.bf16.xpose.msra.mxu0 0
  %282 = vmatpush.bf16.xpose.msra.mxu0 0
  %283 = vmatpush.bf16.xpose.msra.mxu0 0
  %284 = vmatpush.bf16.xpose.msra.mxu0 0
  %285 = vmatpush.bf16.xpose.msra.mxu0 0
  %286 = vmatpush.bf16.xpose.msra.mxu0 %v277
  %287 = vmatmul.bf16.gmra.mxu0 %v274
  %v288 = vpop.f32.mrf.mxu0
  %v289 = vadd.f32 0.0, %v288
  %v290 = vpop.f32.mrf.mxu0
  %291 = vdwg.mxu0
  %v293 = vunpack.c.l.b16 %v151
  %v294 = vpack.c.b16 %v293, %v293
  %295 = vrot.lane.b32.xlu0 %v294, 120
  %v296 = vpop.permute.xlu0 %295
  %297 = vrot.lane.b32.xlu0 %v244, 120
  %v298 = vpop.permute.xlu0 %297
  %v300 = vsel %vm154, %v296, 0
  %v303 = vsel %vm154, %v298, 0
  %305 = vmatpush.bf16.xpose.msra.mxu0 0
  %306 = vmatpush.bf16.xpose.msra.mxu0 0
  %307 = vmatpush.bf16.xpose.msra.mxu0 0
  %308 = vmatpush.bf16.xpose.msra.mxu0 0
  %309 = vmatpush.bf16.xpose.msra.mxu0 0
  %310 = vmatpush.bf16.xpose.msra.mxu0 0
  %311 = vmatpush.bf16.xpose.msra.mxu0 0
  %312 = vmatpush.bf16.xpose.msra.mxu0 %v303
  %313 = vmatmul.bf16.gmra.mxu0 %v300
  %v314 = vpop.f32.mrf.mxu0
  %v315 = vadd.f32 0.0, %v314
  %v316 = vpop.f32.mrf.mxu0
  %317 = vdwg.mxu0
  %v318 = vsel %vm154, %v289, -inf
  %319 = vmax.xlane.f32.xlu0 %v318
  %v320 = vpop.xlane.xlu0 %319
  %v321 = vsel %vm154, %v315, -inf
  %322 = vmax.xlane.f32.xlu0 %v321
  %v323 = vpop.xlane.xlu0 %322
  %v324 = vsub.f32 %v289, %v320
  %v325 = vsub.f32 %v315, %v323
  %v326 = vmul.f32 %v324, 1.442695
  %v327 = vpow.pop %v326
  %v328 = vmul.f32 %v325, 1.442695
  %v329 = vpow.pop %v328
  %v330 = vsel %vm154, %v327, 0.0
  %331 = vadd.xlane.f32.xlu0 %v330
  %v332 = vpop.xlane.xlu0 %331
  %v333 = vsel %vm154, %v329, 0.0
  %334 = vadd.xlane.f32.xlu0 %v333
  %v335 = vpop.xlane.xlu0 %334
  %v336 = vrcp.pop %v332
  %v337 = vrcp.pop %v335
  %v338 = vmul.f32 %v327, %v336
  %v339 = vmul.f32 %v329, %v337
  %v340 = vpack.c.bf16 %v338, %v338
  %v341 = vpack.c.bf16 %v339, %v339
  %342 = vrot.lane.b32.xlu0 %v219, 88
  %v343 = vpop.permute.xlu0 %342
  %v345 = vsel %vm154, %v340, 0
  %v348 = vsel %vm225, %v343, 0
  %350 = vmatpush.bf16.msra.mxu0 0
  %351 = vmatpush.bf16.msra.mxu0 0
  %352 = vmatpush.bf16.msra.mxu0 0
  %353 = vmatpush.bf16.msra.mxu0 0
  %354 = vmatpush.bf16.msra.mxu0 0
  %355 = vmatpush.bf16.msra.mxu0 0
  %356 = vmatpush.bf16.msra.mxu0 0
  %357 = vmatpush.bf16.msra.mxu0 %v348
  %358 = vmatmul.bf16.gmra.mxu0 %v345
  %v359 = vpop.f32.mrf.mxu0
  %v360 = vadd.f32 0.0, %v359
  %v361 = vpop.f32.mrf.mxu0
  %362 = vdwg.mxu0
  %363 = vrot.lane.b32.xlu0 %v244, 88
  %v364 = vpop.permute.xlu0 %363
  %v366 = vsel %vm154, %v341, 0
  %v369 = vsel %vm225, %v364, 0
  %371 = vmatpush.bf16.msra.mxu0 0
  %372 = vmatpush.bf16.msra.mxu0 0
  %373 = vmatpush.bf16.msra.mxu0 0
  %374 = vmatpush.bf16.msra.mxu0 0
  %375 = vmatpush.bf16.msra.mxu0 0
  %376 = vmatpush.bf16.msra.mxu0 0
  %377 = vmatpush.bf16.msra.mxu0 0
  %378 = vmatpush.bf16.msra.mxu0 %v369
  %379 = vmatmul.bf16.gmra.mxu0 %v366
  %v380 = vpop.f32.mrf.mxu0
  %v381 = vadd.f32 0.0, %v380
  %v382 = vpop.f32.mrf.mxu0
  %383 = vdwg.mxu0
  %384 = vrot.lane.b32.xlu0 %v268, 112
  %v385 = vpop.permute.xlu0 %384
  %386 = vrot.lane.b32.xlu0 %v219, 112
  %v387 = vpop.permute.xlu0 %386
  %v389 = vsel %vm154, %v385, 0
  %v392 = vsel %vm154, %v387, 0
  %394 = vmatpush.bf16.xpose.msra.mxu0 0
  %395 = vmatpush.bf16.xpose.msra.mxu0 0
  %396 = vmatpush.bf16.xpose.msra.mxu0 0
  %397 = vmatpush.bf16.xpose.msra.mxu0 0
  %398 = vmatpush.bf16.xpose.msra.mxu0 0
  %399 = vmatpush.bf16.xpose.msra.mxu0 0
  %400 = vmatpush.bf16.xpose.msra.mxu0 0
  %401 = vmatpush.bf16.xpose.msra.mxu0 %v392
  %402 = vmatmul.bf16.gmra.mxu0 %v389
  %v403 = vpop.f32.mrf.mxu0
  %v404 = vadd.f32 0.0, %v403
  %v405 = vpop.f32.mrf.mxu0
  %406 = vdwg.mxu0
  %407 = vrot.lane.b32.xlu0 %v294, 112
  %v408 = vpop.permute.xlu0 %407
  %409 = vrot.lane.b32.xlu0 %v244, 112
  %v410 = vpop.permute.xlu0 %409
  %v412 = vsel %vm154, %v408, 0
  %v415 = vsel %vm154, %v410, 0
  %417 = vmatpush.bf16.xpose.msra.mxu0 0
  %418 = vmatpush.bf16.xpose.msra.mxu0 0
  %419 = vmatpush.bf16.xpose.msra.mxu0 0
  %420 = vmatpush.bf16.xpose.msra.mxu0 0
  %421 = vmatpush.bf16.xpose.msra.mxu0 0
  %422 = vmatpush.bf16.xpose.msra.mxu0 0
  %423 = vmatpush.bf16.xpose.msra.mxu0 0
  %424 = vmatpush.bf16.xpose.msra.mxu0 %v415
  %425 = vmatmul.bf16.gmra.mxu0 %v412
  %v426 = vpop.f32.mrf.mxu0
  %v427 = vadd.f32 0.0, %v426
  %v428 = vpop.f32.mrf.mxu0
  %429 = vdwg.mxu0
  %v430 = vsel %vm154, %v404, -inf
  %431 = vmax.xlane.f32.xlu0 %v430
  %v432 = vpop.xlane.xlu0 %431
  %v433 = vsel %vm154, %v427, -inf
  %434 = vmax.xlane.f32.xlu0 %v433
  %v435 = vpop.xlane.xlu0 %434
  %v436 = vsub.f32 %v404, %v432
  %v437 = vsub.f32 %v427, %v435
  %v438 = vmul.f32 %v436, 1.442695
  %v439 = vpow.pop %v438
  %v440 = vmul.f32 %v437, 1.442695
  %v441 = vpow.pop %v440
  %v442 = vsel %vm154, %v439, 0.0
  %443 = vadd.xlane.f32.xlu0 %v442
  %v444 = vpop.xlane.xlu0 %443
  %v445 = vsel %vm154, %v441, 0.0
  %446 = vadd.xlane.f32.xlu0 %v445
  %v447 = vpop.xlane.xlu0 %446
  %v448 = vrcp.pop %v444
  %v449 = vrcp.pop %v447
  %v450 = vmul.f32 %v439, %v448
  %v451 = vmul.f32 %v441, %v449
  %v452 = vpack.c.bf16 %v450, %v450
  %v453 = vpack.c.bf16 %v451, %v451
  %454 = vrot.lane.b32.xlu0 %v219, 80
  %v455 = vpop.permute.xlu0 %454
  %v457 = vsel %vm154, %v452, 0
  %v460 = vsel %vm225, %v455, 0
  %462 = vmatpush.bf16.msra.mxu0 0
  %463 = vmatpush.bf16.msra.mxu0 0
  %464 = vmatpush.bf16.msra.mxu0 0
  %465 = vmatpush.bf16.msra.mxu0 0
  %466 = vmatpush.bf16.msra.mxu0 0
  %467 = vmatpush.bf16.msra.mxu0 0
  %468 = vmatpush.bf16.msra.mxu0 0
  %469 = vmatpush.bf16.msra.mxu0 %v460
  %470 = vmatmul.bf16.gmra.mxu0 %v457
  %v471 = vpop.f32.mrf.mxu0
  %v472 = vadd.f32 0.0, %v471
  %v473 = vpop.f32.mrf.mxu0
  %474 = vdwg.mxu0
  %475 = vrot.lane.b32.xlu0 %v244, 80
  %v476 = vpop.permute.xlu0 %475
  %v478 = vsel %vm154, %v453, 0
  %v481 = vsel %vm225, %v476, 0
  %483 = vmatpush.bf16.msra.mxu0 0
  %484 = vmatpush.bf16.msra.mxu0 0
  %485 = vmatpush.bf16.msra.mxu0 0
  %486 = vmatpush.bf16.msra.mxu0 0
  %487 = vmatpush.bf16.msra.mxu0 0
  %488 = vmatpush.bf16.msra.mxu0 0
  %489 = vmatpush.bf16.msra.mxu0 0
  %490 = vmatpush.bf16.msra.mxu0 %v481
  %491 = vmatmul.bf16.gmra.mxu0 %v478
  %v492 = vpop.f32.mrf.mxu0
  %v493 = vadd.f32 0.0, %v492
  %v494 = vpop.f32.mrf.mxu0
  %495 = vdwg.mxu0
  %496 = vrot.lane.b32.xlu0 %v268, 104
  %v497 = vpop.permute.xlu0 %496
  %498 = vrot.lane.b32.xlu0 %v219, 104
  %v499 = vpop.permute.xlu0 %498
  %v501 = vsel %vm154, %v497, 0
  %v504 = vsel %vm154, %v499, 0
  %506 = vmatpush.bf16.xpose.msra.mxu0 0
  %507 = vmatpush.bf16.xpose.msra.mxu0 0
  %508 = vmatpush.bf16.xpose.msra.mxu0 0
  %509 = vmatpush.bf16.xpose.msra.mxu0 0
  %510 = vmatpush.bf16.xpose.msra.mxu0 0
  %511 = vmatpush.bf16.xpose.msra.mxu0 0
  %512 = vmatpush.bf16.xpose.msra.mxu0 0
  %513 = vmatpush.bf16.xpose.msra.mxu0 %v504
  %514 = vmatmul.bf16.gmra.mxu0 %v501
  %v515 = vpop.f32.mrf.mxu0
  %v516 = vadd.f32 0.0, %v515
  %v517 = vpop.f32.mrf.mxu0
  %518 = vdwg.mxu0
  %519 = vrot.lane.b32.xlu0 %v294, 104
  %v520 = vpop.permute.xlu0 %519
  %521 = vrot.lane.b32.xlu0 %v244, 104
  %v522 = vpop.permute.xlu0 %521
  %v524 = vsel %vm154, %v520, 0
  %v527 = vsel %vm154, %v522, 0
  %529 = vmatpush.bf16.xpose.msra.mxu0 0
  %530 = vmatpush.bf16.xpose.msra.mxu0 0
  %531 = vmatpush.bf16.xpose.msra.mxu0 0
  %532 = vmatpush.bf16.xpose.msra.mxu0 0
  %533 = vmatpush.bf16.xpose.msra.mxu0 0
  %534 = vmatpush.bf16.xpose.msra.mxu0 0
  %535 = vmatpush.bf16.xpose.msra.mxu0 0
  %536 = vmatpush.bf16.xpose.msra.mxu0 %v527
  %537 = vmatmul.bf16.gmra.mxu0 %v524
  %v538 = vpop.f32.mrf.mxu0
  %v539 = vadd.f32 0.0, %v538
  %v540 = vpop.f32.mrf.mxu0
  %541 = vdwg.mxu0
  %v542 = vsel %vm154, %v516, -inf
  %543 = vmax.xlane.f32.xlu0 %v542
  %v544 = vpop.xlane.xlu0 %543
  %v545 = vsel %vm154, %v539, -inf
  %546 = vmax.xlane.f32.xlu0 %v545
  %v547 = vpop.xlane.xlu0 %546
  %v548 = vsub.f32 %v516, %v544
  %v549 = vsub.f32 %v539, %v547
  %v550 = vmul.f32 %v548, 1.442695
  %v551 = vpow.pop %v550
  %v552 = vmul.f32 %v549, 1.442695
  %v553 = vpow.pop %v552
  %v554 = vsel %vm154, %v551, 0.0
  %555 = vadd.xlane.f32.xlu0 %v554
  %v556 = vpop.xlane.xlu0 %555
  %v557 = vsel %vm154, %v553, 0.0
  %558 = vadd.xlane.f32.xlu0 %v557
  %v559 = vpop.xlane.xlu0 %558
  %v560 = vrcp.pop %v556
  %v561 = vrcp.pop %v559
  %v562 = vmul.f32 %v551, %v560
  %v563 = vmul.f32 %v553, %v561
  %v564 = vpack.c.bf16 %v562, %v562
  %v565 = vpack.c.bf16 %v563, %v563
  %566 = vrot.lane.b32.xlu0 %v219, 72
  %v567 = vpop.permute.xlu0 %566
  %v569 = vsel %vm154, %v564, 0
  %v572 = vsel %vm225, %v567, 0
  %574 = vmatpush.bf16.msra.mxu0 0
  %575 = vmatpush.bf16.msra.mxu0 0
  %576 = vmatpush.bf16.msra.mxu0 0
  %577 = vmatpush.bf16.msra.mxu0 0
  %578 = vmatpush.bf16.msra.mxu0 0
  %579 = vmatpush.bf16.msra.mxu0 0
  %580 = vmatpush.bf16.msra.mxu0 0
  %581 = vmatpush.bf16.msra.mxu0 %v572
  %582 = vmatmul.bf16.gmra.mxu0 %v569
  %v583 = vpop.f32.mrf.mxu0
  %v584 = vadd.f32 0.0, %v583
  %v585 = vpop.f32.mrf.mxu0
  %586 = vdwg.mxu0
  %587 = vrot.lane.b32.xlu0 %v244, 72
  %v588 = vpop.permute.xlu0 %587
  %v590 = vsel %vm154, %v565, 0
  %v593 = vsel %vm225, %v588, 0
  %595 = vmatpush.bf16.msra.mxu0 0
  %596 = vmatpush.bf16.msra.mxu0 0
  %597 = vmatpush.bf16.msra.mxu0 0
  %598 = vmatpush.bf16.msra.mxu0 0
  %599 = vmatpush.bf16.msra.mxu0 0
  %600 = vmatpush.bf16.msra.mxu0 0
  %601 = vmatpush.bf16.msra.mxu0 0
  %602 = vmatpush.bf16.msra.mxu0 %v593
  %603 = vmatmul.bf16.gmra.mxu0 %v590
  %v604 = vpop.f32.mrf.mxu0
  %v605 = vadd.f32 0.0, %v604
  %v606 = vpop.f32.mrf.mxu0
  %607 = vdwg.mxu0
  %610 = vrot.lane.b32.xlu0 %v360, 8
  %v611 = vpop.permute.xlu0 %610
  %612 = vrot.lane.b32.xlu0 %v381, 8
  %v613 = vpop.permute.xlu0 %612
  %618 = vrot.lane.b32.xlu0 %v472, 16
  %v619 = vpop.permute.xlu0 %618
  %620 = vrot.lane.b32.xlu0 %v493, 16
  %v621 = vpop.permute.xlu0 %620
  %626 = vrot.lane.b32.xlu0 %v584, 24
  %v627 = vpop.permute.xlu0 %626
  %628 = vrot.lane.b32.xlu0 %v605, 24
  %v629 = vpop.permute.xlu0 %628
  %v632 = vsel %vm154, %v239, %v611
  %v633 = vsel %vm154, %v263, %v613
  %vm634 = vcmask 130048
  %v635 = vsel %vm634, %v632, %v619
  %v636 = vsel %vm634, %v633, %v621
  %vm637 = vcmask 195584
  %v638 = vsel %vm637, %v635, %v627
  %v639 = vsel %vm637, %v636, %v629
  %v640 = vpack.c.bf16 %v639, %v638
  %v641 = vld [vmem:[%s5] sm:$0xf]
  %v642 = vld [vmem:[%s5 + $0x4] sm:$0xf]
  %v643 = vld [vmem:[%s5 + $0x8] sm:$0xf]
  %v644 = vld [vmem:[%s5 + $0xc] sm:$0xf]
  %v649 = vunpack.c.l.b16 %v641
  %v650 = vunpack.c.l.b16 %v642
  %v651 = vunpack.c.l.b16 %v643
  %v652 = vunpack.c.l.b16 %v644
  %v653 = vpack.c.b16 %v650, %v649
  %v654 = vpack.c.b16 %v652, %v651
  %v658 = vsel %vm28, %v640, 0
  %660 = vmatpush.bf16.msra.mxu0 0
  %661 = vmatpush.bf16.msra.mxu0 0
  %662 = vmatpush.bf16.msra.mxu0 0
  %663 = vmatpush.bf16.msra.mxu0 0
  %664 = vmatpush.bf16.msra.mxu0 0
  %665 = vmatpush.bf16.msra.mxu0 0
  %666 = vmatpush.bf16.msra.mxu0 %v654
  %667 = vmatpush.bf16.msra.mxu0 %v653
  %668 = vmatmul.bf16.gmra.mxu0 %v658
  %v669 = vpop.f32.mrf.mxu0
  %v670 = vadd.f32 0.0, %v669
  %v671 = vpop.f32.mrf.mxu0
  %v672 = vadd.f32 0.0, %v671
  %673 = vdwg.mxu0
  %v674 = vadd.f32 %v24, %v670
  %v675 = vadd.f32 %v25, %v672
  %676 = vst.msk [vmem:[%s6] sm:$0xff] %vm28, %v674
  %677 = vst.msk [vmem:[%s6 + $0x8] sm:$0xff] %vm28, %v675
  // Predicated region
  $region26: #{transformer_forward.16} parent=0 // pred_check
    _
  $region27: #{transformer_forward.16} parent=0 // pred_check_branch
    %679 = sbr.rel (0) target = $region29
  $region28: #{transformer_forward.16} parent=0 // pred_region
    _
  $region29: #{transformer_forward.16} parent=0 // pred_fallthru
    _
  // Predicated region
  $region30: #{transformer_forward.16} parent=0 // pred_check
    _
  $region31: #{transformer_forward.16} parent=0 // pred_check_branch
    %681 = sbr.rel (0) target = $region33
  $region32: #{transformer_forward.16} parent=0 // pred_region
    _
  $region33: #{transformer_forward.16} parent=0 // pred_fallthru
    _

// kernel: transformer_forward.11
$region0: #{transformer_forward.11}
  #allocation0 [shape = 'u32[]', space=smem, size = 0x4, offset = 0x4, fixed_abs, tag = 'smem constant byte address 0x4 - core index']
  #allocation1 [shape = 'u32[72,128]{1,0:T(1,128)}', space=vmem, size = 0x9000, scoped, tag = 'internal scratch']
  %s0 = inlined_call_operand.vmem [shape: f32[2,8,32], index: 0, kind: input, shape index: {}, may-alias: {0,1}]
  %s1 = inlined_call_operand.vmem [shape: f32[2,8,32], index: 1, kind: input, shape index: {}, may-alias: {0,1}]
  %s2 = inlined_call_operand.vmem [shape: f32[1,32], index: 2, kind: input, shape index: {}]
  %s3 = inlined_call_operand.vmem [shape: f32[1,32], index: 3, kind: input, shape index: {}]
  %s4 = inlined_call_operand.vmem [shape: bf16[32,96], index: 4, kind: input, shape index: {}]
  %s5 = inlined_call_operand.vmem [shape: bf16[32,32], index: 5, kind: input, shape index: {}]
  %s6 = inlined_call_operand.vmem [shape: f32[2,8,32], index: 6, kind: output, shape index: {}]
  %s7 = sld [smem:[#allocation0]]
  $region34: #{transformer_forward.11} parent=0
    _
  %s9 = ssub.s32 1, %s7
  %s10 = scalar_select 0, %s9, %s7
  // Predicated region
  $region2: #{transformer_forward.11} parent=0 // pred_check
    _
  $region3: #{transformer_forward.11} parent=0 // pred_check_branch
    %12 = sbr.rel (0) target = $region5
  $region4: #{transformer_forward.11} parent=0 // pred_region
    _
  $region5: #{transformer_forward.11} parent=0 // pred_fallthru
    _
  // Predicated region
  $region6: #{transformer_forward.11} parent=0 // pred_check
    _
  $region7: #{transformer_forward.11} parent=0 // pred_check_branch
    %14 = sbr.rel (0) target = $region9
  $region8: #{transformer_forward.11} parent=0 // pred_region
    _
  $region9: #{transformer_forward.11} parent=0 // pred_fallthru
    _
  // Predicated region
  $region10: #{transformer_forward.11} parent=0 // pred_check
    _
  $region11: #{transformer_forward.11} parent=0 // pred_check_branch
    %16 = sbr.rel (0) target = $region13
  $region12: #{transformer_forward.11} parent=0 // pred_region
    _
  $region13: #{transformer_forward.11} parent=0 // pred_fallthru
    _
  // Predicated region
  $region14: #{transformer_forward.11} parent=0 // pred_check
    _
  $region15: #{transformer_forward.11} parent=0 // pred_check_branch
    %18 = sbr.rel (0) target = $region17
  $region16: #{transformer_forward.11} parent=0 // pred_region
    _
  $region17: #{transformer_forward.11} parent=0 // pred_fallthru
    _
  // Predicated region
  $region18: #{transformer_forward.11} parent=0 // pred_check
    _
  $region19: #{transformer_forward.11} parent=0 // pred_check_branch
    %20 = sbr.rel (0) target = $region21
  $region20: #{transformer_forward.11} parent=0 // pred_region
    _
  $region21: #{transformer_forward.11} parent=0 // pred_fallthru
    _
  // Predicated region
  $region22: #{transformer_forward.11} parent=0 // pred_check
    _
  $region23: #{transformer_forward.11} parent=0 // pred_check_branch
    %22 = sbr.rel (0) target = $region25
  $region24: #{transformer_forward.11} parent=0 // pred_region
    _
  $region25: #{transformer_forward.11} parent=0 // pred_fallthru
    _
  %v24 = vld [vmem:[%s0] sm:$0xff]
  %v25 = vld [vmem:[%s0 + $0x8] sm:$0xff]
  %v26 = vld [vmem:[%s2] sm:$0x1]
  %v27 = vld [vmem:[%s3] sm:$0x1]
  %vm28 = vcmask 261120
  %v29 = vsel %vm28, %v24, 0.0
  %30 = vadd.xlane.f32.xlu0 %v29
  %v31 = vpop.xlane.xlu0 %30
  %v32 = vsel %vm28, %v25, 0.0
  %33 = vadd.xlane.f32.xlu0 %v32
  %v34 = vpop.xlane.xlu0 %33
  %v35 = vrcp.pop 32.0
  %v36 = vmul.f32 32.0, %v35
  %v37 = vsub.f32 1.0, %v36
  %v38 = vmul.f32 %v35, %v37
  %v39 = vadd.f32 %v35, %v38
  %vm40 = vweird.f32 %v35
  %v41 = vsel %vm40, %v35, %v39
  %v42 = vmul.f32 %v31, %v41
  %v43 = vmul.f32 %v34, %v41
  %v44 = vsub.f32 %v24, %v42
  %v45 = vsub.f32 %v25, %v43
  %v46 = vmul.f32 %v44, %v44
  %v47 = vmul.f32 %v45, %v45
  %v48 = vsel %vm28, %v46, 0.0
  %49 = vadd.xlane.f32.xlu0 %v48
  %v50 = vpop.xlane.xlu0 %49
  %v51 = vsel %vm28, %v47, 0.0
  %52 = vadd.xlane.f32.xlu0 %v51
  %v53 = vpop.xlane.xlu0 %52
  %v54 = vmul.f32 %v50, %v41
  %v55 = vmul.f32 %v53, %v41
  %v56 = vadd.f32 %v54, 1e-05
  %v57 = vadd.f32 %v55, 1e-05
  %v58 = vrsqrt.pop %v56
  %v59 = vmul.f32 %v58, %v56
  %v60 = vmul.f32 %v59, %v58
  %v61 = vmul.f32 0.5, %v60
  %v62 = vsub.f32 1.5, %v61
  %v63 = vmul.f32 %v58, %v62
  %vm64 = vweird.f32 %v56
  %vm65 = vweird.f32 %v58
  %vm66 = vmor %vm64, %vm65
  %v67 = vsel %vm66, %v58, %v63
  %v68 = vrsqrt.pop %v57
  %v69 = vmul.f32 %v68, %v57
  %v70 = vmul.f32 %v69, %v68
  %v71 = vmul.f32 0.5, %v70
  %v72 = vsub.f32 1.5, %v71
  %v73 = vmul.f32 %v68, %v72
  %vm74 = vweird.f32 %v57
  %vm75 = vweird.f32 %v68
  %vm76 = vmor %vm74, %vm75
  %v77 = vsel %vm76, %v68, %v73
  %v78 = vmul.f32 %v44, %v67
  %v79 = vmul.f32 %v45, %v77
  %v81 = vperm.slane %v26, 0
  %v83 = vmul.f32 %v78, %v81
  %v84 = vmul.f32 %v79, %v81
  %v86 = vperm.slane %v27, 0
  %v88 = vadd.f32 %v83, %v86
  %v89 = vadd.f32 %v84, %v86
  %v90 = vpack.c.bf16 %v89, %v88
  %v91 = vld [vmem:[%s4] sm:$0xf]
  %v92 = vld [vmem:[%s4 + $0x4] sm:$0xf]
  %v93 = vld [vmem:[%s4 + $0x8] sm:$0xf]
  %v94 = vld [vmem:[%s4 + $0xc] sm:$0xf]
  %v99 = vunpack.c.l.b16 %v91
  %v100 = vunpack.c.l.b16 %v92
  %v101 = vunpack.c.l.b16 %v93
  %v102 = vunpack.c.l.b16 %v94
  %v103 = vpack.c.b16 %v100, %v99
  %v104 = vpack.c.b16 %v102, %v101
  %v108 = vsel %vm28, %v90, 0
  %110 = vmatpush.bf16.msra.mxu0 0
  %111 = vmatpush.bf16.msra.mxu0 0
  %112 = vmatpush.bf16.msra.mxu0 0
  %113 = vmatpush.bf16.msra.mxu0 0
  %114 = vmatpush.bf16.msra.mxu0 0
  %115 = vmatpush.bf16.msra.mxu0 0
  %116 = vmatpush.bf16.msra.mxu0 %v104
  %117 = vmatpush.bf16.msra.mxu0 %v103
  %118 = vmatmul.bf16.gmra.mxu0 %v108
  %v119 = vpop.f32.mrf.mxu0
  %v120 = vadd.f32 0.0, %v119
  %v121 = vpop.f32.mrf.mxu0
  %v122 = vadd.f32 0.0, %v121
  %123 = vdwg.mxu0
  %v124 = vpack.c.bf16 %v120, %v120
  %v125 = vpack.c.bf16 %v122, %v122
  %v127 = vunpack.c.l.b16 %v124
  %v128 = vpack.c.b16 %v127, %v127
  %129 = vrot.lane.b32.xlu0 %v128, 96
  %v130 = vpop.permute.xlu0 %129
  %vm131 = vcmask 64512
  %v133 = vsel %vm131, %v124, 0
  %v136 = vsel %vm131, %v130, 0
  %138 = vmatpush.bf16.xpose.msra.mxu0 0
  %139 = vmatpush.bf16.xpose.msra.mxu0 0
  %140 = vmatpush.bf16.xpose.msra.mxu0 0
  %141 = vmatpush.bf16.xpose.msra.mxu0 0
  %142 = vmatpush.bf16.xpose.msra.mxu0 0
  %143 = vmatpush.bf16.xpose.msra.mxu0 0
  %144 = vmatpush.bf16.xpose.msra.mxu0 0
  %145 = vmatpush.bf16.xpose.msra.mxu0 %v136
  %146 = vmatmul.bf16.gmra.mxu0 %v133
  %v147 = vpop.f32.mrf.mxu0
  %v148 = vadd.f32 0.0, %v147
  %v149 = vpop.f32.mrf.mxu0
  %150 = vdwg.mxu0
  %v152 = vunpack.c.l.b16 %v125
  %v153 = vpack.c.b16 %v152, %v152
  %154 = vrot.lane.b32.xlu0 %v153, 96
  %v155 = vpop.permute.xlu0 %154
  %v157 = vsel %vm131, %v125, 0
  %v160 = vsel %vm131, %v155, 0
  %162 = vmatpush.bf16.xpose.msra.mxu0 0
  %163 = vmatpush.bf16.xpose.msra.mxu0 0
  %164 = vmatpush.bf16.xpose.msra.mxu0 0
  %165 = vmatpush.bf16.xpose.msra.mxu0 0
  %166 = vmatpush.bf16.xpose.msra.mxu0 0
  %167 = vmatpush.bf16.xpose.msra.mxu0 0
  %168 = vmatpush.bf16.xpose.msra.mxu0 0
  %169 = vmatpush.bf16.xpose.msra.mxu0 %v160
  %170 = vmatmul.bf16.gmra.mxu0 %v157
  %v171 = vpop.f32.mrf.mxu0
  %v172 = vadd.f32 0.0, %v171
  %v173 = vpop.f32.mrf.mxu0
  %174 = vdwg.mxu0
  %v175 = vsel %vm131, %v148, -inf
  %176 = vmax.xlane.f32.xlu0 %v175
  %v177 = vpop.xlane.xlu0 %176
  %v178 = vsel %vm131, %v172, -inf
  %179 = vmax.xlane.f32.xlu0 %v178
  %v180 = vpop.xlane.xlu0 %179
  %v181 = vsub.f32 %v148, %v177
  %v182 = vsub.f32 %v172, %v180
  %v183 = vmul.f32 %v181, 1.442695
  %v184 = vpow.pop %v183
  %v185 = vmul.f32 %v182, 1.442695
  %v186 = vpow.pop %v185
  %v187 = vsel %vm131, %v184, 0.0
  %188 = vadd.xlane.f32.xlu0 %v187
  %v189 = vpop.xlane.xlu0 %188
  %v190 = vsel %vm131, %v186, 0.0
  %191 = vadd.xlane.f32.xlu0 %v190
  %v192 = vpop.xlane.xlu0 %191
  %v193 = vrcp.pop %v189
  %v194 = vrcp.pop %v192
  %v195 = vmul.f32 %v184, %v193
  %v196 = vmul.f32 %v186, %v194
  %v197 = vpack.c.bf16 %v195, %v195
  %v198 = vpack.c.bf16 %v196, %v196
  %199 = vrot.lane.b32.xlu0 %v128, 64
  %v200 = vpop.permute.xlu0 %199
  %v202 = vsel %vm131, %v197, 0
  %vm204 = vcmask 1043456
  %v206 = vsel %vm204, %v200, 0
  %208 = vmatpush.bf16.msra.mxu0 0
  %209 = vmatpush.bf16.msra.mxu0 0
  %210 = vmatpush.bf16.msra.mxu0 0
  %211 = vmatpush.bf16.msra.mxu0 0
  %212 = vmatpush.bf16.msra.mxu0 0
  %213 = vmatpush.bf16.msra.mxu0 0
  %214 = vmatpush.bf16.msra.mxu0 0
  %215 = vmatpush.bf16.msra.mxu0 %v206
  %216 = vmatmul.bf16.gmra.mxu0 %v202
  %v217 = vpop.f32.mrf.mxu0
  %v218 = vadd.f32 0.0, %v217
  %v219 = vpop.f32.mrf.mxu0
  %220 = vdwg.mxu0
  %221 = vrot.lane.b32.xlu0 %v153, 64
  %v222 = vpop.permute.xlu0 %221
  %v224 = vsel %vm131, %v198, 0
  %v227 = vsel %vm204, %v222, 0
  %229 = vmatpush.bf16.msra.mxu0 0
  %230 = vmatpush.bf16.msra.mxu0 0
  %231 = vmatpush.bf16.msra.mxu0 0
  %232 = vmatpush.bf16.msra.mxu0 0
  %233 = vmatpush.bf16.msra.mxu0 0
  %234 = vmatpush.bf16.msra.mxu0 0
  %235 = vmatpush.bf16.msra.mxu0 0
  %236 = vmatpush.bf16.msra.mxu0 %v227
  %237 = vmatmul.bf16.gmra.mxu0 %v224
  %v238 = vpop.f32.mrf.mxu0
  %v239 = vadd.f32 0.0, %v238
  %v240 = vpop.f32.mrf.mxu0
  %241 = vdwg.mxu0
  %242 = vrot.lane.b32.xlu0 %v128, 120
  %v243 = vpop.permute.xlu0 %242
  %244 = vrot.lane.b32.xlu0 %v128, 88
  %v245 = vpop.permute.xlu0 %244
  %v247 = vsel %vm131, %v243, 0
  %v250 = vsel %vm131, %v245, 0
  %252 = vmatpush.bf16.xpose.msra.mxu0 0
  %253 = vmatpush.bf16.xpose.msra.mxu0 0
  %254 = vmatpush.bf16.xpose.msra.mxu0 0
  %255 = vmatpush.bf16.xpose.msra.mxu0 0
  %256 = vmatpush.bf16.xpose.msra.mxu0 0
  %257 = vmatpush.bf16.xpose.msra.mxu0 0
  %258 = vmatpush.bf16.xpose.msra.mxu0 0
  %259 = vmatpush.bf16.xpose.msra.mxu0 %v250
  %260 = vmatmul.bf16.gmra.mxu0 %v247
  %v261 = vpop.f32.mrf.mxu0
  %v262 = vadd.f32 0.0, %v261
  %v263 = vpop.f32.mrf.mxu0
  %264 = vdwg.mxu0
  %265 = vrot.lane.b32.xlu0 %v153, 120
  %v266 = vpop.permute.xlu0 %265
  %267 = vrot.lane.b32.xlu0 %v153, 88
  %v268 = vpop.permute.xlu0 %267
  %v270 = vsel %vm131, %v266, 0
  %v273 = vsel %vm131, %v268, 0
  %275 = vmatpush.bf16.xpose.msra.mxu0 0
  %276 = vmatpush.bf16.xpose.msra.mxu0 0
  %277 = vmatpush.bf16.xpose.msra.mxu0 0
  %278 = vmatpush.bf16.xpose.msra.mxu0 0
  %279 = vmatpush.bf16.xpose.msra.mxu0 0
  %280 = vmatpush.bf16.xpose.msra.mxu0 0
  %281 = vmatpush.bf16.xpose.msra.mxu0 0
  %282 = vmatpush.bf16.xpose.msra.mxu0 %v273
  %283 = vmatmul.bf16.gmra.mxu0 %v270
  %v284 = vpop.f32.mrf.mxu0
  %v285 = vadd.f32 0.0, %v284
  %v286 = vpop.f32.mrf.mxu0
  %287 = vdwg.mxu0
  %v288 = vsel %vm131, %v262, -inf
  %289 = vmax.xlane.f32.xlu0 %v288
  %v290 = vpop.xlane.xlu0 %289
  %v291 = vsel %vm131, %v285, -inf
  %292 = vmax.xlane.f32.xlu0 %v291
  %v293 = vpop.xlane.xlu0 %292
  %v294 = vsub.f32 %v262, %v290
  %v295 = vsub.f32 %v285, %v293
  %v296 = vmul.f32 %v294, 1.442695
  %v297 = vpow.pop %v296
  %v298 = vmul.f32 %v295, 1.442695
  %v299 = vpow.pop %v298
  %v300 = vsel %vm131, %v297, 0.0
  %301 = vadd.xlane.f32.xlu0 %v300
  %v302 = vpop.xlane.xlu0 %301
  %v303 = vsel %vm131, %v299, 0.0
  %304 = vadd.xlane.f32.xlu0 %v303
  %v305 = vpop.xlane.xlu0 %304
  %v306 = vrcp.pop %v302
  %v307 = vrcp.pop %v305
  %v308 = vmul.f32 %v297, %v306
  %v309 = vmul.f32 %v299, %v307
  %v310 = vpack.c.bf16 %v308, %v308
  %v311 = vpack.c.bf16 %v309, %v309
  %312 = vrot.lane.b32.xlu0 %v128, 56
  %v313 = vpop.permute.xlu0 %312
  %v315 = vsel %vm131, %v310, 0
  %v318 = vsel %vm204, %v313, 0
  %320 = vmatpush.bf16.msra.mxu0 0
  %321 = vmatpush.bf16.msra.mxu0 0
  %322 = vmatpush.bf16.msra.mxu0 0
  %323 = vmatpush.bf16.msra.mxu0 0
  %324 = vmatpush.bf16.msra.mxu0 0
  %325 = vmatpush.bf16.msra.mxu0 0
  %326 = vmatpush.bf16.msra.mxu0 0
  %327 = vmatpush.bf16.msra.mxu0 %v318
  %328 = vmatmul.bf16.gmra.mxu0 %v315
  %v329 = vpop.f32.mrf.mxu0
  %v330 = vadd.f32 0.0, %v329
  %v331 = vpop.f32.mrf.mxu0
  %332 = vdwg.mxu0
  %333 = vrot.lane.b32.xlu0 %v153, 56
  %v334 = vpop.permute.xlu0 %333
  %v336 = vsel %vm131, %v311, 0
  %v339 = vsel %vm204, %v334, 0
  %341 = vmatpush.bf16.msra.mxu0 0
  %342 = vmatpush.bf16.msra.mxu0 0
  %343 = vmatpush.bf16.msra.mxu0 0
  %344 = vmatpush.bf16.msra.mxu0 0
  %345 = vmatpush.bf16.msra.mxu0 0
  %346 = vmatpush.bf16.msra.mxu0 0
  %347 = vmatpush.bf16.msra.mxu0 0
  %348 = vmatpush.bf16.msra.mxu0 %v339
  %349 = vmatmul.bf16.gmra.mxu0 %v336
  %v350 = vpop.f32.mrf.mxu0
  %v351 = vadd.f32 0.0, %v350
  %v352 = vpop.f32.mrf.mxu0
  %353 = vdwg.mxu0
  %354 = vrot.lane.b32.xlu0 %v128, 112
  %v355 = vpop.permute.xlu0 %354
  %356 = vrot.lane.b32.xlu0 %v128, 80
  %v357 = vpop.permute.xlu0 %356
  %v359 = vsel %vm131, %v355, 0
  %v362 = vsel %vm131, %v357, 0
  %364 = vmatpush.bf16.xpose.msra.mxu0 0
  %365 = vmatpush.bf16.xpose.msra.mxu0 0
  %366 = vmatpush.bf16.xpose.msra.mxu0 0
  %367 = vmatpush.bf16.xpose.msra.mxu0 0
  %368 = vmatpush.bf16.xpose.msra.mxu0 0
  %369 = vmatpush.bf16.xpose.msra.mxu0 0
  %370 = vmatpush.bf16.xpose.msra.mxu0 0
  %371 = vmatpush.bf16.xpose.msra.mxu0 %v362
  %372 = vmatmul.bf16.gmra.mxu0 %v359
  %v373 = vpop.f32.mrf.mxu0
  %v374 = vadd.f32 0.0, %v373
  %v375 = vpop.f32.mrf.mxu0
  %376 = vdwg.mxu0
  %377 = vrot.lane.b32.xlu0 %v153, 112
  %v378 = vpop.permute.xlu0 %377
  %379 = vrot.lane.b32.xlu0 %v153, 80
  %v380 = vpop.permute.xlu0 %379
  %v382 = vsel %vm131, %v378, 0
  %v385 = vsel %vm131, %v380, 0
  %387 = vmatpush.bf16.xpose.msra.mxu0 0
  %388 = vmatpush.bf16.xpose.msra.mxu0 0
  %389 = vmatpush.bf16.xpose.msra.mxu0 0
  %390 = vmatpush.bf16.xpose.msra.mxu0 0
  %391 = vmatpush.bf16.xpose.msra.mxu0 0
  %392 = vmatpush.bf16.xpose.msra.mxu0 0
  %393 = vmatpush.bf16.xpose.msra.mxu0 0
  %394 = vmatpush.bf16.xpose.msra.mxu0 %v385
  %395 = vmatmul.bf16.gmra.mxu0 %v382
  %v396 = vpop.f32.mrf.mxu0
  %v397 = vadd.f32 0.0, %v396
  %v398 = vpop.f32.mrf.mxu0
  %399 = vdwg.mxu0
  %v400 = vsel %vm131, %v374, -inf
  %401 = vmax.xlane.f32.xlu0 %v400
  %v402 = vpop.xlane.xlu0 %401
  %v403 = vsel %vm131, %v397, -inf
  %404 = vmax.xlane.f32.xlu0 %v403
  %v405 = vpop.xlane.xlu0 %404
  %v406 = vsub.f32 %v374, %v402
  %v407 = vsub.f32 %v397, %v405
  %v408 = vmul.f32 %v406, 1.442695
  %v409 = vpow.pop %v408
  %v410 = vmul.f32 %v407, 1.442695
  %v411 = vpow.pop %v410
  %v412 = vsel %vm131, %v409, 0.0
  %413 = vadd.xlane.f32.xlu0 %v412
  %v414 = vpop.xlane.xlu0 %413
  %v415 = vsel %vm131, %v411, 0.0
  %416 = vadd.xlane.f32.xlu0 %v415
  %v417 = vpop.xlane.xlu0 %416
  %v418 = vrcp.pop %v414
  %v419 = vrcp.pop %v417
  %v420 = vmul.f32 %v409, %v418
  %v421 = vmul.f32 %v411, %v419
  %v422 = vpack.c.bf16 %v420, %v420
  %v423 = vpack.c.bf16 %v421, %v421
  %424 = vrot.lane.b32.xlu0 %v128, 48
  %v425 = vpop.permute.xlu0 %424
  %v427 = vsel %vm131, %v422, 0
  %v430 = vsel %vm204, %v425, 0
  %432 = vmatpush.bf16.msra.mxu0 0
  %433 = vmatpush.bf16.msra.mxu0 0
  %434 = vmatpush.bf16.msra.mxu0 0
  %435 = vmatpush.bf16.msra.mxu0 0
  %436 = vmatpush.bf16.msra.mxu0 0
  %437 = vmatpush.bf16.msra.mxu0 0
  %438 = vmatpush.bf16.msra.mxu0 0
  %439 = vmatpush.bf16.msra.mxu0 %v430
  %440 = vmatmul.bf16.gmra.mxu0 %v427
  %v441 = vpop.f32.mrf.mxu0
  %v442 = vadd.f32 0.0, %v441
  %v443 = vpop.f32.mrf.mxu0
  %444 = vdwg.mxu0
  %445 = vrot.lane.b32.xlu0 %v153, 48
  %v446 = vpop.permute.xlu0 %445
  %v448 = vsel %vm131, %v423, 0
  %v451 = vsel %vm204, %v446, 0
  %453 = vmatpush.bf16.msra.mxu0 0
  %454 = vmatpush.bf16.msra.mxu0 0
  %455 = vmatpush.bf16.msra.mxu0 0
  %456 = vmatpush.bf16.msra.mxu0 0
  %457 = vmatpush.bf16.msra.mxu0 0
  %458 = vmatpush.bf16.msra.mxu0 0
  %459 = vmatpush.bf16.msra.mxu0 0
  %460 = vmatpush.bf16.msra.mxu0 %v451
  %461 = vmatmul.bf16.gmra.mxu0 %v448
  %v462 = vpop.f32.mrf.mxu0
  %v463 = vadd.f32 0.0, %v462
  %v464 = vpop.f32.mrf.mxu0
  %465 = vdwg.mxu0
  %466 = vrot.lane.b32.xlu0 %v128, 104
  %v467 = vpop.permute.xlu0 %466
  %468 = vrot.lane.b32.xlu0 %v128, 72
  %v469 = vpop.permute.xlu0 %468
  %v471 = vsel %vm131, %v467, 0
  %v474 = vsel %vm131, %v469, 0
  %476 = vmatpush.bf16.xpose.msra.mxu0 0
  %477 = vmatpush.bf16.xpose.msra.mxu0 0
  %478 = vmatpush.bf16.xpose.msra.mxu0 0
  %479 = vmatpush.bf16.xpose.msra.mxu0 0
  %480 = vmatpush.bf16.xpose.msra.mxu0 0
  %481 = vmatpush.bf16.xpose.msra.mxu0 0
  %482 = vmatpush.bf16.xpose.msra.mxu0 0
  %483 = vmatpush.bf16.xpose.msra.mxu0 %v474
  %484 = vmatmul.bf16.gmra.mxu0 %v471
  %v485 = vpop.f32.mrf.mxu0
  %v486 = vadd.f32 0.0, %v485
  %v487 = vpop.f32.mrf.mxu0
  %488 = vdwg.mxu0
  %489 = vrot.lane.b32.xlu0 %v153, 104
  %v490 = vpop.permute.xlu0 %489
  %491 = vrot.lane.b32.xlu0 %v153, 72
  %v492 = vpop.permute.xlu0 %491
  %v494 = vsel %vm131, %v490, 0
  %v497 = vsel %vm131, %v492, 0
  %499 = vmatpush.bf16.xpose.msra.mxu0 0
  %500 = vmatpush.bf16.xpose.msra.mxu0 0
  %501 = vmatpush.bf16.xpose.msra.mxu0 0
  %502 = vmatpush.bf16.xpose.msra.mxu0 0
  %503 = vmatpush.bf16.xpose.msra.mxu0 0
  %504 = vmatpush.bf16.xpose.msra.mxu0 0
  %505 = vmatpush.bf16.xpose.msra.mxu0 0
  %506 = vmatpush.bf16.xpose.msra.mxu0 %v497
  %507 = vmatmul.bf16.gmra.mxu0 %v494
  %v508 = vpop.f32.mrf.mxu0
  %v509 = vadd.f32 0.0, %v508
  %v510 = vpop.f32.mrf.mxu0
  %511 = vdwg.mxu0
  %v512 = vsel %vm131, %v486, -inf
  %513 = vmax.xlane.f32.xlu0 %v512
  %v514 = vpop.xlane.xlu0 %513
  %v515 = vsel %vm131, %v509, -inf
  %516 = vmax.xlane.f32.xlu0 %v515
  %v517 = vpop.xlane.xlu0 %516
  %v518 = vsub.f32 %v486, %v514
  %v519 = vsub.f32 %v509, %v517
  %v520 = vmul.f32 %v518, 1.442695
  %v521 = vpow.pop %v520
  %v522 = vmul.f32 %v519, 1.442695
  %v523 = vpow.pop %v522
  %v524 = vsel %vm131, %v521, 0.0
  %525 = vadd.xlane.f32.xlu0 %v524
  %v526 = vpop.xlane.xlu0 %525
  %v527 = vsel %vm131, %v523, 0.0
  %528 = vadd.xlane.f32.xlu0 %v527
  %v529 = vpop.xlane.xlu0 %528
  %v530 = vrcp.pop %v526
  %v531 = vrcp.pop %v529
  %v532 = vmul.f32 %v521, %v530
  %v533 = vmul.f32 %v523, %v531
  %v534 = vpack.c.bf16 %v532, %v532
  %v535 = vpack.c.bf16 %v533, %v533
  %536 = vrot.lane.b32.xlu0 %v128, 40
  %v537 = vpop.permute.xlu0 %536
  %v539 = vsel %vm131, %v534, 0
  %v542 = vsel %vm204, %v537, 0
  %544 = vmatpush.bf16.msra.mxu0 0
  %545 = vmatpush.bf16.msra.mxu0 0
  %546 = vmatpush.bf16.msra.mxu0 0
  %547 = vmatpush.bf16.msra.mxu0 0
  %548 = vmatpush.bf16.msra.mxu0 0
  %549 = vmatpush.bf16.msra.mxu0 0
  %550 = vmatpush.bf16.msra.mxu0 0
  %551 = vmatpush.bf16.msra.mxu0 %v542
  %552 = vmatmul.bf16.gmra.mxu0 %v539
  %v553 = vpop.f32.mrf.mxu0
  %v554 = vadd.f32 0.0, %v553
  %v555 = vpop.f32.mrf.mxu0
  %556 = vdwg.mxu0
  %557 = vrot.lane.b32.xlu0 %v153, 40
  %v558 = vpop.permute.xlu0 %557
  %v560 = vsel %vm131, %v535, 0
  %v563 = vsel %vm204, %v558, 0
  %565 = vmatpush.bf16.msra.mxu0 0
  %566 = vmatpush.bf16.msra.mxu0 0
  %567 = vmatpush.bf16.msra.mxu0 0
  %568 = vmatpush.bf16.msra.mxu0 0
  %569 = vmatpush.bf16.msra.mxu0 0
  %570 = vmatpush.bf16.msra.mxu0 0
  %571 = vmatpush.bf16.msra.mxu0 0
  %572 = vmatpush.bf16.msra.mxu0 %v563
  %573 = vmatmul.bf16.gmra.mxu0 %v560
  %v574 = vpop.f32.mrf.mxu0
  %v575 = vadd.f32 0.0, %v574
  %v576 = vpop.f32.mrf.mxu0
  %577 = vdwg.mxu0
  %580 = vrot.lane.b32.xlu0 %v330, 8
  %v581 = vpop.permute.xlu0 %580
  %582 = vrot.lane.b32.xlu0 %v351, 8
  %v583 = vpop.permute.xlu0 %582
  %588 = vrot.lane.b32.xlu0 %v442, 16
  %v589 = vpop.permute.xlu0 %588
  %590 = vrot.lane.b32.xlu0 %v463, 16
  %v591 = vpop.permute.xlu0 %590
  %596 = vrot.lane.b32.xlu0 %v554, 24
  %v597 = vpop.permute.xlu0 %596
  %598 = vrot.lane.b32.xlu0 %v575, 24
  %v599 = vpop.permute.xlu0 %598
  %v602 = vsel %vm131, %v218, %v581
  %v603 = vsel %vm131, %v239, %v583
  %vm604 = vcmask 130048
  %v605 = vsel %vm604, %v602, %v589
  %v606 = vsel %vm604, %v603, %v591
  %vm607 = vcmask 195584
  %v608 = vsel %vm607, %v605, %v597
  %v609 = vsel %vm607, %v606, %v599
  %v610 = vpack.c.bf16 %v609, %v608
  %v611 = vld [vmem:[%s5] sm:$0xf]
  %v612 = vld [vmem:[%s5 + $0x4] sm:$0xf]
  %v613 = vld [vmem:[%s5 + $0x8] sm:$0xf]
  %v614 = vld [vmem:[%s5 + $0xc] sm:$0xf]
  %v619 = vunpack.c.l.b16 %v611
  %v620 = vunpack.c.l.b16 %v612
  %v621 = vunpack.c.l.b16 %v613
  %v622 = vunpack.c.l.b16 %v614
  %v623 = vpack.c.b16 %v620, %v619
  %v624 = vpack.c.b16 %v622, %v621
  %v628 = vsel %vm28, %v610, 0
  %630 = vmatpush.bf16.msra.mxu0 0
  %631 = vmatpush.bf16.msra.mxu0 0
  %632 = vmatpush.bf16.msra.mxu0 0
  %633 = vmatpush.bf16.msra.mxu0 0
  %634 = vmatpush.bf16.msra.mxu0 0
  %635 = vmatpush.bf16.msra.mxu0 0
  %636 = vmatpush.bf16.msra.mxu0 %v624
  %637 = vmatpush.bf16.msra.mxu0 %v623
  %638 = vmatmul.bf16.gmra.mxu0 %v628
  %v639 = vpop.f32.mrf.mxu0
  %v640 = vadd.f32 0.0, %v639
  %v641 = vpop.f32.mrf.mxu0
  %v642 = vadd.f32 0.0, %v641
  %643 = vdwg.mxu0
  %v644 = vadd.f32 %v24, %v640
  %v645 = vadd.f32 %v25, %v642
  %646 = vst.msk [vmem:[%s6] sm:$0xff] %vm28, %v644
  %647 = vst.msk [vmem:[%s6 + $0x8] sm:$0xff] %vm28, %v645
  // Predicated region
  $region26: #{transformer_forward.11} parent=0 // pred_check
    _
  $region27: #{transformer_forward.11} parent=0 // pred_check_branch
    %649 = sbr.rel (0) target = $region29
  $region28: #{transformer_forward.11} parent=0 // pred_region
    _
  $region29: #{transformer_forward.11} parent=0 // pred_fallthru
    _
  // Predicated region
  $region30: #{transformer_forward.11} parent=0 // pred_check
    _
  $region31: #{transformer_forward.11} parent=0 // pred_check_branch
    %651 = sbr.rel (0) target = $region33
  $region32: #{transformer_forward.11} parent=0 // pred_region
    _
  $region33: #{transformer_forward.11} parent=0 // pred_fallthru
    _

// kernel: transformer_forward.15
$region0: #{transformer_forward.15}
  #allocation0 [shape = 'u32[]', space=smem, size = 0x4, offset = 0x4, fixed_abs, tag = 'smem constant byte address 0x4 - core index']
  #allocation1 [shape = 'u32[72,128]{1,0:T(1,128)}', space=vmem, size = 0x9000, scoped, tag = 'internal scratch']
  %s0 = inlined_call_operand.vmem [shape: f32[2,8,32], index: 0, kind: input, shape index: {}, may-alias: {0,1}]
  %s1 = inlined_call_operand.vmem [shape: f32[2,8,32], index: 1, kind: input, shape index: {}, may-alias: {0,1}]
  %s2 = inlined_call_operand.vmem [shape: f32[1,32], index: 2, kind: input, shape index: {}]
  %s3 = inlined_call_operand.vmem [shape: f32[1,32], index: 3, kind: input, shape index: {}]
  %s4 = inlined_call_operand.vmem [shape: bf16[32,96], index: 4, kind: input, shape index: {}]
  %s5 = inlined_call_operand.vmem [shape: bf16[32,32], index: 5, kind: input, shape index: {}]
  %s6 = inlined_call_operand.vmem [shape: f32[2,8,32], index: 6, kind: output, shape index: {}]
  %s7 = sld [smem:[#allocation0]]
  $region34: #{transformer_forward.15} parent=0
    _
  %s9 = ssub.s32 1, %s7
  %s10 = scalar_select 0, %s9, %s7
  // Predicated region
  $region2: #{transformer_forward.15} parent=0 // pred_check
    _
  $region3: #{transformer_forward.15} parent=0 // pred_check_branch
    %12 = sbr.rel (0) target = $region5
  $region4: #{transformer_forward.15} parent=0 // pred_region
    _
  $region5: #{transformer_forward.15} parent=0 // pred_fallthru
    _
  // Predicated region
  $region6: #{transformer_forward.15} parent=0 // pred_check
    _
  $region7: #{transformer_forward.15} parent=0 // pred_check_branch
    %14 = sbr.rel (0) target = $region9
  $region8: #{transformer_forward.15} parent=0 // pred_region
    _
  $region9: #{transformer_forward.15} parent=0 // pred_fallthru
    _
  // Predicated region
  $region10: #{transformer_forward.15} parent=0 // pred_check
    _
  $region11: #{transformer_forward.15} parent=0 // pred_check_branch
    %16 = sbr.rel (0) target = $region13
  $region12: #{transformer_forward.15} parent=0 // pred_region
    _
  $region13: #{transformer_forward.15} parent=0 // pred_fallthru
    _
  // Predicated region
  $region14: #{transformer_forward.15} parent=0 // pred_check
    _
  $region15: #{transformer_forward.15} parent=0 // pred_check_branch
    %18 = sbr.rel (0) target = $region17
  $region16: #{transformer_forward.15} parent=0 // pred_region
    _
  $region17: #{transformer_forward.15} parent=0 // pred_fallthru
    _
  // Predicated region
  $region18: #{transformer_forward.15} parent=0 // pred_check
    _
  $region19: #{transformer_forward.15} parent=0 // pred_check_branch
    %20 = sbr.rel (0) target = $region21
  $region20: #{transformer_forward.15} parent=0 // pred_region
    _
  $region21: #{transformer_forward.15} parent=0 // pred_fallthru
    _
  // Predicated region
  $region22: #{transformer_forward.15} parent=0 // pred_check
    _
  $region23: #{transformer_forward.15} parent=0 // pred_check_branch
    %22 = sbr.rel (0) target = $region25
  $region24: #{transformer_forward.15} parent=0 // pred_region
    _
  $region25: #{transformer_forward.15} parent=0 // pred_fallthru
    _
  %v24 = vld [vmem:[%s0] sm:$0xff]
  %v25 = vld [vmem:[%s0 + $0x8] sm:$0xff]
  %v26 = vld [vmem:[%s2] sm:$0x1]
  %v27 = vld [vmem:[%s3] sm:$0x1]
  %vm28 = vcmask 261120
  %v29 = vsel %vm28, %v24, 0.0
  %30 = vadd.xlane.f32.xlu0 %v29
  %v31 = vpop.xlane.xlu0 %30
  %v32 = vsel %vm28, %v25, 0.0
  %33 = vadd.xlane.f32.xlu0 %v32
  %v34 = vpop.xlane.xlu0 %33
  %v35 = vrcp.pop 32.0
  %v36 = vmul.f32 32.0, %v35
  %v37 = vsub.f32 1.0, %v36
  %v38 = vmul.f32 %v35, %v37
  %v39 = vadd.f32 %v35, %v38
  %vm40 = vweird.f32 %v35
  %v41 = vsel %vm40, %v35, %v39
  %v42 = vmul.f32 %v31, %v41
  %v43 = vmul.f32 %v34, %v41
  %v44 = vsub.f32 %v24, %v42
  %v45 = vsub.f32 %v25, %v43
  %v46 = vmul.f32 %v44, %v44
  %v47 = vmul.f32 %v45, %v45
  %v48 = vsel %vm28, %v46, 0.0
  %49 = vadd.xlane.f32.xlu0 %v48
  %v50 = vpop.xlane.xlu0 %49
  %v51 = vsel %vm28, %v47, 0.0
  %52 = vadd.xlane.f32.xlu0 %v51
  %v53 = vpop.xlane.xlu0 %52
  %v54 = vmul.f32 %v50, %v41
  %v55 = vmul.f32 %v53, %v41
  %v56 = vadd.f32 %v54, 1e-05
  %v57 = vadd.f32 %v55, 1e-05
  %v58 = vrsqrt.pop %v56
  %v59 = vmul.f32 %v58, %v56
  %v60 = vmul.f32 %v59, %v58
  %v61 = vmul.f32 0.5, %v60
  %v62 = vsub.f32 1.5, %v61
  %v63 = vmul.f32 %v58, %v62
  %vm64 = vweird.f32 %v56
  %vm65 = vweird.f32 %v58
  %vm66 = vmor %vm64, %vm65
  %v67 = vsel %vm66, %v58, %v63
  %v68 = vrsqrt.pop %v57
  %v69 = vmul.f32 %v68, %v57
  %v70 = vmul.f32 %v69, %v68
  %v71 = vmul.f32 0.5, %v70
  %v72 = vsub.f32 1.5, %v71
  %v73 = vmul.f32 %v68, %v72
  %vm74 = vweird.f32 %v57
  %vm75 = vweird.f32 %v68
  %vm76 = vmor %vm74, %vm75
  %v77 = vsel %vm76, %v68, %v73
  %v78 = vmul.f32 %v44, %v67
  %v79 = vmul.f32 %v45, %v77
  %v81 = vperm.slane %v26, 0
  %v83 = vmul.f32 %v78, %v81
  %v84 = vmul.f32 %v79, %v81
  %v86 = vperm.slane %v27, 0
  %v88 = vadd.f32 %v83, %v86
  %v89 = vadd.f32 %v84, %v86
  %v90 = vpack.c.bf16 %v89, %v88
  %v91 = vld [vmem:[%s4] sm:$0xf]
  %v92 = vld [vmem:[%s4 + $0x4] sm:$0xf]
  %v93 = vld [vmem:[%s4 + $0x8] sm:$0xf]
  %v94 = vld [vmem:[%s4 + $0xc] sm:$0xf]
  %v99 = vunpack.c.l.b16 %v91
  %v100 = vunpack.c.l.b16 %v92
  %v101 = vunpack.c.l.b16 %v93
  %v102 = vunpack.c.l.b16 %v94
  %v103 = vpack.c.b16 %v100, %v99
  %v104 = vpack.c.b16 %v102, %v101
  %v108 = vsel %vm28, %v90, 0
  %110 = vmatpush.bf16.msra.mxu0 0
  %111 = vmatpush.bf16.msra.mxu0 0
  %112 = vmatpush.bf16.msra.mxu0 0
  %113 = vmatpush.bf16.msra.mxu0 0
  %114 = vmatpush.bf16.msra.mxu0 0
  %115 = vmatpush.bf16.msra.mxu0 0
  %116 = vmatpush.bf16.msra.mxu0 %v104
  %117 = vmatpush.bf16.msra.mxu0 %v103
  %118 = vmatmul.bf16.gmra.mxu0 %v108
  %v119 = vpop.f32.mrf.mxu0
  %v120 = vadd.f32 0.0, %v119
  %v121 = vpop.f32.mrf.mxu0
  %v122 = vadd.f32 0.0, %v121
  %123 = vdwg.mxu0
  %v124 = vlaneseq
  %v125 = vshrl.u32 %v124, 7
  %v126 = vlaneseq
  %v127 = vand.u32 %v126, 127
  %vm128 = vcmp.le.s32.totalorder %v127, %v125
  %v129 = vpack.c.bf16 %v120, %v120
  %v130 = vpack.c.bf16 %v122, %v122
  %v132 = vunpack.c.l.b16 %v129
  %v133 = vpack.c.b16 %v132, %v132
  %134 = vrot.lane.b32.xlu0 %v133, 96
  %v135 = vpop.permute.xlu0 %134
  %vm136 = vcmask 64512
  %v138 = vsel %vm136, %v129, 0
  %v141 = vsel %vm136, %v135, 0
  %143 = vmatpush.bf16.xpose.msra.mxu0 0
  %144 = vmatpush.bf16.xpose.msra.mxu0 0
  %145 = vmatpush.bf16.xpose.msra.mxu0 0
  %146 = vmatpush.bf16.xpose.msra.mxu0 0
  %147 = vmatpush.bf16.xpose.msra.mxu0 0
  %148 = vmatpush.bf16.xpose.msra.mxu0 0
  %149 = vmatpush.bf16.xpose.msra.mxu0 0
  %150 = vmatpush.bf16.xpose.msra.mxu0 %v141
  %151 = vmatmul.bf16.gmra.mxu0 %v138
  %v152 = vpop.f32.mrf.mxu0
  %v153 = vadd.f32 0.0, %v152
  %v154 = vpop.f32.mrf.mxu0
  %155 = vdwg.mxu0
  %v157 = vunpack.c.l.b16 %v130
  %v158 = vpack.c.b16 %v157, %v157
  %159 = vrot.lane.b32.xlu0 %v158, 96
  %v160 = vpop.permute.xlu0 %159
  %v162 = vsel %vm136, %v130, 0
  %v165 = vsel %vm136, %v160, 0
  %167 = vmatpush.bf16.xpose.msra.mxu0 0
  %168 = vmatpush.bf16.xpose.msra.mxu0 0
  %169 = vmatpush.bf16.xpose.msra.mxu0 0
  %170 = vmatpush.bf16.xpose.msra.mxu0 0
  %171 = vmatpush.bf16.xpose.msra.mxu0 0
  %172 = vmatpush.bf16.xpose.msra.mxu0 0
  %173 = vmatpush.bf16.xpose.msra.mxu0 0
  %174 = vmatpush.bf16.xpose.msra.mxu0 %v165
  %175 = vmatmul.bf16.gmra.mxu0 %v162
  %v176 = vpop.f32.mrf.mxu0
  %v177 = vadd.f32 0.0, %v176
  %v178 = vpop.f32.mrf.mxu0
  %179 = vdwg.mxu0
  %v180 = vsel %vm128, %v153, -1e+30
  %v181 = vsel %vm128, %v177, -1e+30
  %v182 = vsel %vm136, %v180, -inf
  %183 = vmax.xlane.f32.xlu0 %v182
  %v184 = vpop.xlane.xlu0 %183
  %v185 = vsel %vm136, %v181, -inf
  %186 = vmax.xlane.f32.xlu0 %v185
  %v187 = vpop.xlane.xlu0 %186
  %v188 = vsub.f32 %v180, %v184
  %v189 = vsub.f32 %v181, %v187
  %v190 = vmul.f32 %v188, 1.442695
  %v191 = vpow.pop %v190
  %v192 = vmul.f32 %v189, 1.442695
  %v193 = vpow.pop %v192
  %v194 = vsel %vm136, %v191, 0.0
  %195 = vadd.xlane.f32.xlu0 %v194
  %v196 = vpop.xlane.xlu0 %195
  %v197 = vsel %vm136, %v193, 0.0
  %198 = vadd.xlane.f32.xlu0 %v197
  %v199 = vpop.xlane.xlu0 %198
  %v200 = vrcp.pop %v196
  %v201 = vrcp.pop %v199
  %v202 = vmul.f32 %v191, %v200
  %v203 = vmul.f32 %v193, %v201
  %v204 = vpack.c.bf16 %v202, %v202
  %v205 = vpack.c.bf16 %v203, %v203
  %206 = vrot.lane.b32.xlu0 %v133, 64
  %v207 = vpop.permute.xlu0 %206
  %v209 = vsel %vm136, %v204, 0
  %vm211 = vcmask 1043456
  %v213 = vsel %vm211, %v207, 0
  %215 = vmatpush.bf16.msra.mxu0 0
  %216 = vmatpush.bf16.msra.mxu0 0
  %217 = vmatpush.bf16.msra.mxu0 0
  %218 = vmatpush.bf16.msra.mxu0 0
  %219 = vmatpush.bf16.msra.mxu0 0
  %220 = vmatpush.bf16.msra.mxu0 0
  %221 = vmatpush.bf16.msra.mxu0 0
  %222 = vmatpush.bf16.msra.mxu0 %v213
  %223 = vmatmul.bf16.gmra.mxu0 %v209
  %v224 = vpop.f32.mrf.mxu0
  %v225 = vadd.f32 0.0, %v224
  %v226 = vpop.f32.mrf.mxu0
  %227 = vdwg.mxu0
  %228 = vrot.lane.b32.xlu0 %v158, 64
  %v229 = vpop.permute.xlu0 %228
  %v231 = vsel %vm136, %v205, 0
  %v234 = vsel %vm211, %v229, 0
  %236 = vmatpush.bf16.msra.mxu0 0
  %237 = vmatpush.bf16.msra.mxu0 0
  %238 = vmatpush.bf16.msra.mxu0 0
  %239 = vmatpush.bf16.msra.mxu0 0
  %240 = vmatpush.bf16.msra.mxu0 0
  %241 = vmatpush.bf16.msra.mxu0 0
  %242 = vmatpush.bf16.msra.mxu0 0
  %243 = vmatpush.bf16.msra.mxu0 %v234
  %244 = vmatmul.bf16.gmra.mxu0 %v231
  %v245 = vpop.f32.mrf.mxu0
  %v246 = vadd.f32 0.0, %v245
  %v247 = vpop.f32.mrf.mxu0
  %248 = vdwg.mxu0
  %249 = vrot.lane.b32.xlu0 %v133, 120
  %v250 = vpop.permute.xlu0 %249
  %251 = vrot.lane.b32.xlu0 %v133, 88
  %v252 = vpop.permute.xlu0 %251
  %v254 = vsel %vm136, %v250, 0
  %v257 = vsel %vm136, %v252, 0
  %259 = vmatpush.bf16.xpose.msra.mxu0 0
  %260 = vmatpush.bf16.xpose.msra.mxu0 0
  %261 = vmatpush.bf16.xpose.msra.mxu0 0
  %262 = vmatpush.bf16.xpose.msra.mxu0 0
  %263 = vmatpush.bf16.xpose.msra.mxu0 0
  %264 = vmatpush.bf16.xpose.msra.mxu0 0
  %265 = vmatpush.bf16.xpose.msra.mxu0 0
  %266 = vmatpush.bf16.xpose.msra.mxu0 %v257
  %267 = vmatmul.bf16.gmra.mxu0 %v254
  %v268 = vpop.f32.mrf.mxu0
  %v269 = vadd.f32 0.0, %v268
  %v270 = vpop.f32.mrf.mxu0
  %271 = vdwg.mxu0
  %272 = vrot.lane.b32.xlu0 %v158, 120
  %v273 = vpop.permute.xlu0 %272
  %274 = vrot.lane.b32.xlu0 %v158, 88
  %v275 = vpop.permute.xlu0 %274
  %v277 = vsel %vm136, %v273, 0
  %v280 = vsel %vm136, %v275, 0
  %282 = vmatpush.bf16.xpose.msra.mxu0 0
  %283 = vmatpush.bf16.xpose.msra.mxu0 0
  %284 = vmatpush.bf16.xpose.msra.mxu0 0
  %285 = vmatpush.bf16.xpose.msra.mxu0 0
  %286 = vmatpush.bf16.xpose.msra.mxu0 0
  %287 = vmatpush.bf16.xpose.msra.mxu0 0
  %288 = vmatpush.bf16.xpose.msra.mxu0 0
  %289 = vmatpush.bf16.xpose.msra.mxu0 %v280
  %290 = vmatmul.bf16.gmra.mxu0 %v277
  %v291 = vpop.f32.mrf.mxu0
  %v292 = vadd.f32 0.0, %v291
  %v293 = vpop.f32.mrf.mxu0
  %294 = vdwg.mxu0
  %v295 = vsel %vm128, %v269, -1e+30
  %v296 = vsel %vm128, %v292, -1e+30
  %v297 = vsel %vm136, %v295, -inf
  %298 = vmax.xlane.f32.xlu0 %v297
  %v299 = vpop.xlane.xlu0 %298
  %v300 = vsel %vm136, %v296, -inf
  %301 = vmax.xlane.f32.xlu0 %v300
  %v302 = vpop.xlane.xlu0 %301
  %v303 = vsub.f32 %v295, %v299
  %v304 = vsub.f32 %v296, %v302
  %v305 = vmul.f32 %v303, 1.442695
  %v306 = vpow.pop %v305
  %v307 = vmul.f32 %v304, 1.442695
  %v308 = vpow.pop %v307
  %v309 = vsel %vm136, %v306, 0.0
  %310 = vadd.xlane.f32.xlu0 %v309
  %v311 = vpop.xlane.xlu0 %310
  %v312 = vsel %vm136, %v308, 0.0
  %313 = vadd.xlane.f32.xlu0 %v312
  %v314 = vpop.xlane.xlu0 %313
  %v315 = vrcp.pop %v311
  %v316 = vrcp.pop %v314
  %v317 = vmul.f32 %v306, %v315
  %v318 = vmul.f32 %v308, %v316
  %v319 = vpack.c.bf16 %v317, %v317
  %v320 = vpack.c.bf16 %v318, %v318
  %321 = vrot.lane.b32.xlu0 %v133, 56
  %v322 = vpop.permute.xlu0 %321
  %v324 = vsel %vm136, %v319, 0
  %v327 = vsel %vm211, %v322, 0
  %329 = vmatpush.bf16.msra.mxu0 0
  %330 = vmatpush.bf16.msra.mxu0 0
  %331 = vmatpush.bf16.msra.mxu0 0
  %332 = vmatpush.bf16.msra.mxu0 0
  %333 = vmatpush.bf16.msra.mxu0 0
  %334 = vmatpush.bf16.msra.mxu0 0
  %335 = vmatpush.bf16.msra.mxu0 0
  %336 = vmatpush.bf16.msra.mxu0 %v327
  %337 = vmatmul.bf16.gmra.mxu0 %v324
  %v338 = vpop.f32.mrf.mxu0
  %v339 = vadd.f32 0.0, %v338
  %v340 = vpop.f32.mrf.mxu0
  %341 = vdwg.mxu0
  %342 = vrot.lane.b32.xlu0 %v158, 56
  %v343 = vpop.permute.xlu0 %342
  %v345 = vsel %vm136, %v320, 0
  %v348 = vsel %vm211, %v343, 0
  %350 = vmatpush.bf16.msra.mxu0 0
  %351 = vmatpush.bf16.msra.mxu0 0
  %352 = vmatpush.bf16.msra.mxu0 0
  %353 = vmatpush.bf16.msra.mxu0 0
  %354 = vmatpush.bf16.msra.mxu0 0
  %355 = vmatpush.bf16.msra.mxu0 0
  %356 = vmatpush.bf16.msra.mxu0 0
  %357 = vmatpush.bf16.msra.mxu0 %v348
  %358 = vmatmul.bf16.gmra.mxu0 %v345
  %v359 = vpop.f32.mrf.mxu0
  %v360 = vadd.f32 0.0, %v359
  %v361 = vpop.f32.mrf.mxu0
  %362 = vdwg.mxu0
  %363 = vrot.lane.b32.xlu0 %v133, 112
  %v364 = vpop.permute.xlu0 %363
  %365 = vrot.lane.b32.xlu0 %v133, 80
  %v366 = vpop.permute.xlu0 %365
  %v368 = vsel %vm136, %v364, 0
  %v371 = vsel %vm136, %v366, 0
  %373 = vmatpush.bf16.xpose.msra.mxu0 0
  %374 = vmatpush.bf16.xpose.msra.mxu0 0
  %375 = vmatpush.bf16.xpose.msra.mxu0 0
  %376 = vmatpush.bf16.xpose.msra.mxu0 0
  %377 = vmatpush.bf16.xpose.msra.mxu0 0
  %378 = vmatpush.bf16.xpose.msra.mxu0 0
  %379 = vmatpush.bf16.xpose.msra.mxu0 0
  %380 = vmatpush.bf16.xpose.msra.mxu0 %v371
  %381 = vmatmul.bf16.gmra.mxu0 %v368
  %v382 = vpop.f32.mrf.mxu0
  %v383 = vadd.f32 0.0, %v382
  %v384 = vpop.f32.mrf.mxu0
  %385 = vdwg.mxu0
  %386 = vrot.lane.b32.xlu0 %v158, 112
  %v387 = vpop.permute.xlu0 %386
  %388 = vrot.lane.b32.xlu0 %v158, 80
  %v389 = vpop.permute.xlu0 %388
  %v391 = vsel %vm136, %v387, 0
  %v394 = vsel %vm136, %v389, 0
  %396 = vmatpush.bf16.xpose.msra.mxu0 0
  %397 = vmatpush.bf16.xpose.msra.mxu0 0
  %398 = vmatpush.bf16.xpose.msra.mxu0 0
  %399 = vmatpush.bf16.xpose.msra.mxu0 0
  %400 = vmatpush.bf16.xpose.msra.mxu0 0
  %401 = vmatpush.bf16.xpose.msra.mxu0 0
  %402 = vmatpush.bf16.xpose.msra.mxu0 0
  %403 = vmatpush.bf16.xpose.msra.mxu0 %v394
  %404 = vmatmul.bf16.gmra.mxu0 %v391
  %v405 = vpop.f32.mrf.mxu0
  %v406 = vadd.f32 0.0, %v405
  %v407 = vpop.f32.mrf.mxu0
  %408 = vdwg.mxu0
  %v409 = vsel %vm128, %v383, -1e+30
  %v410 = vsel %vm128, %v406, -1e+30
  %v411 = vsel %vm136, %v409, -inf
  %412 = vmax.xlane.f32.xlu0 %v411
  %v413 = vpop.xlane.xlu0 %412
  %v414 = vsel %vm136, %v410, -inf
  %415 = vmax.xlane.f32.xlu0 %v414
  %v416 = vpop.xlane.xlu0 %415
  %v417 = vsub.f32 %v409, %v413
  %v418 = vsub.f32 %v410, %v416
  %v419 = vmul.f32 %v417, 1.442695
  %v420 = vpow.pop %v419
  %v421 = vmul.f32 %v418, 1.442695
  %v422 = vpow.pop %v421
  %v423 = vsel %vm136, %v420, 0.0
  %424 = vadd.xlane.f32.xlu0 %v423
  %v425 = vpop.xlane.xlu0 %424
  %v426 = vsel %vm136, %v422, 0.0
  %427 = vadd.xlane.f32.xlu0 %v426
  %v428 = vpop.xlane.xlu0 %427
  %v429 = vrcp.pop %v425
  %v430 = vrcp.pop %v428
  %v431 = vmul.f32 %v420, %v429
  %v432 = vmul.f32 %v422, %v430
  %v433 = vpack.c.bf16 %v431, %v431
  %v434 = vpack.c.bf16 %v432, %v432
  %435 = vrot.lane.b32.xlu0 %v133, 48
  %v436 = vpop.permute.xlu0 %435
  %v438 = vsel %vm136, %v433, 0
  %v441 = vsel %vm211, %v436, 0
  %443 = vmatpush.bf16.msra.mxu0 0
  %444 = vmatpush.bf16.msra.mxu0 0
  %445 = vmatpush.bf16.msra.mxu0 0
  %446 = vmatpush.bf16.msra.mxu0 0
  %447 = vmatpush.bf16.msra.mxu0 0
  %448 = vmatpush.bf16.msra.mxu0 0
  %449 = vmatpush.bf16.msra.mxu0 0
  %450 = vmatpush.bf16.msra.mxu0 %v441
  %451 = vmatmul.bf16.gmra.mxu0 %v438
  %v452 = vpop.f32.mrf.mxu0
  %v453 = vadd.f32 0.0, %v452
  %v454 = vpop.f32.mrf.mxu0
  %455 = vdwg.mxu0
  %456 = vrot.lane.b32.xlu0 %v158, 48
  %v457 = vpop.permute.xlu0 %456
  %v459 = vsel %vm136, %v434, 0
  %v462 = vsel %vm211, %v457, 0
  %464 = vmatpush.bf16.msra.mxu0 0
  %465 = vmatpush.bf16.msra.mxu0 0
  %466 = vmatpush.bf16.msra.mxu0 0
  %467 = vmatpush.bf16.msra.mxu0 0
  %468 = vmatpush.bf16.msra.mxu0 0
  %469 = vmatpush.bf16.msra.mxu0 0
  %470 = vmatpush.bf16.msra.mxu0 0
  %471 = vmatpush.bf16.msra.mxu0 %v462
  %472 = vmatmul.bf16.gmra.mxu0 %v459
  %v473 = vpop.f32.mrf.mxu0
  %v474 = vadd.f32 0.0, %v473
  %v475 = vpop.f32.mrf.mxu0
  %476 = vdwg.mxu0
  %477 = vrot.lane.b32.xlu0 %v133, 104
  %v478 = vpop.permute.xlu0 %477
  %479 = vrot.lane.b32.xlu0 %v133, 72
  %v480 = vpop.permute.xlu0 %479
  %v482 = vsel %vm136, %v478, 0
  %v485 = vsel %vm136, %v480, 0
  %487 = vmatpush.bf16.xpose.msra.mxu0 0
  %488 = vmatpush.bf16.xpose.msra.mxu0 0
  %489 = vmatpush.bf16.xpose.msra.mxu0 0
  %490 = vmatpush.bf16.xpose.msra.mxu0 0
  %491 = vmatpush.bf16.xpose.msra.mxu0 0
  %492 = vmatpush.bf16.xpose.msra.mxu0 0
  %493 = vmatpush.bf16.xpose.msra.mxu0 0
  %494 = vmatpush.bf16.xpose.msra.mxu0 %v485
  %495 = vmatmul.bf16.gmra.mxu0 %v482
  %v496 = vpop.f32.mrf.mxu0
  %v497 = vadd.f32 0.0, %v496
  %v498 = vpop.f32.mrf.mxu0
  %499 = vdwg.mxu0
  %500 = vrot.lane.b32.xlu0 %v158, 104
  %v501 = vpop.permute.xlu0 %500
  %502 = vrot.lane.b32.xlu0 %v158, 72
  %v503 = vpop.permute.xlu0 %502
  %v505 = vsel %vm136, %v501, 0
  %v508 = vsel %vm136, %v503, 0
  %510 = vmatpush.bf16.xpose.msra.mxu0 0
  %511 = vmatpush.bf16.xpose.msra.mxu0 0
  %512 = vmatpush.bf16.xpose.msra.mxu0 0
  %513 = vmatpush.bf16.xpose.msra.mxu0 0
  %514 = vmatpush.bf16.xpose.msra.mxu0 0
  %515 = vmatpush.bf16.xpose.msra.mxu0 0
  %516 = vmatpush.bf16.xpose.msra.mxu0 0
  %517 = vmatpush.bf16.xpose.msra.mxu0 %v508
  %518 = vmatmul.bf16.gmra.mxu0 %v505
  %v519 = vpop.f32.mrf.mxu0
  %v520 = vadd.f32 0.0, %v519
  %v521 = vpop.f32.mrf.mxu0
  %522 = vdwg.mxu0
  %v523 = vsel %vm128, %v497, -1e+30
  %v524 = vsel %vm128, %v520, -1e+30
  %v525 = vsel %vm136, %v523, -inf
  %526 = vmax.xlane.f32.xlu0 %v525
  %v527 = vpop.xlane.xlu0 %526
  %v528 = vsel %vm136, %v524, -inf
  %529 = vmax.xlane.f32.xlu0 %v528
  %v530 = vpop.xlane.xlu0 %529
  %v531 = vsub.f32 %v523, %v527
  %v532 = vsub.f32 %v524, %v530
  %v533 = vmul.f32 %v531, 1.442695
  %v534 = vpow.pop %v533
  %v535 = vmul.f32 %v532, 1.442695
  %v536 = vpow.pop %v535
  %v537 = vsel %vm136, %v534, 0.0
  %538 = vadd.xlane.f32.xlu0 %v537
  %v539 = vpop.xlane.xlu0 %538
  %v540 = vsel %vm136, %v536, 0.0
  %541 = vadd.xlane.f32.xlu0 %v540
  %v542 = vpop.xlane.xlu0 %541
  %v543 = vrcp.pop %v539
  %v544 = vrcp.pop %v542
  %v545 = vmul.f32 %v534, %v543
  %v546 = vmul.f32 %v536, %v544
  %v547 = vpack.c.bf16 %v545, %v545
  %v548 = vpack.c.bf16 %v546, %v546
  %549 = vrot.lane.b32.xlu0 %v133, 40
  %v550 = vpop.permute.xlu0 %549
  %v552 = vsel %vm136, %v547, 0
  %v555 = vsel %vm211, %v550, 0
  %557 = vmatpush.bf16.msra.mxu0 0
  %558 = vmatpush.bf16.msra.mxu0 0
  %559 = vmatpush.bf16.msra.mxu0 0
  %560 = vmatpush.bf16.msra.mxu0 0
  %561 = vmatpush.bf16.msra.mxu0 0
  %562 = vmatpush.bf16.msra.mxu0 0
  %563 = vmatpush.bf16.msra.mxu0 0
  %564 = vmatpush.bf16.msra.mxu0 %v555
  %565 = vmatmul.bf16.gmra.mxu0 %v552
  %v566 = vpop.f32.mrf.mxu0
  %v567 = vadd.f32 0.0, %v566
  %v568 = vpop.f32.mrf.mxu0
  %569 = vdwg.mxu0
  %570 = vrot.lane.b32.xlu0 %v158, 40
  %v571 = vpop.permute.xlu0 %570
  %v573 = vsel %vm136, %v548, 0
  %v576 = vsel %vm211, %v571, 0
  %578 = vmatpush.bf16.msra.mxu0 0
  %579 = vmatpush.bf16.msra.mxu0 0
  %580 = vmatpush.bf16.msra.mxu0 0
  %581 = vmatpush.bf16.msra.mxu0 0
  %582 = vmatpush.bf16.msra.mxu0 0
  %583 = vmatpush.bf16.msra.mxu0 0
  %584 = vmatpush.bf16.msra.mxu0 0
  %585 = vmatpush.bf16.msra.mxu0 %v576
  %586 = vmatmul.bf16.gmra.mxu0 %v573
  %v587 = vpop.f32.mrf.mxu0
  %v588 = vadd.f32 0.0, %v587
  %v589 = vpop.f32.mrf.mxu0
  %590 = vdwg.mxu0
  %593 = vrot.lane.b32.xlu0 %v339, 8
  %v594 = vpop.permute.xlu0 %593
  %595 = vrot.lane.b32.xlu0 %v360, 8
  %v596 = vpop.permute.xlu0 %595
  %601 = vrot.lane.b32.xlu0 %v453, 16
  %v602 = vpop.permute.xlu0 %601
  %603 = vrot.lane.b32.xlu0 %v474, 16
  %v604 = vpop.permute.xlu0 %603
  %609 = vrot.lane.b32.xlu0 %v567, 24
  %v610 = vpop.permute.xlu0 %609
  %611 = vrot.lane.b32.xlu0 %v588, 24
  %v612 = vpop.permute.xlu0 %611
  %v615 = vsel %vm136, %v225, %v594
  %v616 = vsel %vm136, %v246, %v596
  %vm617 = vcmask 130048
  %v618 = vsel %vm617, %v615, %v602
  %v619 = vsel %vm617, %v616, %v604
  %vm620 = vcmask 195584
  %v621 = vsel %vm620, %v618, %v610
  %v622 = vsel %vm620, %v619, %v612
  %v623 = vpack.c.bf16 %v622, %v621
  %v624 = vld [vmem:[%s5] sm:$0xf]
  %v625 = vld [vmem:[%s5 + $0x4] sm:$0xf]
  %v626 = vld [vmem:[%s5 + $0x8] sm:$0xf]
  %v627 = vld [vmem:[%s5 + $0xc] sm:$0xf]
  %v632 = vunpack.c.l.b16 %v624
  %v633 = vunpack.c.l.b16 %v625
  %v634 = vunpack.c.l.b16 %v626
  %v635 = vunpack.c.l.b16 %v627
  %v636 = vpack.c.b16 %v633, %v632
  %v637 = vpack.c.b16 %v635, %v634
  %v641 = vsel %vm28, %v623, 0
  %643 = vmatpush.bf16.msra.mxu0 0
  %644 = vmatpush.bf16.msra.mxu0 0
  %645 = vmatpush.bf16.msra.mxu0 0
  %646 = vmatpush.bf16.msra.mxu0 0
  %647 = vmatpush.bf16.msra.mxu0 0
  %648 = vmatpush.bf16.msra.mxu0 0
  %649 = vmatpush.bf16.msra.mxu0 %v637
  %650 = vmatpush.bf16.msra.mxu0 %v636
  %651 = vmatmul.bf16.gmra.mxu0 %v641
  %v652 = vpop.f32.mrf.mxu0
  %v653 = vadd.f32 0.0, %v652
  %v654 = vpop.f32.mrf.mxu0
  %v655 = vadd.f32 0.0, %v654
  %656 = vdwg.mxu0
  %v657 = vadd.f32 %v24, %v653
  %v658 = vadd.f32 %v25, %v655
  %659 = vst.msk [vmem:[%s6] sm:$0xff] %vm28, %v657
  %660 = vst.msk [vmem:[%s6 + $0x8] sm:$0xff] %vm28, %v658
  // Predicated region
  $region26: #{transformer_forward.15} parent=0 // pred_check
    _
  $region27: #{transformer_forward.15} parent=0 // pred_check_branch
    %662 = sbr.rel (0) target = $region29
  $region28: #{transformer_forward.15} parent=0 // pred_region
    _
  $region29: #{transformer_forward.15} parent=0 // pred_fallthru
    _
  // Predicated region
  $region30: #{transformer_forward.15} parent=0 // pred_check
    _
  $region31: #{transformer_forward.15} parent=0 // pred_check_branch
    %664 = sbr.rel (0) target = $region33
  $region32: #{transformer_forward.15} parent=0 // pred_region
    _
  $region33: #{transformer_forward.15} parent=0 // pred_fallthru
    _

// kernel: transformer_forward.21
$region0: #{transformer_forward.21}
  #allocation0 [shape = 'u32[]', space=smem, size = 0x4, offset = 0x4, fixed_abs, tag = 'smem constant byte address 0x4 - core index']
  #allocation1 [shape = 'u32[72,128]{1,0:T(1,128)}', space=vmem, size = 0x9000, scoped, tag = 'internal scratch']
  %s0 = inlined_call_operand.vmem [shape: f32[16,32], index: 0, kind: input, shape index: {}]
  %s1 = inlined_call_operand.vmem [shape: bf16[32,64], index: 1, kind: input, shape index: {}]
  %s2 = inlined_call_operand.vmem [shape: f32[1,64], index: 2, kind: input, shape index: {}]
  %s3 = inlined_call_operand.hbm [shape: f32[16,64], index: 3, kind: output, shape index: {}]
  %s4 = sld [smem:[#allocation0]]
  $region22: #{transformer_forward.21} parent=0
    _
  %s6 = ssub.s32 1, %s4
  %s7 = scalar_select 0, %s6, %s4
  $region1: #{transformer_forward.21} parent=0
    #allocation2 [shape = 'u8[8192]{0}', space=vmem, size = 0x2000, scoped, tag = 'output window, operand 0, single buffered']
    #allocation3 [shape = 's32[1]{0}', space=sflag, size = 0x4, scoped, tag = 'scoped memory for transformer_forward.21']
    %8 = vsyncpa [#allocation3], 0
    // Predicated region
    $region2: #{transformer_forward.21} parent=1 // pred_check
      _
    $region3: #{transformer_forward.21} parent=1 // pred_check_branch
      %10 = sbr.rel (0) target = $region5
    $region4: #{transformer_forward.21} parent=1 // pred_region
      _
    $region5: #{transformer_forward.21} parent=1 // pred_fallthru
      _
    // Predicated region
    $region6: #{transformer_forward.21} parent=1 // pred_check
      _
    $region7: #{transformer_forward.21} parent=1 // pred_check_branch
      %12 = sbr.rel (0) target = $region9
    $region8: #{transformer_forward.21} parent=1 // pred_region
      _
    $region9: #{transformer_forward.21} parent=1 // pred_fallthru
      _
    // Predicated region
    $region10: #{transformer_forward.21} parent=1 // pred_check
      _
    $region11: #{transformer_forward.21} parent=1 // pred_check_branch
      %14 = sbr.rel (0) target = $region13
    $region12: #{transformer_forward.21} parent=1 // pred_region
      _
    $region13: #{transformer_forward.21} parent=1 // pred_fallthru
      _
    %v16 = vld [vmem:[%s0] sm:$0xff]
    %v17 = vld [vmem:[%s0 + $0x8] sm:$0xff]
    %v18 = vpack.c.bf16 %v17, %v16
    %v19 = vld [vmem:[%s1] sm:$0xf]
    %v20 = vld [vmem:[%s1 + $0x4] sm:$0xf]
    %v21 = vld [vmem:[%s1 + $0x8] sm:$0xf]
    %v22 = vld [vmem:[%s1 + $0xc] sm:$0xf]
    %v23 = vld [vmem:[%s2] sm:$0x1]
    %v25 = vperm.slane %v23, 0
    %v31 = vunpack.c.l.b16 %v19
    %v32 = vunpack.c.l.b16 %v20
    %v33 = vunpack.c.l.b16 %v21
    %v34 = vunpack.c.l.b16 %v22
    %v35 = vpack.c.b16 %v32, %v31
    %v36 = vpack.c.b16 %v34, %v33
    %vm39 = vcmask 261120
    %v41 = vsel %vm39, %v18, 0
    %43 = vmatpush.bf16.msra.mxu0 0
    %44 = vmatpush.bf16.msra.mxu0 0
    %45 = vmatpush.bf16.msra.mxu0 0
    %46 = vmatpush.bf16.msra.mxu0 0
    %47 = vmatpush.bf16.msra.mxu0 0
    %48 = vmatpush.bf16.msra.mxu0 0
    %49 = vmatpush.bf16.msra.mxu0 %v36
    %50 = vmatpush.bf16.msra.mxu0 %v35
    %51 = vmatmul.bf16.gmra.mxu0 %v41
    %v52 = vpop.f32.mrf.mxu0
    %v53 = vadd.f32 %v25, %v52
    %v54 = vpop.f32.mrf.mxu0
    %v55 = vadd.f32 %v25, %v54
    %56 = vdwg.mxu0
    %vm57 = vcmask 523264
    %58 = vst.msk [vmem:[#allocation2] sm:$0xff] %vm57, %v53
    %59 = vst.msk [vmem:[#allocation2 + $0x8] sm:$0xff] %vm57, %v55
    // Predicated region
    $region14: #{transformer_forward.21} parent=1 // pred_check
      _
    $region15: #{transformer_forward.21} parent=1 // pred_check_branch
      %61 = sbr.rel (0) target = $region17
    $region16: #{transformer_forward.21} parent=1 // pred_region
      %63 = vsyncadd [#allocation3], 0
      %s64 = sshll.u32 [#allocation2], 4
      %s65 = int_to_ptr.vmem [resolvable:$true] %s64
      %s66 = sshll.u32 %s3, 4
      %s67 = int_to_ptr.hbm [resolvable:$true] %s66
      %72 = dma.vmem_to_hbm [thread:$0]  %s65, 256, %s67, [#allocation3], 128, 128, 8
    $region17: #{transformer_forward.21} parent=1 // pred_fallthru
      _
    // Predicated region
    $region18: #{transformer_forward.21} parent=1 // pred_check
      _
    $region19: #{transformer_forward.21} parent=1 // pred_check_branch
      %74 = sbr.rel (0) target = $region21
    $region20: #{transformer_forward.21} parent=1 // pred_region
      %76 = dma.done [#allocation3], 256
    $region21: #{transformer_forward.21} parent=1 // pred_fallthru
      _
    %77 = vsyncpa [#allocation3], 1

// kernel: transformer_forward.17
$region0: #{transformer_forward.17}
  #allocation0 [shape = 'u32[]', space=smem, size = 0x4, offset = 0x4, fixed_abs, tag = 'smem constant byte address 0x4 - core index']
  #allocation1 [shape = 'u32[72,128]{1,0:T(1,128)}', space=vmem, size = 0x9000, scoped, tag = 'internal scratch']
  %s0 = inlined_call_operand.vmem [shape: f32[16,32], index: 0, kind: input, shape index: {}]
  %s1 = inlined_call_operand.vmem [shape: f32[1,32], index: 1, kind: input, shape index: {}]
  %s2 = inlined_call_operand.vmem [shape: f32[1,32], index: 2, kind: input, shape index: {}]
  %s3 = inlined_call_operand.vmem [shape: bf16[32,64], index: 3, kind: input, shape index: {}]
  %s4 = inlined_call_operand.vmem [shape: f32[1,64], index: 4, kind: input, shape index: {}]
  %s5 = inlined_call_operand.vmem [shape: bf16[64,32], index: 5, kind: input, shape index: {}]
  %s6 = inlined_call_operand.vmem [shape: f32[1,32], index: 6, kind: input, shape index: {}]
  %s7 = inlined_call_operand.vmem [shape: f32[16,32], index: 7, kind: output, shape index: {}]
  %s8 = sld [smem:[#allocation0]]
  $region38: #{transformer_forward.17} parent=0
    _
  %s10 = ssub.s32 1, %s8
  %s11 = scalar_select 0, %s10, %s8
  // Predicated region
  $region2: #{transformer_forward.17} parent=0 // pred_check
    _
  $region3: #{transformer_forward.17} parent=0 // pred_check_branch
    %13 = sbr.rel (0) target = $region5
  $region4: #{transformer_forward.17} parent=0 // pred_region
    _
  $region5: #{transformer_forward.17} parent=0 // pred_fallthru
    _
  // Predicated region
  $region6: #{transformer_forward.17} parent=0 // pred_check
    _
  $region7: #{transformer_forward.17} parent=0 // pred_check_branch
    %15 = sbr.rel (0) target = $region9
  $region8: #{transformer_forward.17} parent=0 // pred_region
    _
  $region9: #{transformer_forward.17} parent=0 // pred_fallthru
    _
  // Predicated region
  $region10: #{transformer_forward.17} parent=0 // pred_check
    _
  $region11: #{transformer_forward.17} parent=0 // pred_check_branch
    %17 = sbr.rel (0) target = $region13
  $region12: #{transformer_forward.17} parent=0 // pred_region
    _
  $region13: #{transformer_forward.17} parent=0 // pred_fallthru
    _
  // Predicated region
  $region14: #{transformer_forward.17} parent=0 // pred_check
    _
  $region15: #{transformer_forward.17} parent=0 // pred_check_branch
    %19 = sbr.rel (0) target = $region17
  $region16: #{transformer_forward.17} parent=0 // pred_region
    _
  $region17: #{transformer_forward.17} parent=0 // pred_fallthru
    _
  // Predicated region
  $region18: #{transformer_forward.17} parent=0 // pred_check
    _
  $region19: #{transformer_forward.17} parent=0 // pred_check_branch
    %21 = sbr.rel (0) target = $region21
  $region20: #{transformer_forward.17} parent=0 // pred_region
    _
  $region21: #{transformer_forward.17} parent=0 // pred_fallthru
    _
  // Predicated region
  $region22: #{transformer_forward.17} parent=0 // pred_check
    _
  $region23: #{transformer_forward.17} parent=0 // pred_check_branch
    %23 = sbr.rel (0) target = $region25
  $region24: #{transformer_forward.17} parent=0 // pred_region
    _
  $region25: #{transformer_forward.17} parent=0 // pred_fallthru
    _
  // Predicated region
  $region26: #{transformer_forward.17} parent=0 // pred_check
    _
  $region27: #{transformer_forward.17} parent=0 // pred_check_branch
    %25 = sbr.rel (0) target = $region29
  $region28: #{transformer_forward.17} parent=0 // pred_region
    _
  $region29: #{transformer_forward.17} parent=0 // pred_fallthru
    _
  %v27 = vld [vmem:[%s0] sm:$0xff]
  %v28 = vld [vmem:[%s0 + $0x8] sm:$0xff]
  %v29 = vld [vmem:[%s1] sm:$0x1]
  %v30 = vld [vmem:[%s2] sm:$0x1]
  %vm31 = vcmask 261120
  %v32 = vsel %vm31, %v27, 0.0
  %33 = vadd.xlane.f32.xlu0 %v32
  %v34 = vpop.xlane.xlu0 %33
  %v35 = vsel %vm31, %v28, 0.0
  %36 = vadd.xlane.f32.xlu0 %v35
  %v37 = vpop.xlane.xlu0 %36
  %v38 = vrcp.pop 32.0
  %v39 = vmul.f32 32.0, %v38
  %v40 = vsub.f32 1.0, %v39
  %v41 = vmul.f32 %v38, %v40
  %v42 = vadd.f32 %v38, %v41
  %vm43 = vweird.f32 %v38
  %v44 = vsel %vm43, %v38, %v42
  %v45 = vmul.f32 %v34, %v44
  %v46 = vmul.f32 %v37, %v44
  %v47 = vsub.f32 %v27, %v45
  %v48 = vsub.f32 %v28, %v46
  %v49 = vmul.f32 %v47, %v47
  %v50 = vmul.f32 %v48, %v48
  %v51 = vsel %vm31, %v49, 0.0
  %52 = vadd.xlane.f32.xlu0 %v51
  %v53 = vpop.xlane.xlu0 %52
  %v54 = vsel %vm31, %v50, 0.0
  %55 = vadd.xlane.f32.xlu0 %v54
  %v56 = vpop.xlane.xlu0 %55
  %v57 = vmul.f32 %v53, %v44
  %v58 = vmul.f32 %v56, %v44
  %v59 = vadd.f32 %v57, 1e-05
  %v60 = vadd.f32 %v58, 1e-05
  %v61 = vrsqrt.pop %v59
  %v62 = vmul.f32 %v61, %v59
  %v63 = vmul.f32 %v62, %v61
  %v64 = vmul.f32 0.5, %v63
  %v65 = vsub.f32 1.5, %v64
  %v66 = vmul.f32 %v61, %v65
  %vm67 = vweird.f32 %v59
  %vm68 = vweird.f32 %v61
  %vm69 = vmor %vm67, %vm68
  %v70 = vsel %vm69, %v61, %v66
  %v71 = vrsqrt.pop %v60
  %v72 = vmul.f32 %v71, %v60
  %v73 = vmul.f32 %v72, %v71
  %v74 = vmul.f32 0.5, %v73
  %v75 = vsub.f32 1.5, %v74
  %v76 = vmul.f32 %v71, %v75
  %vm77 = vweird.f32 %v60
  %vm78 = vweird.f32 %v71
  %vm79 = vmor %vm77, %vm78
  %v80 = vsel %vm79, %v71, %v76
  %v81 = vmul.f32 %v47, %v70
  %v82 = vmul.f32 %v48, %v80
  %v84 = vperm.slane %v29, 0
  %v86 = vmul.f32 %v81, %v84
  %v87 = vmul.f32 %v82, %v84
  %v89 = vperm.slane %v30, 0
  %v91 = vadd.f32 %v86, %v89
  %v92 = vadd.f32 %v87, %v89
  %v93 = vpack.c.bf16 %v92, %v91
  %v94 = vld [vmem:[%s3] sm:$0xf]
  %v95 = vld [vmem:[%s3 + $0x4] sm:$0xf]
  %v96 = vld [vmem:[%s3 + $0x8] sm:$0xf]
  %v97 = vld [vmem:[%s3 + $0xc] sm:$0xf]
  %v98 = vld [vmem:[%s4] sm:$0x1]
  %v100 = vperm.slane %v98, 0
  %v106 = vunpack.c.l.b16 %v94
  %v107 = vunpack.c.l.b16 %v95
  %v108 = vunpack.c.l.b16 %v96
  %v109 = vunpack.c.l.b16 %v97
  %v110 = vpack.c.b16 %v107, %v106
  %v111 = vpack.c.b16 %v109, %v108
  %v115 = vsel %vm31, %v93, 0
  %117 = vmatpush.bf16.msra.mxu0 0
  %118 = vmatpush.bf16.msra.mxu0 0
  %119 = vmatpush.bf16.msra.mxu0 0
  %120 = vmatpush.bf16.msra.mxu0 0
  %121 = vmatpush.bf16.msra.mxu0 0
  %122 = vmatpush.bf16.msra.mxu0 0
  %123 = vmatpush.bf16.msra.mxu0 %v111
  %124 = vmatpush.bf16.msra.mxu0 %v110
  %125 = vmatmul.bf16.gmra.mxu0 %v115
  %v126 = vpop.f32.mrf.mxu0
  %v127 = vadd.f32 %v100, %v126
  %v128 = vpop.f32.mrf.mxu0
  %v129 = vadd.f32 %v100, %v128
  %130 = vdwg.mxu0
  %v131 = vmul.f32 %v127, 0.5
  %v132 = vmul.f32 %v129, 0.5
  %v133 = vmul.f32 %v127, 0.70710677
  %v134 = vmul.f32 %v129, 0.70710677
  %v135 = vmul.f32 %v133, %v133
  %v136 = vmin.f32 16.0, %v135
  %v137 = vmul.f32 %v136, 2.1237322e-06
  %v138 = vadd.f32 %v137, 0.00028619796
  %v139 = vmul.f32 %v136, %v138
  %v140 = vadd.f32 %v139, 0.0036580483
  %v141 = vmul.f32 %v136, %v140
  %v142 = vadd.f32 %v141, 0.05243302
  %v143 = vmul.f32 %v136, %v142
  %v144 = vadd.f32 %v143, 0.18741608
  %v145 = vmul.f32 %v136, %v144
  %v146 = vadd.f32 %v145, 1.1283791
  %v147 = vmul.f32 %v133, %v146
  %v148 = vmul.f32 %v136, 3.8918573e-05
  %v149 = vadd.f32 %v148, 0.001143296
  %v150 = vmul.f32 %v136, %v149
  %v151 = vadd.f32 %v150, 0.014752088
  %v152 = vmul.f32 %v136, %v151
  %v153 = vadd.f32 %v152, 0.112945676
  %v154 = vmul.f32 %v136, %v153
  %v155 = vadd.f32 %v154, 0.4994258
  %v156 = vmul.f32 %v136, %v155
  %v157 = vadd.f32 %v156, 1.0
  %v158 = vrcp.pop %v157
  %v159 = vmul.f32 %v157, %v158
  %v160 = vsub.f32 1.0, %v159
  %v161 = vmul.f32 %v158, %v160
  %v162 = vadd.f32 %v158, %v161
  %vm163 = vweird.f32 %v157
  %vm164 = vweird.f32 %v158
  %vm165 = vmor %vm163, %vm164
  %v166 = vsel %vm165, %v158, %v162
  %v167 = vand.u32 2147483647, %v157
  %vm168 = vcmp.eq.f32.partialorder %v167, 8.507059e+37
  %v169 = vand.u32 %v157, 2147483648
  %v170 = vor.u32 1.1754944e-38, %v169
  %v171 = vsel %vm168, %v170, %v166
  %v172 = vmul.f32 %v147, %v171
  %v173 = vmin.f32 %v172, 1.0
  %v174 = vmax.f32 %v173, -1.0
  %v175 = vmul.f32 %v134, %v134
  %v176 = vmin.f32 16.0, %v175
  %v177 = vmul.f32 %v176, 2.1237322e-06
  %v178 = vadd.f32 %v177, 0.00028619796
  %v179 = vmul.f32 %v176, %v178
  %v180 = vadd.f32 %v179, 0.0036580483
  %v181 = vmul.f32 %v176, %v180
  %v182 = vadd.f32 %v181, 0.05243302
  %v183 = vmul.f32 %v176, %v182
  %v184 = vadd.f32 %v183, 0.18741608
  %v185 = vmul.f32 %v176, %v184
  %v186 = vadd.f32 %v185, 1.1283791
  %v187 = vmul.f32 %v134, %v186
  %v188 = vmul.f32 %v176, 3.8918573e-05
  %v189 = vadd.f32 %v188, 0.001143296
  %v190 = vmul.f32 %v176, %v189
  %v191 = vadd.f32 %v190, 0.014752088
  %v192 = vmul.f32 %v176, %v191
  %v193 = vadd.f32 %v192, 0.112945676
  %v194 = vmul.f32 %v176, %v193
  %v195 = vadd.f32 %v194, 0.4994258
  %v196 = vmul.f32 %v176, %v195
  %v197 = vadd.f32 %v196, 1.0
  %v198 = vrcp.pop %v197
  %v199 = vmul.f32 %v197, %v198
  %v200 = vsub.f32 1.0, %v199
  %v201 = vmul.f32 %v198, %v200
  %v202 = vadd.f32 %v198, %v201
  %vm203 = vweird.f32 %v197
  %vm204 = vweird.f32 %v198
  %vm205 = vmor %vm203, %vm204
  %v206 = vsel %vm205, %v198, %v202
  %v207 = vand.u32 2147483647, %v197
  %vm208 = vcmp.eq.f32.partialorder %v207, 8.507059e+37
  %v209 = vand.u32 %v197, 2147483648
  %v210 = vor.u32 1.1754944e-38, %v209
  %v211 = vsel %vm208, %v210, %v206
  %v212 = vmul.f32 %v187, %v211
  %v213 = vmin.f32 %v212, 1.0
  %v214 = vmax.f32 %v213, -1.0
  %v215 = vadd.f32 %v174, 1.0
  %v216 = vadd.f32 %v214, 1.0
  %v217 = vmul.f32 %v131, %v215
  %v218 = vmul.f32 %v132, %v216
  %v219 = vpack.c.bf16 %v218, %v217
  %v220 = vld [vmem:[%s5] sm:$0xf]
  %v221 = vld [vmem:[%s5 + $0x4] sm:$0xf]
  %v222 = vld [vmem:[%s5 + $0x8] sm:$0xf]
  %v223 = vld [vmem:[%s5 + $0xc] sm:$0xf]
  %v224 = vld [vmem:[%s5 + $0x10] sm:$0xf]
  %v225 = vld [vmem:[%s5 + $0x14] sm:$0xf]
  %v226 = vld [vmem:[%s5 + $0x18] sm:$0xf]
  %v227 = vld [vmem:[%s5 + $0x1c] sm:$0xf]
  %v228 = vld [vmem:[%s6] sm:$0x1]
  %v230 = vperm.slane %v228, 0
  %v240 = vunpack.c.l.b16 %v220
  %v241 = vunpack.c.l.b16 %v221
  %v242 = vunpack.c.l.b16 %v222
  %v243 = vunpack.c.l.b16 %v223
  %v244 = vunpack.c.l.b16 %v224
  %v245 = vunpack.c.l.b16 %v225
  %v246 = vunpack.c.l.b16 %v226
  %v247 = vunpack.c.l.b16 %v227
  %v248 = vpack.c.b16 %v241, %v240
  %v249 = vpack.c.b16 %v243, %v242
  %v250 = vpack.c.b16 %v245, %v244
  %v251 = vpack.c.b16 %v247, %v246
  %vm256 = vcmask 523264
  %v258 = vsel %vm256, %v219, 0
  %260 = vmatpush.bf16.msra.mxu0 0
  %261 = vmatpush.bf16.msra.mxu0 0
  %262 = vmatpush.bf16.msra.mxu0 0
  %263 = vmatpush.bf16.msra.mxu0 0
  %264 = vmatpush.bf16.msra.mxu0 %v251
  %265 = vmatpush.bf16.msra.mxu0 %v250
  %266 = vmatpush.bf16.msra.mxu0 %v249
  %267 = vmatpush.bf16.msra.mxu0 %v248
  %268 = vmatmul.bf16.gmra.mxu0 %v258
  %v269 = vpop.f32.mrf.mxu0
  %v270 = vadd.f32 %v230, %v269
  %v271 = vpop.f32.mrf.mxu0
  %v272 = vadd.f32 %v230, %v271
  %273 = vdwg.mxu0
  %274 = vst.msk [vmem:[%s7] sm:$0xff] %vm31, %v270
  %275 = vst.msk [vmem:[%s7 + $0x8] sm:$0xff] %vm31, %v272
  // Predicated region
  $region30: #{transformer_forward.17} parent=0 // pred_check
    _
  $region31: #{transformer_forward.17} parent=0 // pred_check_branch
    %277 = sbr.rel (0) target = $region33
  $region32: #{transformer_forward.17} parent=0 // pred_region
    _
  $region33: #{transformer_forward.17} parent=0 // pred_fallthru
    _
  // Predicated region
  $region34: #{transformer_forward.17} parent=0 // pred_check
    _
  $region35: #{transformer_forward.17} parent=0 // pred_check_branch
    %279 = sbr.rel (0) target = $region37
  $region36: #{transformer_forward.17} parent=0 // pred_region
    _
  $region37: #{transformer_forward.17} parent=0 // pred_fallthru
    _

</llo_original>
